<compile_context>
chip_gen: v6e
topology: v6e:2x2x1
jax: 0.10.0
libtpu: 0.0.40
codegen_flags: <defaults>
</compile_context>

<pallas_src>
import jax
import jax.numpy as jnp
from jax.experimental import pallas as pl
from jax.experimental.pallas import tpu as pltpu


# ----------------------------------------------------------------------------
# Fused kernel: ReLU -> conv3x3 -> BN  -> ReLU -> conv3x3 -> BN  -> + x
# One image (NHWC) per grid step.
# ----------------------------------------------------------------------------
def _resblock_kernel(x_ref, w1_ref, s1_ref, t1_ref, w2_ref, s2_ref, t2_ref,
                     o_ref, xpad_ref):
    _, H, W, C = o_ref.shape

    # Zero the padded scratch; the border stays zero for both branches
    # (only the interior is ever overwritten).
    xpad_ref[...] = jnp.zeros_like(xpad_ref)

    def conv_bn(pre_act, w_ref, scale, shift):
        # pre_act: (H, W, C) f32 pre-ReLU activation.
        # Build the ReLU'd, zero-padded tile entirely in VMEM (no HBM pad).
        xpad_ref[1:H + 1, 1:W + 1, :] = jnp.maximum(pre_act, 0.0)
        xp = xpad_ref[...].astype(jnp.bfloat16)              # (H+2, W+2, C)

        # im2col slab: one deep-K (K = 9*C) MXU matmul with internal
        # accumulation instead of 9 shallow matmuls + VPU adds.
        slab = jnp.concatenate(
            [xp[kh:kh + H, kw:kw + W, :].reshape(H * W, C)
             for kh in range(3) for kw in range(3)],
            axis=-1)                                          # (H*W, 9C) bf16
        acc = jnp.dot(slab, w_ref[...],
                      preferred_element_type=jnp.float32)     # (H*W, C) f32

        # Folded conv-bias + eval-mode BatchNorm epilogue (f32).
        return acc * scale + shift

    x = x_ref[0]                                              # (H, W, C) f32
    y = conv_bn(x, w1_ref, s1_ref[...], t1_ref[...])          # branch 1
    z = conv_bn(y.reshape(H, W, C), w2_ref, s2_ref[...], t2_ref[...])  # branch 2
    out = z + x.reshape(H * W, C)                             # residual, f32
    o_ref[0] = out.reshape(H, W, C).astype(o_ref.dtype)


def _res_block_fused(x_nhwc, folded):
    """y = BN2(conv2(relu(BN1(conv1(relu(x)))))) + x ; NHWC in/out, f32."""
    N, H, W, C = x_nhwc.shape
    b1, b2 = folded["block1"], folded["block2"]

    flops = 2 * 2 * N * H * W * (9 * C) * C
    bytes_accessed = (2 * N * H * W * C * 4            # x in + out
                      + b1["w9"].size * 2 + b2["w9"].size * 2
                      + 4 * C * 4)

    return pl.pallas_call(
        _resblock_kernel,
        out_shape=jax.ShapeDtypeStruct((N, H, W, C), jnp.float32),
        grid=(N,),
        in_specs=[
            pl.BlockSpec((1, H, W, C), lambda n: (n, 0, 0, 0)),   # x
            pl.BlockSpec((9 * C, C), lambda n: (0, 0)),           # w1
            pl.BlockSpec((1, C), lambda n: (0, 0)),               # scale1
            pl.BlockSpec((1, C), lambda n: (0, 0)),               # shift1
            pl.BlockSpec((9 * C, C), lambda n: (0, 0)),           # w2
            pl.BlockSpec((1, C), lambda n: (0, 0)),               # scale2
            pl.BlockSpec((1, C), lambda n: (0, 0)),               # shift2
        ],
        out_specs=pl.BlockSpec((1, H, W, C), lambda n: (n, 0, 0, 0)),
        scratch_shapes=[pltpu.VMEM((H + 2, W + 2, C), jnp.float32)],
        compiler_params=pltpu.CompilerParams(
            dimension_semantics=("parallel",),
            vmem_limit_bytes=32 * 1024 * 1024),
        cost_estimate=pl.CostEstimate(flops=flops, transcendentals=0,
                                      bytes_accessed=bytes_accessed),
    )(x_nhwc, b1["w9"], b1["scale"], b1["shift"],
      b2["w9"], b2["scale"], b2["shift"])


# ----------------------------------------------------------------------------
# Parameters (deterministic synthetic init) and one-time folding/pre-casting.
# ----------------------------------------------------------------------------
def init_params(key, c):
    def conv_bn(k):
        k1, k2, k3, k4, k5, k6 = jax.random.split(k, 6)
        return dict(
            w=jax.random.normal(k1, (3, 3, c, c), jnp.float32) * 0.05,  # HWIO
            b=jax.random.normal(k2, (c,), jnp.float32) * 0.05,
            gamma=1.0 + 0.1 * jax.random.normal(k3, (c,), jnp.float32),
            beta=0.1 * jax.random.normal(k4, (c,), jnp.float32),
            mean=0.1 * jax.random.normal(k5, (c,), jnp.float32),
            var=jnp.abs(1.0 + 0.1 * jax.random.normal(k6, (c,), jnp.float32)),
        )
    k1, k2 = jax.random.split(key)
    return dict(block1=conv_bn(k1), block2=conv_bn(k2))


def fold_params(params, eps=1e-5):
    """Fold conv bias + eval-mode BN into (w_bf16[9C,C], scale[1,C], shift[1,C])."""
    def fold(p):
        inv_std = jax.lax.rsqrt(p["var"] + eps)
        scale = p["gamma"] * inv_std
        shift = p["beta"] - p["mean"] * scale + p["b"] * scale
        c = p["w"].shape[2]
        # (3,3,Cin,Cout) -> (9*Cin, Cout): tap-major, Cin-minor; matches the
        # im2col slab column order (tap*C + cin) built in the kernel.
        w9 = p["w"].reshape(9 * c, c).astype(jnp.bfloat16)
        return dict(w9=w9,
                    scale=scale.reshape(1, -1).astype(jnp.float32),
                    shift=shift.reshape(1, -1).astype(jnp.float32))
    return dict(block1=fold(params["block1"]), block2=fold(params["block2"]))


# ----------------------------------------------------------------------------
# Forward pass (mirrors ResBlock.forward, eval-mode BatchNorm)
# ----------------------------------------------------------------------------
# TODO(synk): training-mode BatchNorm2d (per-batch statistics) not implemented;
# this matches eval()/inference semantics using running statistics.
@jax.jit
def res_block_forward(folded, x_nchw):
    x = jnp.transpose(x_nchw, (0, 2, 3, 1))                    # NCHW -> NHWC
    z = _res_block_fused(x, folded)                            # fused residual block
    return jnp.transpose(z, (0, 3, 1, 2))                      # NHWC -> NCHW


# ----------------------------------------------------------------------------
# Pure-JAX reference (f32) for a correctness sanity check.
# ----------------------------------------------------------------------------
def res_block_reference(params, x_nchw, eps=1e-5):
    def branch(p, inp):
        out = jax.lax.conv_general_dilated(
            jnp.maximum(inp, 0.0), p["w"], (1, 1), ((1, 1), (1, 1)),
            dimension_numbers=("NCHW", "HWIO", "NCHW"))
        out = out + p["b"][None, :, None, None]
        scale = (p["gamma"] * jax.lax.rsqrt(p["var"] + eps))[None, :, None, None]
        return (out - p["mean"][None, :, None, None]) * scale \
            + p["beta"][None, :, None, None]
    y = branch(params["block1"], x_nchw)
    z = branch(params["block2"], y)
    return z + x_nchw


if __name__ == "__main__":
    key = jax.random.PRNGKey(0)
    k_x, k_p = jax.random.split(key)

    B, C, H, W = 4, 128, 16, 16                 # NCHW, like PyTorch
    x = jax.random.normal(k_x, (B, C, H, W), jnp.float32)

    params = init_params(k_p, C)
    folded = fold_params(params)

    out = jax.block_until_ready(res_block_forward(folded, x))
    assert out.shape == (B, C, H, W)

    ref = jax.block_until_ready(res_block_reference(params, x))
    max_err = float(jnp.max(jnp.abs(out - ref)))
    assert max_err < 5e-2, f"max abs err {max_err}"

    print("KERNEL_OK")
</pallas_src>

<mosaic_0001>
module attributes {stable_mosaic.version = 11 : i64} {
  func.func @_resblock_kernel(%arg0: i32, %arg1: memref<1x16x16x128xf32, #tpu.memory_space<vmem>>, %arg2: memref<1152x128xbf16, #tpu.memory_space<vmem>>, %arg3: memref<1x128xf32, #tpu.memory_space<vmem>>, %arg4: memref<1x128xf32, #tpu.memory_space<vmem>>, %arg5: memref<1152x128xbf16, #tpu.memory_space<vmem>>, %arg6: memref<1x128xf32, #tpu.memory_space<vmem>>, %arg7: memref<1x128xf32, #tpu.memory_space<vmem>>, %arg8: memref<1x16x16x128xf32, #tpu.memory_space<vmem>>, %arg9: memref<18x18x128xf32, #tpu.memory_space<vmem>>) attributes {dimension_semantics = [#tpu.dimension_semantics<parallel>], iteration_bounds = array<i64: 4>, scalar_prefetch = 0 : i64, scratch_operands = 1 : i64, tpu.core_type = #tpu.core_type<tc>, window_params = [{transform_indices = @transform_0, window_bounds = array<i64: 1, 16, 16, 128>}, {pipeline_mode = #tpu.pipeline_mode<synchronous>, transform_indices = @transform_1, window_bounds = array<i64: 1152, 128>}, {pipeline_mode = #tpu.pipeline_mode<synchronous>, transform_indices = @transform_2, window_bounds = array<i64: 1, 128>}, {pipeline_mode = #tpu.pipeline_mode<synchronous>, transform_indices = @transform_3, window_bounds = array<i64: 1, 128>}, {pipeline_mode = #tpu.pipeline_mode<synchronous>, transform_indices = @transform_4, window_bounds = array<i64: 1152, 128>}, {pipeline_mode = #tpu.pipeline_mode<synchronous>, transform_indices = @transform_5, window_bounds = array<i64: 1, 128>}, {pipeline_mode = #tpu.pipeline_mode<synchronous>, transform_indices = @transform_6, window_bounds = array<i64: 1, 128>}, {transform_indices = @transform_7, window_bounds = array<i64: 1, 16, 16, 128>}]} {
    %cst = arith.constant 0.000000e+00 : f32
    %0 = vector.broadcast %cst : f32 to vector<18x18x128xf32>
    %c0 = arith.constant 0 : index
    %c0_0 = arith.constant 0 : index
    %c0_1 = arith.constant 0 : index
    %1 = vector.load %arg9[%c0, %c0_0, %c0_1] : memref<18x18x128xf32, #tpu.memory_space<vmem>>, vector<18x18x128xf32>
    tpu.vector_store %arg9[%c0, %c0_0, %c0_1], %0 {strides = array<i32>} : memref<18x18x128xf32, #tpu.memory_space<vmem>>, vector<18x18x128xf32>,
    %c0_2 = arith.constant 0 : index
    %c0_3 = arith.constant 0 : index
    %c0_4 = arith.constant 0 : index
    %c0_5 = arith.constant 0 : index
    %2 = vector.load %arg1[%c0_2, %c0_3, %c0_4, %c0_5] : memref<1x16x16x128xf32, #tpu.memory_space<vmem>>, vector<1x16x16x128xf32>
    %3 = vector.shape_cast %2 : vector<1x16x16x128xf32> to vector<16x16x128xf32>
    %c0_6 = arith.constant 0 : index
    %c0_7 = arith.constant 0 : index
    %4 = vector.load %arg3[%c0_6, %c0_7] : memref<1x128xf32, #tpu.memory_space<vmem>>, vector<1x128xf32>
    %c0_8 = arith.constant 0 : index
    %c0_9 = arith.constant 0 : index
    %5 = vector.load %arg4[%c0_8, %c0_9] : memref<1x128xf32, #tpu.memory_space<vmem>>, vector<1x128xf32>
    %cst_10 = arith.constant 0.000000e+00 : f32
    %6 = vector.broadcast %cst_10 : f32 to vector<16x16x128xf32>
    %7 = arith.maximumf %3, %6 : vector<16x16x128xf32>
    %c1 = arith.constant 1 : index
    %c1_11 = arith.constant 1 : index
    %c0_12 = arith.constant 0 : index
    %8 = vector.load %arg9[%c1, %c1_11, %c0_12] : memref<18x18x128xf32, #tpu.memory_space<vmem>>, vector<16x16x128xf32>
    tpu.vector_store %arg9[%c1, %c1_11, %c0_12], %7 {strides = array<i32>} : memref<18x18x128xf32, #tpu.memory_space<vmem>>, vector<16x16x128xf32>,
    %c0_13 = arith.constant 0 : index
    %c0_14 = arith.constant 0 : index
    %c0_15 = arith.constant 0 : index
    %9 = vector.load %arg9[%c0_13, %c0_14, %c0_15] : memref<18x18x128xf32, #tpu.memory_space<vmem>>, vector<18x18x128xf32>
    %10 = arith.truncf %9 : vector<18x18x128xf32> to vector<18x18x128xbf16>
    %11 = vector.extract_strided_slice %10 {offsets = [0, 0, 0], sizes = [16, 16, 128], strides = [1, 1, 1]} : vector<18x18x128xbf16> to vector<16x16x128xbf16>
    %12 = vector.shape_cast %11 : vector<16x16x128xbf16> to vector<256x128xbf16>
    %13 = vector.extract_strided_slice %10 {offsets = [0, 1, 0], sizes = [16, 16, 128], strides = [1, 1, 1]} : vector<18x18x128xbf16> to vector<16x16x128xbf16>
    %14 = vector.shape_cast %13 : vector<16x16x128xbf16> to vector<256x128xbf16>
    %15 = vector.extract_strided_slice %10 {offsets = [0, 2, 0], sizes = [16, 16, 128], strides = [1, 1, 1]} : vector<18x18x128xbf16> to vector<16x16x128xbf16>
    %16 = vector.shape_cast %15 : vector<16x16x128xbf16> to vector<256x128xbf16>
    %17 = vector.extract_strided_slice %10 {offsets = [1, 0, 0], sizes = [16, 16, 128], strides = [1, 1, 1]} : vector<18x18x128xbf16> to vector<16x16x128xbf16>
    %18 = vector.shape_cast %17 : vector<16x16x128xbf16> to vector<256x128xbf16>
    %19 = vector.extract_strided_slice %10 {offsets = [1, 1, 0], sizes = [16, 16, 128], strides = [1, 1, 1]} : vector<18x18x128xbf16> to vector<16x16x128xbf16>
    %20 = vector.shape_cast %19 : vector<16x16x128xbf16> to vector<256x128xbf16>
    %21 = vector.extract_strided_slice %10 {offsets = [1, 2, 0], sizes = [16, 16, 128], strides = [1, 1, 1]} : vector<18x18x128xbf16> to vector<16x16x128xbf16>
    %22 = vector.shape_cast %21 : vector<16x16x128xbf16> to vector<256x128xbf16>
    %23 = vector.extract_strided_slice %10 {offsets = [2, 0, 0], sizes = [16, 16, 128], strides = [1, 1, 1]} : vector<18x18x128xbf16> to vector<16x16x128xbf16>
    %24 = vector.shape_cast %23 : vector<16x16x128xbf16> to vector<256x128xbf16>
    %25 = vector.extract_strided_slice %10 {offsets = [2, 1, 0], sizes = [16, 16, 128], strides = [1, 1, 1]} : vector<18x18x128xbf16> to vector<16x16x128xbf16>
    %26 = vector.shape_cast %25 : vector<16x16x128xbf16> to vector<256x128xbf16>
    %27 = vector.extract_strided_slice %10 {offsets = [2, 2, 0], sizes = [16, 16, 128], strides = [1, 1, 1]} : vector<18x18x128xbf16> to vector<16x16x128xbf16>
    %28 = vector.shape_cast %27 : vector<16x16x128xbf16> to vector<256x128xbf16>
    %29 = tpu.concatenate %12, %14, %16, %18, %20, %22, %24, %26, %28 in 1 : vector<256x128xbf16>, vector<256x128xbf16>, vector<256x128xbf16>, vector<256x128xbf16>, vector<256x128xbf16>, vector<256x128xbf16>, vector<256x128xbf16>, vector<256x128xbf16>, vector<256x128xbf16> -> vector<256x1152xbf16>
    %c0_16 = arith.constant 0 : index
    %c0_17 = arith.constant 0 : index
    %30 = vector.load %arg2[%c0_16, %c0_17] : memref<1152x128xbf16, #tpu.memory_space<vmem>>, vector<1152x128xbf16>
    %cst_18 = arith.constant dense<0.000000e+00> : vector<256x128xf32>
    %31 = tpu.matmul %29, %30, %cst_18 {dimension_numbers = #tpu.dot_dimension_numbers<[1], [0], [0], [1], [0, 0, 1, 1], [], []>} : vector<256x1152xbf16>, vector<1152x128xbf16>, vector<256x128xf32> -> vector<256x128xf32>
    %32 = vector.broadcast %4 : vector<1x128xf32> to vector<256x128xf32>
    %33 = arith.mulf %31, %32 : vector<256x128xf32>
    %34 = vector.broadcast %5 : vector<1x128xf32> to vector<256x128xf32>
    %35 = arith.addf %33, %34 : vector<256x128xf32>
    %36 = vector.shape_cast %35 : vector<256x128xf32> to vector<16x16x128xf32>
    %c0_19 = arith.constant 0 : index
    %c0_20 = arith.constant 0 : index
    %37 = vector.load %arg6[%c0_19, %c0_20] : memref<1x128xf32, #tpu.memory_space<vmem>>, vector<1x128xf32>
    %c0_21 = arith.constant 0 : index
    %c0_22 = arith.constant 0 : index
    %38 = vector.load %arg7[%c0_21, %c0_22] : memref<1x128xf32, #tpu.memory_space<vmem>>, vector<1x128xf32>
    %cst_23 = arith.constant 0.000000e+00 : f32
    %39 = vector.broadcast %cst_23 : f32 to vector<16x16x128xf32>
    %40 = arith.maximumf %36, %39 : vector<16x16x128xf32>
    %c1_24 = arith.constant 1 : index
    %c1_25 = arith.constant 1 : index
    %c0_26 = arith.constant 0 : index
    %41 = vector.load %arg9[%c1_24, %c1_25, %c0_26] : memref<18x18x128xf32, #tpu.memory_space<vmem>>, vector<16x16x128xf32>
    tpu.vector_store %arg9[%c1_24, %c1_25, %c0_26], %40 {strides = array<i32>} : memref<18x18x128xf32, #tpu.memory_space<vmem>>, vector<16x16x128xf32>,
    %c0_27 = arith.constant 0 : index
    %c0_28 = arith.constant 0 : index
    %c0_29 = arith.constant 0 : index
    %42 = vector.load %arg9[%c0_27, %c0_28, %c0_29] : memref<18x18x128xf32, #tpu.memory_space<vmem>>, vector<18x18x128xf32>
    %43 = arith.truncf %42 : vector<18x18x128xf32> to vector<18x18x128xbf16>
    %44 = vector.extract_strided_slice %43 {offsets = [0, 0, 0], sizes = [16, 16, 128], strides = [1, 1, 1]} : vector<18x18x128xbf16> to vector<16x16x128xbf16>
    %45 = vector.shape_cast %44 : vector<16x16x128xbf16> to vector<256x128xbf16>
    %46 = vector.extract_strided_slice %43 {offsets = [0, 1, 0], sizes = [16, 16, 128], strides = [1, 1, 1]} : vector<18x18x128xbf16> to vector<16x16x128xbf16>
    %47 = vector.shape_cast %46 : vector<16x16x128xbf16> to vector<256x128xbf16>
    %48 = vector.extract_strided_slice %43 {offsets = [0, 2, 0], sizes = [16, 16, 128], strides = [1, 1, 1]} : vector<18x18x128xbf16> to vector<16x16x128xbf16>
    %49 = vector.shape_cast %48 : vector<16x16x128xbf16> to vector<256x128xbf16>
    %50 = vector.extract_strided_slice %43 {offsets = [1, 0, 0], sizes = [16, 16, 128], strides = [1, 1, 1]} : vector<18x18x128xbf16> to vector<16x16x128xbf16>
    %51 = vector.shape_cast %50 : vector<16x16x128xbf16> to vector<256x128xbf16>
    %52 = vector.extract_strided_slice %43 {offsets = [1, 1, 0], sizes = [16, 16, 128], strides = [1, 1, 1]} : vector<18x18x128xbf16> to vector<16x16x128xbf16>
    %53 = vector.shape_cast %52 : vector<16x16x128xbf16> to vector<256x128xbf16>
    %54 = vector.extract_strided_slice %43 {offsets = [1, 2, 0], sizes = [16, 16, 128], strides = [1, 1, 1]} : vector<18x18x128xbf16> to vector<16x16x128xbf16>
    %55 = vector.shape_cast %54 : vector<16x16x128xbf16> to vector<256x128xbf16>
    %56 = vector.extract_strided_slice %43 {offsets = [2, 0, 0], sizes = [16, 16, 128], strides = [1, 1, 1]} : vector<18x18x128xbf16> to vector<16x16x128xbf16>
    %57 = vector.shape_cast %56 : vector<16x16x128xbf16> to vector<256x128xbf16>
    %58 = vector.extract_strided_slice %43 {offsets = [2, 1, 0], sizes = [16, 16, 128], strides = [1, 1, 1]} : vector<18x18x128xbf16> to vector<16x16x128xbf16>
    %59 = vector.shape_cast %58 : vector<16x16x128xbf16> to vector<256x128xbf16>
    %60 = vector.extract_strided_slice %43 {offsets = [2, 2, 0], sizes = [16, 16, 128], strides = [1, 1, 1]} : vector<18x18x128xbf16> to vector<16x16x128xbf16>
    %61 = vector.shape_cast %60 : vector<16x16x128xbf16> to vector<256x128xbf16>
    %62 = tpu.concatenate %45, %47, %49, %51, %53, %55, %57, %59, %61 in 1 : vector<256x128xbf16>, vector<256x128xbf16>, vector<256x128xbf16>, vector<256x128xbf16>, vector<256x128xbf16>, vector<256x128xbf16>, vector<256x128xbf16>, vector<256x128xbf16>, vector<256x128xbf16> -> vector<256x1152xbf16>
    %c0_30 = arith.constant 0 : index
    %c0_31 = arith.constant 0 : index
    %63 = vector.load %arg5[%c0_30, %c0_31] : memref<1152x128xbf16, #tpu.memory_space<vmem>>, vector<1152x128xbf16>
    %cst_32 = arith.constant dense<0.000000e+00> : vector<256x128xf32>
    %64 = tpu.matmul %62, %63, %cst_32 {dimension_numbers = #tpu.dot_dimension_numbers<[1], [0], [0], [1], [0, 0, 1, 1], [], []>} : vector<256x1152xbf16>, vector<1152x128xbf16>, vector<256x128xf32> -> vector<256x128xf32>
    %65 = vector.broadcast %37 : vector<1x128xf32> to vector<256x128xf32>
    %66 = arith.mulf %64, %65 : vector<256x128xf32>
    %67 = vector.broadcast %38 : vector<1x128xf32> to vector<256x128xf32>
    %68 = arith.addf %66, %67 : vector<256x128xf32>
    %69 = vector.shape_cast %3 : vector<16x16x128xf32> to vector<256x128xf32>
    %70 = arith.addf %68, %69 : vector<256x128xf32>
    %71 = vector.shape_cast %70 : vector<256x128xf32> to vector<16x16x128xf32>
    %c0_33 = arith.constant 0 : index
    %c0_34 = arith.constant 0 : index
    %c0_35 = arith.constant 0 : index
    %c0_36 = arith.constant 0 : index
    %72 = vector.load %arg8[%c0_33, %c0_34, %c0_35, %c0_36] : memref<1x16x16x128xf32, #tpu.memory_space<vmem>>, vector<1x16x16x128xf32>
    %73 = vector.shape_cast %72 : vector<1x16x16x128xf32> to vector<16x16x128xf32>
    %74 = vector.shape_cast %71 : vector<16x16x128xf32> to vector<1x16x16x128xf32>
    tpu.vector_store %arg8[%c0_33, %c0_34, %c0_35, %c0_36], %74 {strides = array<i32>} : memref<1x16x16x128xf32, #tpu.memory_space<vmem>>, vector<1x16x16x128xf32>,
    return
  }
  func.func @transform_0(%arg0: i32) -> (i32, i32, i32, i32) {
    %c0_i32 = arith.constant 0 : i32
    %c0_i32_0 = arith.constant 0 : i32
    %c0_i32_1 = arith.constant 0 : i32
    %c0_i32_2 = arith.constant 0 : i32
    return %arg0, %c0_i32, %c0_i32_0, %c0_i32_1 : i32, i32, i32, i32
  }
  func.func @transform_1(%arg0: i32) -> (i32, i32) {
    %c0_i32 = arith.constant 0 : i32
    %c0_i32_0 = arith.constant 0 : i32
    %c0_i32_1 = arith.constant 0 : i32
    return %c0_i32, %c0_i32_0 : i32, i32
  }
  func.func @transform_2(%arg0: i32) -> (i32, i32) {
    %c0_i32 = arith.constant 0 : i32
    %c0_i32_0 = arith.constant 0 : i32
    %c0_i32_1 = arith.constant 0 : i32
    return %c0_i32, %c0_i32_0 : i32, i32
  }
  func.func @transform_3(%arg0: i32) -> (i32, i32) {
    %c0_i32 = arith.constant 0 : i32
    %c0_i32_0 = arith.constant 0 : i32
    %c0_i32_1 = arith.constant 0 : i32
    return %c0_i32, %c0_i32_0 : i32, i32
  }
  func.func @transform_4(%arg0: i32) -> (i32, i32) {
    %c0_i32 = arith.constant 0 : i32
    %c0_i32_0 = arith.constant 0 : i32
    %c0_i32_1 = arith.constant 0 : i32
    return %c0_i32, %c0_i32_0 : i32, i32
  }
  func.func @transform_5(%arg0: i32) -> (i32, i32) {
    %c0_i32 = arith.constant 0 : i32
    %c0_i32_0 = arith.constant 0 : i32
    %c0_i32_1 = arith.constant 0 : i32
    return %c0_i32, %c0_i32_0 : i32, i32
  }
  func.func @transform_6(%arg0: i32) -> (i32, i32) {
    %c0_i32 = arith.constant 0 : i32
    %c0_i32_0 = arith.constant 0 : i32
    %c0_i32_1 = arith.constant 0 : i32
    return %c0_i32, %c0_i32_0 : i32, i32
  }
  func.func @transform_7(%arg0: i32) -> (i32, i32, i32, i32) {
    %c0_i32 = arith.constant 0 : i32
    %c0_i32_0 = arith.constant 0 : i32
    %c0_i32_1 = arith.constant 0 : i32
    %c0_i32_2 = arith.constant 0 : i32
    return %arg0, %c0_i32, %c0_i32_0, %c0_i32_1 : i32, i32, i32, i32
  }
}

</mosaic_0001>

<llo_original>
// kernel: res_block_forward.1
$region0: #{res_block_forward.1}
  #allocation0 [shape = 'u32[]', space=smem, size = 0x4, offset = 0x4, fixed_abs, tag = 'smem constant byte address 0x4 - core index']
  #allocation1 [shape = 'u32[144,128]{1,0:T(1,128)}', space=vmem, size = 0x12000, scoped, tag = 'internal scratch']
  #allocation2 [shape = 'f32[18,18,128]{2,1,0:T(8,128)}', space=vmem, size = 0x36000, scoped, tag = 'scratch operand']
  %s0 = inlined_call_operand.hbm [shape: f32[4,16,16,128], index: 0, kind: input, shape index: {}]
  %s1 = inlined_call_operand.hbm [shape: bf16[1152,128], index: 1, kind: input, shape index: {}]
  %s2 = inlined_call_operand.vmem [shape: f32[1,128], index: 2, kind: input, shape index: {}]
  %s3 = inlined_call_operand.vmem [shape: f32[1,128], index: 3, kind: input, shape index: {}]
  %s4 = inlined_call_operand.hbm [shape: bf16[1152,128], index: 4, kind: input, shape index: {}]
  %s5 = inlined_call_operand.vmem [shape: f32[1,128], index: 5, kind: input, shape index: {}]
  %s6 = inlined_call_operand.vmem [shape: f32[1,128], index: 6, kind: input, shape index: {}]
  %s7 = inlined_call_operand.hbm [shape: f32[4,16,16,128], index: 7, kind: output, shape index: {}]
  %s8 = sld [smem:[#allocation0]]
  $region73: #{res_block_forward.1} parent=0
    _
  %s10 = ssub.s32 1, %s8
  %s11 = scalar_select 0, %s10, %s8
  $region1: #{res_block_forward.1} parent=0
    #allocation3 [shape = 'u8[262144]{0}', space=vmem, size = 0x40000, scoped, tag = 'input window, operand 0']
    #allocation4 [shape = 's32[2]{0}', space=sflag, size = 0x8, scoped, tag = 'scoped memory for res_block_forward.1']
    #allocation5 [shape = 's32[2]{0}', space=sflag, size = 0x8, scoped, tag = 'scoped memory for res_block_forward.1']
    #allocation6 [shape = 'u8[294912]{0}', space=vmem, size = 0x48000, scoped, tag = 'input window, operand 1, single buffered']
    #allocation7 [shape = 's32[1]{0}', space=sflag, size = 0x4, scoped, tag = 'scoped memory for res_block_forward.1']
    #allocation8 [shape = 'u8[294912]{0}', space=vmem, size = 0x48000, scoped, tag = 'input window, operand 4, single buffered']
    #allocation9 [shape = 'u8[262144]{0}', space=vmem, size = 0x40000, scoped, tag = 'output window, operand 0']
    %12 = vsyncpa [#allocation4], 0
    %s13 = scalar_lea.sflag [#allocation4], 1
    %14 = vsyncpa %s13, 0
    %15 = vsyncpa [#allocation7], 0
    %16 = vsyncpa [#allocation5], 0
    %s17 = scalar_lea.sflag [#allocation5], 1
    %18 = vsyncpa %s17, 0
    loop: start=0, step=1, limit=6
    $region2: #{res_block_forward.1} parent=1 // loop_pre_header
      _
    $region3: #{res_block_forward.1} parent=1 // loop_header
      %s20 = sphi 0, %s24
      %p21 = scmp.ge.s32.totalorder %s20, 6
      %s30 = sphi 0, %s32
      %s33 = sphi 0, %s30
      %s34 = sphi 0, %s33
      %s50 = sphi 0, %s34
      %s54 = sphi 0, %s54
      %s56 = sphi 0, %s54
      %s57 = sphi 0, %s56
      %s71 = sphi 0, %s57
      %s75 = sphi 0, %s75
      %s77 = sphi 0, %s75
      %s78 = sphi 0, %s77
      %s92 = sphi 0, %s78
      %s96 = sphi 0, %s96
      %s98 = sphi 0, %s96
      %s99 = sphi 0, %s98
      %s113 = sphi 0, %s99
      %s117 = sphi 0, %s117
      %s119 = sphi 0, %s117
      %s120 = sphi 0, %s119
      %s134 = sphi 0, %s120
      %s138 = sphi 0, %s138
      %s140 = sphi 0, %s138
      %s141 = sphi 0, %s140
      %s155 = sphi 0, %s141
      %s159 = sphi 0, %s159
      %s161 = sphi 0, %s159
      %s162 = sphi 0, %s161
      %s176 = sphi 0, %s162
      %s182 = sphi 0, %s184
      %s185 = sphi 0, %s182
      %s186 = sphi 0, %s185
      %s202 = sphi 0, %s186
    $region4: #{res_block_forward.1} parent=1 // loop_header_branch
      %23 = sbr.rel (%p21) target = $region8
    $region5: #{res_block_forward.1} parent=1 // loop_body
      %s25 = ssub.s32 %s20, 1
      %s26 = ssub.s32 %s20, 2
      %s27 = sadd.s32 %s20, 1
      %s28 = ssub.s32 %s20, %s27
      %p29 = scmp.eq.s32.totalorder %s28, 0
      %s31 = sadd.s32 %s30, 1
      %s32 = scalar_select %p29, %s30, %s31
      %p35 = pneg %p29
      %p36 = scmp.eq.s32.totalorder %s20, 3
      %p37 = por %p35, %p36
      %p38 = scmp.ne.s32.totalorder %s30, %s33
      %p39 = scmp.eq.s32.totalorder %s20, 0
      %p40 = por %p38, %p39
      %p41 = scmp.ne.s32.totalorder %s30, %s33
      %p42 = scmp.eq.s32.totalorder %s25, 3
      %p43 = por %p41, %p42
      %p44 = scmp.ne.s32.totalorder %s33, %s34
      %p45 = scmp.eq.s32.totalorder %s25, 0
      %p46 = por %p44, %p45
      %p47 = scmp.ne.s32.totalorder %s33, %s34
      %p48 = scmp.eq.s32.totalorder %s26, 3
      %p49 = por %p47, %p48
      %p51 = scmp.ne.s32.totalorder %s34, %s50
      %p52 = scmp.eq.s32.totalorder %s26, 0
      %p53 = por %p51, %p52
      %s55 = sadd.s32 %s54, 1
      %p58 = scmp.eq.s32.totalorder %s20, 3
      %p59 = scmp.ne.s32.totalorder %s54, %s56
      %p60 = scmp.eq.s32.totalorder %s20, 0
      %p61 = por %p59, %p60
      %p62 = scmp.ne.s32.totalorder %s54, %s56
      %p63 = scmp.eq.s32.totalorder %s25, 3
      %p64 = por %p62, %p63
      %p65 = scmp.ne.s32.totalorder %s56, %s57
      %p66 = scmp.eq.s32.totalorder %s25, 0
      %p67 = por %p65, %p66
      %p68 = scmp.ne.s32.totalorder %s56, %s57
      %p69 = scmp.eq.s32.totalorder %s26, 3
      %p70 = por %p68, %p69
      %p72 = scmp.ne.s32.totalorder %s57, %s71
      %p73 = scmp.eq.s32.totalorder %s26, 0
      %p74 = por %p72, %p73
      %s76 = sadd.s32 %s75, 1
      %p79 = scmp.eq.s32.totalorder %s20, 3
      %p80 = scmp.ne.s32.totalorder %s75, %s77
      %p81 = scmp.eq.s32.totalorder %s20, 0
      %p82 = por %p80, %p81
      %p83 = scmp.ne.s32.totalorder %s75, %s77
      %p84 = scmp.eq.s32.totalorder %s25, 3
      %p85 = por %p83, %p84
      %p86 = scmp.ne.s32.totalorder %s77, %s78
      %p87 = scmp.eq.s32.totalorder %s25, 0
      %p88 = por %p86, %p87
      %p89 = scmp.ne.s32.totalorder %s77, %s78
      %p90 = scmp.eq.s32.totalorder %s26, 3
      %p91 = por %p89, %p90
      %p93 = scmp.ne.s32.totalorder %s78, %s92
      %p94 = scmp.eq.s32.totalorder %s26, 0
      %p95 = por %p93, %p94
      %s97 = sadd.s32 %s96, 1
      %p100 = scmp.eq.s32.totalorder %s20, 3
      %p101 = scmp.ne.s32.totalorder %s96, %s98
      %p102 = scmp.eq.s32.totalorder %s20, 0
      %p103 = por %p101, %p102
      %p104 = scmp.ne.s32.totalorder %s96, %s98
      %p105 = scmp.eq.s32.totalorder %s25, 3
      %p106 = por %p104, %p105
      %p107 = scmp.ne.s32.totalorder %s98, %s99
      %p108 = scmp.eq.s32.totalorder %s25, 0
      %p109 = por %p107, %p108
      %p110 = scmp.ne.s32.totalorder %s98, %s99
      %p111 = scmp.eq.s32.totalorder %s26, 3
      %p112 = por %p110, %p111
      %p114 = scmp.ne.s32.totalorder %s99, %s113
      %p115 = scmp.eq.s32.totalorder %s26, 0
      %p116 = por %p114, %p115
      %s118 = sadd.s32 %s117, 1
      %p121 = scmp.eq.s32.totalorder %s20, 3
      %p122 = scmp.ne.s32.totalorder %s117, %s119
      %p123 = scmp.eq.s32.totalorder %s20, 0
      %p124 = por %p122, %p123
      %p125 = scmp.ne.s32.totalorder %s117, %s119
      %p126 = scmp.eq.s32.totalorder %s25, 3
      %p127 = por %p125, %p126
      %p128 = scmp.ne.s32.totalorder %s119, %s120
      %p129 = scmp.eq.s32.totalorder %s25, 0
      %p130 = por %p128, %p129
      %p131 = scmp.ne.s32.totalorder %s119, %s120
      %p132 = scmp.eq.s32.totalorder %s26, 3
      %p133 = por %p131, %p132
      %p135 = scmp.ne.s32.totalorder %s120, %s134
      %p136 = scmp.eq.s32.totalorder %s26, 0
      %p137 = por %p135, %p136
      %s139 = sadd.s32 %s138, 1
      %p142 = scmp.eq.s32.totalorder %s20, 3
      %p143 = scmp.ne.s32.totalorder %s138, %s140
      %p144 = scmp.eq.s32.totalorder %s20, 0
      %p145 = por %p143, %p144
      %p146 = scmp.ne.s32.totalorder %s138, %s140
      %p147 = scmp.eq.s32.totalorder %s25, 3
      %p148 = por %p146, %p147
      %p149 = scmp.ne.s32.totalorder %s140, %s141
      %p150 = scmp.eq.s32.totalorder %s25, 0
      %p151 = por %p149, %p150
      %p152 = scmp.ne.s32.totalorder %s140, %s141
      %p153 = scmp.eq.s32.totalorder %s26, 3
      %p154 = por %p152, %p153
      %p156 = scmp.ne.s32.totalorder %s141, %s155
      %p157 = scmp.eq.s32.totalorder %s26, 0
      %p158 = por %p156, %p157
      %s160 = sadd.s32 %s159, 1
      %p163 = scmp.eq.s32.totalorder %s20, 3
      %p164 = scmp.ne.s32.totalorder %s159, %s161
      %p165 = scmp.eq.s32.totalorder %s20, 0
      %p166 = por %p164, %p165
      %p167 = scmp.ne.s32.totalorder %s159, %s161
      %p168 = scmp.eq.s32.totalorder %s25, 3
      %p169 = por %p167, %p168
      %p170 = scmp.ne.s32.totalorder %s161, %s162
      %p171 = scmp.eq.s32.totalorder %s25, 0
      %p172 = por %p170, %p171
      %p173 = scmp.ne.s32.totalorder %s161, %s162
      %p174 = scmp.eq.s32.totalorder %s26, 3
      %p175 = por %p173, %p174
      %p177 = scmp.ne.s32.totalorder %s162, %s176
      %p178 = scmp.eq.s32.totalorder %s26, 0
      %p179 = por %p177, %p178
      %s180 = ssub.s32 %s20, %s27
      %p181 = scmp.eq.s32.totalorder %s180, 0
      %s183 = sadd.s32 %s182, 1
      %s184 = scalar_select %p181, %s182, %s183
      %p187 = pneg %p181
      %p188 = scmp.eq.s32.totalorder %s20, 3
      %p189 = por %p187, %p188
      %p190 = scmp.ne.s32.totalorder %s182, %s185
      %p191 = scmp.eq.s32.totalorder %s20, 0
      %p192 = por %p190, %p191
      %p193 = scmp.ne.s32.totalorder %s182, %s185
      %p194 = scmp.eq.s32.totalorder %s25, 3
      %p195 = por %p193, %p194
      %p196 = scmp.ne.s32.totalorder %s185, %s186
      %p197 = scmp.eq.s32.totalorder %s25, 0
      %p198 = por %p196, %p197
      %p199 = scmp.ne.s32.totalorder %s185, %s186
      %p200 = scmp.eq.s32.totalorder %s26, 3
      %p201 = por %p199, %p200
      %p203 = scmp.ne.s32.totalorder %s186, %s202
      %p204 = scmp.eq.s32.totalorder %s26, 0
      %p205 = por %p203, %p204
      %p206 = scmp.le.s32.totalorder 1, %s20
      %p207 = scmp.lt.s32.totalorder %s20, 5
      %p208 = pnand %p206, %p207
      %p209 = pneg %p208
      // Predicated region
      $region9: #{res_block_forward.1} parent=5 // pred_check
        _
      $region10: #{res_block_forward.1} parent=5 // pred_check_branch
        %211 = sbr.rel (%p208) target = $region12
      $region11: #{res_block_forward.1} parent=5 // pred_region
        %s212 = ssub.s32 %s20, 1
        // Predicated region
        $region13: #{res_block_forward.1} parent=11 // pred_check
          %p213 = pneg %p67
        $region14: #{res_block_forward.1} parent=11 // pred_check_branch
          %215 = sbr.rel (%p213) target = $region16
        $region15: #{res_block_forward.1} parent=11 // pred_region
          %s217 = ssub.s32 9216, 9216
          %218 = vsyncadd [#allocation7], %s217
          %s219 = sshll.u32 [#allocation6], 4
          %s220 = int_to_ptr.vmem [resolvable:$true] %s219
          %225 = dma.hbm_to_vmem [thread:$0]  %s1, 9216, %s220, [#allocation7], 64, 64, 4
        $region16: #{res_block_forward.1} parent=11 // pred_fallthru
          _
        // Predicated region
        $region17: #{res_block_forward.1} parent=11 // pred_check
          %p226 = pneg %p88
        $region18: #{res_block_forward.1} parent=11 // pred_check_branch
          %228 = sbr.rel (%p226) target = $region20
        $region19: #{res_block_forward.1} parent=11 // pred_region
          _
        $region20: #{res_block_forward.1} parent=11 // pred_fallthru
          _
        // Predicated region
        $region21: #{res_block_forward.1} parent=11 // pred_check
          %p229 = pneg %p109
        $region22: #{res_block_forward.1} parent=11 // pred_check_branch
          %231 = sbr.rel (%p229) target = $region24
        $region23: #{res_block_forward.1} parent=11 // pred_region
          _
        $region24: #{res_block_forward.1} parent=11 // pred_fallthru
          _
        // Predicated region
        $region25: #{res_block_forward.1} parent=11 // pred_check
          %p232 = pneg %p130
        $region26: #{res_block_forward.1} parent=11 // pred_check_branch
          %234 = sbr.rel (%p232) target = $region28
        $region27: #{res_block_forward.1} parent=11 // pred_region
          %s236 = ssub.s32 9216, 9216
          %237 = vsyncadd [#allocation7], %s236
          %s238 = sshll.u32 [#allocation8], 4
          %s239 = int_to_ptr.vmem [resolvable:$true] %s238
          %244 = dma.hbm_to_vmem [thread:$0]  %s4, 9216, %s239, [#allocation7], 64, 64, 4
        $region28: #{res_block_forward.1} parent=11 // pred_fallthru
          _
        // Predicated region
        $region29: #{res_block_forward.1} parent=11 // pred_check
          %p245 = pneg %p151
        $region30: #{res_block_forward.1} parent=11 // pred_check_branch
          %247 = sbr.rel (%p245) target = $region32
        $region31: #{res_block_forward.1} parent=11 // pred_region
          _
        $region32: #{res_block_forward.1} parent=11 // pred_fallthru
          _
        // Predicated region
        $region33: #{res_block_forward.1} parent=11 // pred_check
          %p248 = pneg %p172
        $region34: #{res_block_forward.1} parent=11 // pred_check_branch
          %250 = sbr.rel (%p248) target = $region36
        $region35: #{res_block_forward.1} parent=11 // pred_region
          _
        $region36: #{res_block_forward.1} parent=11 // pred_fallthru
          _
      $region12: #{res_block_forward.1} parent=5 // pred_fallthru
        _
      %p251 = scmp.lt.s32.totalorder %s20, 4
      // Predicated region
      $region37: #{res_block_forward.1} parent=5 // pred_check
        %p252 = pneg %p251
      $region38: #{res_block_forward.1} parent=5 // pred_check_branch
        %254 = sbr.rel (%p252) target = $region40
      $region39: #{res_block_forward.1} parent=5 // pred_region
        // Predicated region
        $region41: #{res_block_forward.1} parent=39 // pred_check
          %p255 = pneg %p40
        $region42: #{res_block_forward.1} parent=39 // pred_check_branch
          %257 = sbr.rel (%p255) target = $region44
        $region43: #{res_block_forward.1} parent=39 // pred_region
          %s258 = sand.u32 %s30, 1
          %s259 = scalar_lea.sflag [#allocation4], %s258
          %s260 = sand.u32 %s30, 1
          %s261 = smul.addr %s260, 256
          %s262 = scalar_lea.vmem [#allocation3], %s261
          %s264 = ssub.s32 4096, 4096
          %265 = vsyncadd %s259, %s264
          %s266 = smul.addr %s20, 32
          %s267 = smul.addr %s266, 128
          %s268 = scalar_lea.hbm %s0, %s267
          %s269 = sshll.u32 %s262, 4
          %s270 = int_to_ptr.vmem [resolvable:$true] %s269
          %275 = dma.hbm_to_vmem [thread:$0]  %s268, 4096, %s270, %s259, 128, 128, 8
        $region44: #{res_block_forward.1} parent=39 // pred_fallthru
          _
      $region40: #{res_block_forward.1} parent=5 // pred_fallthru
        _
      %p276 = scmp.le.s32.totalorder 1, %s20
      %p277 = scmp.lt.s32.totalorder %s20, 5
      %p278 = pnand %p276, %p277
      %p279 = pneg %p278
      // Predicated region
      $region45: #{res_block_forward.1} parent=5 // pred_check
        _
      $region46: #{res_block_forward.1} parent=5 // pred_check_branch
        %281 = sbr.rel (%p278) target = $region48
      $region47: #{res_block_forward.1} parent=5 // pred_region
        %s282 = ssub.s32 %s20, 1
        %s283 = sand.u32 %s33, 1
        %s284 = scalar_lea.sflag [#allocation4], %s283
        %s285 = sand.u32 %s33, 1
        %s286 = smul.addr %s285, 256
        %s287 = scalar_lea.vmem [#allocation3], %s286
        // Predicated region
        $region49: #{res_block_forward.1} parent=47 // pred_check
          %p288 = pneg %p46
        $region50: #{res_block_forward.1} parent=47 // pred_check_branch
          %290 = sbr.rel (%p288) target = $region52
        $region51: #{res_block_forward.1} parent=47 // pred_region
          %291 = dma.done %s284, 4096
        $region52: #{res_block_forward.1} parent=47 // pred_fallthru
          _
        // Predicated region
        $region53: #{res_block_forward.1} parent=47 // pred_check
          %p292 = pneg %p67
        $region54: #{res_block_forward.1} parent=47 // pred_check_branch
          %294 = sbr.rel (%p292) target = $region56
        $region55: #{res_block_forward.1} parent=47 // pred_region
          %295 = dma.done [#allocation7], 9216
        $region56: #{res_block_forward.1} parent=47 // pred_fallthru
          _
        // Predicated region
        $region57: #{res_block_forward.1} parent=47 // pred_check
          %p296 = pneg %p130
        $region58: #{res_block_forward.1} parent=47 // pred_check_branch
          %298 = sbr.rel (%p296) target = $region60
        $region59: #{res_block_forward.1} parent=47 // pred_region
          %299 = dma.done [#allocation7], 9216
        $region60: #{res_block_forward.1} parent=47 // pred_fallthru
          _
        %s300 = sand.u32 %s33, 1
        %s301 = scalar_lea.sflag [#allocation4], %s300
        %s302 = sand.u32 %s33, 1
        %s303 = smul.addr %s302, 256
        %s304 = scalar_lea.vmem [#allocation3], %s303
        %p305 = pneg %p46
        %p306 = pneg %p43
        %p307 = pneg %p67
        %p308 = pneg %p64
        %p309 = pneg %p88
        %p310 = pneg %p85
        %p311 = pneg %p109
        %p312 = pneg %p106
        %p313 = pneg %p130
        %p314 = pneg %p127
        %p315 = pneg %p151
        %p316 = pneg %p148
        %p317 = pneg %p172
        %p318 = pneg %p169
        %p319 = pneg %p198
        %p320 = pneg %p195
        %s321 = sand.u32 %s185, 1
        %s322 = scalar_lea.sflag [#allocation5], %s321
        %s323 = sand.u32 %s185, 1
        %s324 = smul.addr %s323, 256
        %s325 = scalar_lea.vmem [#allocation9], %s324
        %327 = vst [vmem:[#allocation2] sm:$0xff] 0.0
        %328 = vst [vmem:[#allocation2 + $0x8] sm:$0xff] 0.0
        %329 = vst [vmem:[#allocation2 + $0x10] sm:$0x3] 0.0
        %330 = vst [vmem:[#allocation2 + $0x18] sm:$0xff] 0.0
        %331 = vst [vmem:[#allocation2 + $0x20] sm:$0xff] 0.0
        %332 = vst [vmem:[#allocation2 + $0x28] sm:$0x3] 0.0
        %333 = vst [vmem:[#allocation2 + $0x30] sm:$0xff] 0.0
        %334 = vst [vmem:[#allocation2 + $0x38] sm:$0xff] 0.0
        %335 = vst [vmem:[#allocation2 + $0x40] sm:$0x3] 0.0
        %336 = vst [vmem:[#allocation2 + $0x48] sm:$0xff] 0.0
        %337 = vst [vmem:[#allocation2 + $0x50] sm:$0xff] 0.0
        %338 = vst [vmem:[#allocation2 + $0x58] sm:$0x3] 0.0
        %339 = vst [vmem:[#allocation2 + $0x60] sm:$0xff] 0.0
        %340 = vst [vmem:[#allocation2 + $0x68] sm:$0xff] 0.0
        %341 = vst [vmem:[#allocation2 + $0x70] sm:$0x3] 0.0
        %342 = vst [vmem:[#allocation2 + $0x78] sm:$0xff] 0.0
        %343 = vst [vmem:[#allocation2 + $0x80] sm:$0xff] 0.0
        %344 = vst [vmem:[#allocation2 + $0x88] sm:$0x3] 0.0
        %345 = vst [vmem:[#allocation2 + $0x90] sm:$0xff] 0.0
        %346 = vst [vmem:[#allocation2 + $0x98] sm:$0xff] 0.0
        %347 = vst [vmem:[#allocation2 + $0xa0] sm:$0x3] 0.0
        %348 = vst [vmem:[#allocation2 + $0xa8] sm:$0xff] 0.0
        %349 = vst [vmem:[#allocation2 + $0xb0] sm:$0xff] 0.0
        %350 = vst [vmem:[#allocation2 + $0xb8] sm:$0x3] 0.0
        %351 = vst [vmem:[#allocation2 + $0xc0] sm:$0xff] 0.0
        %352 = vst [vmem:[#allocation2 + $0xc8] sm:$0xff] 0.0
        %353 = vst [vmem:[#allocation2 + $0xd0] sm:$0x3] 0.0
        %354 = vst [vmem:[#allocation2 + $0xd8] sm:$0xff] 0.0
        %355 = vst [vmem:[#allocation2 + $0xe0] sm:$0xff] 0.0
        %356 = vst [vmem:[#allocation2 + $0xe8] sm:$0x3] 0.0
        %357 = vst [vmem:[#allocation2 + $0xf0] sm:$0xff] 0.0
        %358 = vst [vmem:[#allocation2 + $0xf8] sm:$0xff] 0.0
        %359 = vst [vmem:[#allocation2 + $0x100] sm:$0x3] 0.0
        %360 = vst [vmem:[#allocation2 + $0x108] sm:$0xff] 0.0
        %361 = vst [vmem:[#allocation2 + $0x110] sm:$0xff] 0.0
        %362 = vst [vmem:[#allocation2 + $0x118] sm:$0x3] 0.0
        %363 = vst [vmem:[#allocation2 + $0x120] sm:$0xff] 0.0
        %364 = vst [vmem:[#allocation2 + $0x128] sm:$0xff] 0.0
        %365 = vst [vmem:[#allocation2 + $0x130] sm:$0x3] 0.0
        %366 = vst [vmem:[#allocation2 + $0x138] sm:$0xff] 0.0
        %367 = vst [vmem:[#allocation2 + $0x140] sm:$0xff] 0.0
        %368 = vst [vmem:[#allocation2 + $0x148] sm:$0x3] 0.0
        %369 = vst [vmem:[#allocation2 + $0x150] sm:$0xff] 0.0
        %370 = vst [vmem:[#allocation2 + $0x158] sm:$0xff] 0.0
        %371 = vst [vmem:[#allocation2 + $0x160] sm:$0x3] 0.0
        %372 = vst [vmem:[#allocation2 + $0x168] sm:$0xff] 0.0
        %373 = vst [vmem:[#allocation2 + $0x170] sm:$0xff] 0.0
        %374 = vst [vmem:[#allocation2 + $0x178] sm:$0x3] 0.0
        %375 = vst [vmem:[#allocation2 + $0x180] sm:$0xff] 0.0
        %376 = vst [vmem:[#allocation2 + $0x188] sm:$0xff] 0.0
        %377 = vst [vmem:[#allocation2 + $0x190] sm:$0x3] 0.0
        %378 = vst [vmem:[#allocation2 + $0x198] sm:$0xff] 0.0
        %379 = vst [vmem:[#allocation2 + $0x1a0] sm:$0xff] 0.0
        %380 = vst [vmem:[#allocation2 + $0x1a8] sm:$0x3] 0.0
        %v381 = vld [vmem:[%s287] sm:$0xff]
        %v382 = vld [vmem:[%s287 + $0x8] sm:$0xff]
        %v383 = vld [vmem:[%s287 + $0x10] sm:$0xff]
        %v384 = vld [vmem:[%s287 + $0x18] sm:$0xff]
        %v385 = vld [vmem:[%s287 + $0x20] sm:$0xff]
        %v386 = vld [vmem:[%s287 + $0x28] sm:$0xff]
        %v387 = vld [vmem:[%s287 + $0x30] sm:$0xff]
        %v388 = vld [vmem:[%s287 + $0x38] sm:$0xff]
        %v389 = vld [vmem:[%s287 + $0x40] sm:$0xff]
        %v390 = vld [vmem:[%s287 + $0x48] sm:$0xff]
        %v391 = vld [vmem:[%s287 + $0x50] sm:$0xff]
        %v392 = vld [vmem:[%s287 + $0x58] sm:$0xff]
        %v393 = vld [vmem:[%s287 + $0x60] sm:$0xff]
        %v394 = vld [vmem:[%s287 + $0x68] sm:$0xff]
        %v395 = vld [vmem:[%s287 + $0x70] sm:$0xff]
        %v396 = vld [vmem:[%s287 + $0x78] sm:$0xff]
        %v397 = vld [vmem:[%s287 + $0x80] sm:$0xff]
        %v398 = vld [vmem:[%s287 + $0x88] sm:$0xff]
        %v399 = vld [vmem:[%s287 + $0x90] sm:$0xff]
        %v400 = vld [vmem:[%s287 + $0x98] sm:$0xff]
        %v401 = vld [vmem:[%s287 + $0xa0] sm:$0xff]
        %v402 = vld [vmem:[%s287 + $0xa8] sm:$0xff]
        %v403 = vld [vmem:[%s287 + $0xb0] sm:$0xff]
        %v404 = vld [vmem:[%s287 + $0xb8] sm:$0xff]
        %v405 = vld [vmem:[%s287 + $0xc0] sm:$0xff]
        %v406 = vld [vmem:[%s287 + $0xc8] sm:$0xff]
        %v407 = vld [vmem:[%s287 + $0xd0] sm:$0xff]
        %v408 = vld [vmem:[%s287 + $0xd8] sm:$0xff]
        %v409 = vld [vmem:[%s287 + $0xe0] sm:$0xff]
        %v410 = vld [vmem:[%s287 + $0xe8] sm:$0xff]
        %v411 = vld [vmem:[%s287 + $0xf0] sm:$0xff]
        %v412 = vld [vmem:[%s287 + $0xf8] sm:$0xff]
        %v413 = vld [vmem:[%s2] sm:$0x1]
        %v414 = vld [vmem:[%s3] sm:$0x1]
        %v415 = vmax.f32 %v381, 0.0
        %v416 = vmax.f32 %v382, 0.0
        %v417 = vmax.f32 %v383, 0.0
        %v418 = vmax.f32 %v384, 0.0
        %v419 = vmax.f32 %v385, 0.0
        %v420 = vmax.f32 %v386, 0.0
        %v421 = vmax.f32 %v387, 0.0
        %v422 = vmax.f32 %v388, 0.0
        %v423 = vmax.f32 %v389, 0.0
        %v424 = vmax.f32 %v390, 0.0
        %v425 = vmax.f32 %v391, 0.0
        %v426 = vmax.f32 %v392, 0.0
        %v427 = vmax.f32 %v393, 0.0
        %v428 = vmax.f32 %v394, 0.0
        %v429 = vmax.f32 %v395, 0.0
        %v430 = vmax.f32 %v396, 0.0
        %v431 = vmax.f32 %v397, 0.0
        %v432 = vmax.f32 %v398, 0.0
        %v433 = vmax.f32 %v399, 0.0
        %v434 = vmax.f32 %v400, 0.0
        %v435 = vmax.f32 %v401, 0.0
        %v436 = vmax.f32 %v402, 0.0
        %v437 = vmax.f32 %v403, 0.0
        %v438 = vmax.f32 %v404, 0.0
        %v439 = vmax.f32 %v405, 0.0
        %v440 = vmax.f32 %v406, 0.0
        %v441 = vmax.f32 %v407, 0.0
        %v442 = vmax.f32 %v408, 0.0
        %v443 = vmax.f32 %v409, 0.0
        %v444 = vmax.f32 %v410, 0.0
        %v445 = vmax.f32 %v411, 0.0
        %v446 = vmax.f32 %v412, 0.0
        %s447 = scalar_lea.vmem [#allocation2], 24
        %448 = vst [vmem:[%s447 + $0x1] sm:$0xff] %v415
        %449 = vst [vmem:[%s447 + $0x9] sm:$0xff] %v416
        %450 = vst [vmem:[%s447 + $0x19] sm:$0xff] %v417
        %451 = vst [vmem:[%s447 + $0x21] sm:$0xff] %v418
        %452 = vst [vmem:[%s447 + $0x31] sm:$0xff] %v419
        %453 = vst [vmem:[%s447 + $0x39] sm:$0xff] %v420
        %454 = vst [vmem:[%s447 + $0x49] sm:$0xff] %v421
        %455 = vst [vmem:[%s447 + $0x51] sm:$0xff] %v422
        %456 = vst [vmem:[%s447 + $0x61] sm:$0xff] %v423
        %457 = vst [vmem:[%s447 + $0x69] sm:$0xff] %v424
        %458 = vst [vmem:[%s447 + $0x79] sm:$0xff] %v425
        %459 = vst [vmem:[%s447 + $0x81] sm:$0xff] %v426
        %460 = vst [vmem:[%s447 + $0x91] sm:$0xff] %v427
        %461 = vst [vmem:[%s447 + $0x99] sm:$0xff] %v428
        %462 = vst [vmem:[%s447 + $0xa9] sm:$0xff] %v429
        %463 = vst [vmem:[%s447 + $0xb1] sm:$0xff] %v430
        %464 = vst [vmem:[%s447 + $0xc1] sm:$0xff] %v431
        %465 = vst [vmem:[%s447 + $0xc9] sm:$0xff] %v432
        %466 = vst [vmem:[%s447 + $0xd9] sm:$0xff] %v433
        %467 = vst [vmem:[%s447 + $0xe1] sm:$0xff] %v434
        %468 = vst [vmem:[%s447 + $0xf1] sm:$0xff] %v435
        %469 = vst [vmem:[%s447 + $0xf9] sm:$0xff] %v436
        %470 = vst [vmem:[%s447 + $0x109] sm:$0xff] %v437
        %471 = vst [vmem:[%s447 + $0x111] sm:$0xff] %v438
        %472 = vst [vmem:[%s447 + $0x121] sm:$0xff] %v439
        %473 = vst [vmem:[%s447 + $0x129] sm:$0xff] %v440
        %474 = vst [vmem:[%s447 + $0x139] sm:$0xff] %v441
        %475 = vst [vmem:[%s447 + $0x141] sm:$0xff] %v442
        %476 = vst [vmem:[%s447 + $0x151] sm:$0xff] %v443
        %477 = vst [vmem:[%s447 + $0x159] sm:$0xff] %v444
        %478 = vst [vmem:[%s447 + $0x169] sm:$0xff] %v445
        %479 = vst [vmem:[%s447 + $0x171] sm:$0xff] %v446
        %v480 = vld [vmem:[#allocation2] sm:$0xff]
        %v481 = vld [vmem:[#allocation2 + $0x8] sm:$0xff]
        %v482 = vld [vmem:[#allocation2 + $0x10] sm:$0x3]
        %v483 = vld [vmem:[#allocation2 + $0x18] sm:$0xff]
        %v484 = vld [vmem:[#allocation2 + $0x20] sm:$0xff]
        %v485 = vld [vmem:[#allocation2 + $0x28] sm:$0x3]
        %v486 = vld [vmem:[#allocation2 + $0x30] sm:$0xff]
        %v487 = vld [vmem:[#allocation2 + $0x38] sm:$0xff]
        %v488 = vld [vmem:[#allocation2 + $0x40] sm:$0x3]
        %v489 = vld [vmem:[#allocation2 + $0x48] sm:$0xff]
        %v490 = vld [vmem:[#allocation2 + $0x50] sm:$0xff]
        %v491 = vld [vmem:[#allocation2 + $0x58] sm:$0x3]
        %v492 = vld [vmem:[#allocation2 + $0x60] sm:$0xff]
        %v493 = vld [vmem:[#allocation2 + $0x68] sm:$0xff]
        %v494 = vld [vmem:[#allocation2 + $0x70] sm:$0x3]
        %v495 = vld [vmem:[#allocation2 + $0x78] sm:$0xff]
        %v496 = vld [vmem:[#allocation2 + $0x80] sm:$0xff]
        %v497 = vld [vmem:[#allocation2 + $0x88] sm:$0x3]
        %v498 = vld [vmem:[#allocation2 + $0x90] sm:$0xff]
        %v499 = vld [vmem:[#allocation2 + $0x98] sm:$0xff]
        %v500 = vld [vmem:[#allocation2 + $0xa0] sm:$0x3]
        %v501 = vld [vmem:[#allocation2 + $0xa8] sm:$0xff]
        %v502 = vld [vmem:[#allocation2 + $0xb0] sm:$0xff]
        %v503 = vld [vmem:[#allocation2 + $0xb8] sm:$0x3]
        %v504 = vld [vmem:[#allocation2 + $0xc0] sm:$0xff]
        %v505 = vld [vmem:[#allocation2 + $0xc8] sm:$0xff]
        %v506 = vld [vmem:[#allocation2 + $0xd0] sm:$0x3]
        %v507 = vld [vmem:[#allocation2 + $0xd8] sm:$0xff]
        %v508 = vld [vmem:[#allocation2 + $0xe0] sm:$0xff]
        %v509 = vld [vmem:[#allocation2 + $0xe8] sm:$0x3]
        %v510 = vld [vmem:[#allocation2 + $0xf0] sm:$0xff]
        %v511 = vld [vmem:[#allocation2 + $0xf8] sm:$0xff]
        %v512 = vld [vmem:[#allocation2 + $0x100] sm:$0x3]
        %v513 = vld [vmem:[#allocation2 + $0x108] sm:$0xff]
        %v514 = vld [vmem:[#allocation2 + $0x110] sm:$0xff]
        %v515 = vld [vmem:[#allocation2 + $0x118] sm:$0x3]
        %v516 = vld [vmem:[#allocation2 + $0x120] sm:$0xff]
        %v517 = vld [vmem:[#allocation2 + $0x128] sm:$0xff]
        %v518 = vld [vmem:[#allocation2 + $0x130] sm:$0x3]
        %v519 = vld [vmem:[#allocation2 + $0x138] sm:$0xff]
        %v520 = vld [vmem:[#allocation2 + $0x140] sm:$0xff]
        %v521 = vld [vmem:[#allocation2 + $0x148] sm:$0x3]
        %v522 = vld [vmem:[#allocation2 + $0x150] sm:$0xff]
        %v523 = vld [vmem:[#allocation2 + $0x158] sm:$0xff]
        %v524 = vld [vmem:[#allocation2 + $0x160] sm:$0x3]
        %v525 = vld [vmem:[#allocation2 + $0x168] sm:$0xff]
        %v526 = vld [vmem:[#allocation2 + $0x170] sm:$0xff]
        %v527 = vld [vmem:[#allocation2 + $0x178] sm:$0x3]
        %v528 = vld [vmem:[#allocation2 + $0x180] sm:$0xff]
        %v529 = vld [vmem:[#allocation2 + $0x188] sm:$0xff]
        %v530 = vld [vmem:[#allocation2 + $0x190] sm:$0x3]
        %v531 = vld [vmem:[#allocation2 + $0x198] sm:$0xff]
        %v532 = vld [vmem:[#allocation2 + $0x1a0] sm:$0xff]
        %v533 = vld [vmem:[#allocation2 + $0x1a8] sm:$0x3]
        %v534 = vpack.c.bf16 %v481, %v480
        %v535 = vpack.c.bf16 %v482, %v482
        %v536 = vpack.c.bf16 %v484, %v483
        %v537 = vpack.c.bf16 %v485, %v485
        %v538 = vpack.c.bf16 %v487, %v486
        %v539 = vpack.c.bf16 %v488, %v488
        %v540 = vpack.c.bf16 %v490, %v489
        %v541 = vpack.c.bf16 %v491, %v491
        %v542 = vpack.c.bf16 %v493, %v492
        %v543 = vpack.c.bf16 %v494, %v494
        %v544 = vpack.c.bf16 %v496, %v495
        %v545 = vpack.c.bf16 %v497, %v497
        %v546 = vpack.c.bf16 %v499, %v498
        %v547 = vpack.c.bf16 %v500, %v500
        %v548 = vpack.c.bf16 %v502, %v501
        %v549 = vpack.c.bf16 %v503, %v503
        %v550 = vpack.c.bf16 %v505, %v504
        %v551 = vpack.c.bf16 %v506, %v506
        %v552 = vpack.c.bf16 %v508, %v507
        %v553 = vpack.c.bf16 %v509, %v509
        %v554 = vpack.c.bf16 %v511, %v510
        %v555 = vpack.c.bf16 %v512, %v512
        %v556 = vpack.c.bf16 %v514, %v513
        %v557 = vpack.c.bf16 %v515, %v515
        %v558 = vpack.c.bf16 %v517, %v516
        %v559 = vpack.c.bf16 %v518, %v518
        %v560 = vpack.c.bf16 %v520, %v519
        %v561 = vpack.c.bf16 %v521, %v521
        %v562 = vpack.c.bf16 %v523, %v522
        %v563 = vpack.c.bf16 %v524, %v524
        %v564 = vpack.c.bf16 %v526, %v525
        %v565 = vpack.c.bf16 %v527, %v527
        %v566 = vpack.c.bf16 %v529, %v528
        %v567 = vpack.c.bf16 %v530, %v530
        %v568 = vpack.c.bf16 %v532, %v531
        %v569 = vpack.c.bf16 %v533, %v533
        %vm570 = vsmask.f32 7424
        %v572 = vshrl.u32 %v534, 16
        %v574 = vshll.u32 %v534, 16
        %v576 = vrot.slane %v574, 1
        %v577 = vor.u32 %v572, %v576
        %v579 = vshll.u32 %v535, 16
        %v581 = vrot.slane %v579, 1
        %v582 = vsel %vm570, %v577, %v581
        %v584 = vshrl.u32 %v536, 16
        %v586 = vshll.u32 %v536, 16
        %v588 = vrot.slane %v586, 1
        %v589 = vor.u32 %v584, %v588
        %v591 = vshll.u32 %v537, 16
        %v593 = vrot.slane %v591, 1
        %v594 = vsel %vm570, %v589, %v593
        %v596 = vshrl.u32 %v538, 16
        %v598 = vshll.u32 %v538, 16
        %v600 = vrot.slane %v598, 1
        %v601 = vor.u32 %v596, %v600
        %v603 = vshll.u32 %v539, 16
        %v605 = vrot.slane %v603, 1
        %v606 = vsel %vm570, %v601, %v605
        %v608 = vshrl.u32 %v540, 16
        %v610 = vshll.u32 %v540, 16
        %v612 = vrot.slane %v610, 1
        %v613 = vor.u32 %v608, %v612
        %v615 = vshll.u32 %v541, 16
        %v617 = vrot.slane %v615, 1
        %v618 = vsel %vm570, %v613, %v617
        %v620 = vshrl.u32 %v542, 16
        %v622 = vshll.u32 %v542, 16
        %v624 = vrot.slane %v622, 1
        %v625 = vor.u32 %v620, %v624
        %v627 = vshll.u32 %v543, 16
        %v629 = vrot.slane %v627, 1
        %v630 = vsel %vm570, %v625, %v629
        %v632 = vshrl.u32 %v544, 16
        %v634 = vshll.u32 %v544, 16
        %v636 = vrot.slane %v634, 1
        %v637 = vor.u32 %v632, %v636
        %v639 = vshll.u32 %v545, 16
        %v641 = vrot.slane %v639, 1
        %v642 = vsel %vm570, %v637, %v641
        %v644 = vshrl.u32 %v546, 16
        %v646 = vshll.u32 %v546, 16
        %v648 = vrot.slane %v646, 1
        %v649 = vor.u32 %v644, %v648
        %v651 = vshll.u32 %v547, 16
        %v653 = vrot.slane %v651, 1
        %v654 = vsel %vm570, %v649, %v653
        %v656 = vshrl.u32 %v548, 16
        %v658 = vshll.u32 %v548, 16
        %v660 = vrot.slane %v658, 1
        %v661 = vor.u32 %v656, %v660
        %v663 = vshll.u32 %v549, 16
        %v665 = vrot.slane %v663, 1
        %v666 = vsel %vm570, %v661, %v665
        %v668 = vshrl.u32 %v550, 16
        %v670 = vshll.u32 %v550, 16
        %v672 = vrot.slane %v670, 1
        %v673 = vor.u32 %v668, %v672
        %v675 = vshll.u32 %v551, 16
        %v677 = vrot.slane %v675, 1
        %v678 = vsel %vm570, %v673, %v677
        %v680 = vshrl.u32 %v552, 16
        %v682 = vshll.u32 %v552, 16
        %v684 = vrot.slane %v682, 1
        %v685 = vor.u32 %v680, %v684
        %v687 = vshll.u32 %v553, 16
        %v689 = vrot.slane %v687, 1
        %v690 = vsel %vm570, %v685, %v689
        %v692 = vshrl.u32 %v554, 16
        %v694 = vshll.u32 %v554, 16
        %v696 = vrot.slane %v694, 1
        %v697 = vor.u32 %v692, %v696
        %v699 = vshll.u32 %v555, 16
        %v701 = vrot.slane %v699, 1
        %v702 = vsel %vm570, %v697, %v701
        %v704 = vshrl.u32 %v556, 16
        %v706 = vshll.u32 %v556, 16
        %v708 = vrot.slane %v706, 1
        %v709 = vor.u32 %v704, %v708
        %v711 = vshll.u32 %v557, 16
        %v713 = vrot.slane %v711, 1
        %v714 = vsel %vm570, %v709, %v713
        %v716 = vshrl.u32 %v558, 16
        %v718 = vshll.u32 %v558, 16
        %v720 = vrot.slane %v718, 1
        %v721 = vor.u32 %v716, %v720
        %v723 = vshll.u32 %v559, 16
        %v725 = vrot.slane %v723, 1
        %v726 = vsel %vm570, %v721, %v725
        %v728 = vshrl.u32 %v560, 16
        %v730 = vshll.u32 %v560, 16
        %v732 = vrot.slane %v730, 1
        %v733 = vor.u32 %v728, %v732
        %v735 = vshll.u32 %v561, 16
        %v737 = vrot.slane %v735, 1
        %v738 = vsel %vm570, %v733, %v737
        %v740 = vshrl.u32 %v562, 16
        %v742 = vshll.u32 %v562, 16
        %v744 = vrot.slane %v742, 1
        %v745 = vor.u32 %v740, %v744
        %v747 = vshll.u32 %v563, 16
        %v749 = vrot.slane %v747, 1
        %v750 = vsel %vm570, %v745, %v749
        %v752 = vshrl.u32 %v564, 16
        %v754 = vshll.u32 %v564, 16
        %v756 = vrot.slane %v754, 1
        %v757 = vor.u32 %v752, %v756
        %v759 = vshll.u32 %v565, 16
        %v761 = vrot.slane %v759, 1
        %v762 = vsel %vm570, %v757, %v761
        %vm811 = vcmask 1046528
        %v812 = vrot.slane %v534, 1
        %v813 = vrot.slane %v535, 1
        %v814 = vsel %vm811, %v812, %v813
        %v815 = vrot.slane %v536, 1
        %v816 = vrot.slane %v537, 1
        %v817 = vsel %vm811, %v815, %v816
        %v818 = vrot.slane %v538, 1
        %v819 = vrot.slane %v539, 1
        %v820 = vsel %vm811, %v818, %v819
        %v821 = vrot.slane %v540, 1
        %v822 = vrot.slane %v541, 1
        %v823 = vsel %vm811, %v821, %v822
        %v824 = vrot.slane %v542, 1
        %v825 = vrot.slane %v543, 1
        %v826 = vsel %vm811, %v824, %v825
        %v827 = vrot.slane %v544, 1
        %v828 = vrot.slane %v545, 1
        %v829 = vsel %vm811, %v827, %v828
        %v830 = vrot.slane %v546, 1
        %v831 = vrot.slane %v547, 1
        %v832 = vsel %vm811, %v830, %v831
        %v833 = vrot.slane %v548, 1
        %v834 = vrot.slane %v549, 1
        %v835 = vsel %vm811, %v833, %v834
        %v836 = vrot.slane %v550, 1
        %v837 = vrot.slane %v551, 1
        %v838 = vsel %vm811, %v836, %v837
        %v839 = vrot.slane %v552, 1
        %v840 = vrot.slane %v553, 1
        %v841 = vsel %vm811, %v839, %v840
        %v842 = vrot.slane %v554, 1
        %v843 = vrot.slane %v555, 1
        %v844 = vsel %vm811, %v842, %v843
        %v845 = vrot.slane %v556, 1
        %v846 = vrot.slane %v557, 1
        %v847 = vsel %vm811, %v845, %v846
        %v848 = vrot.slane %v558, 1
        %v849 = vrot.slane %v559, 1
        %v850 = vsel %vm811, %v848, %v849
        %v851 = vrot.slane %v560, 1
        %v852 = vrot.slane %v561, 1
        %v853 = vsel %vm811, %v851, %v852
        %v854 = vrot.slane %v562, 1
        %v855 = vrot.slane %v563, 1
        %v856 = vsel %vm811, %v854, %v855
        %v857 = vrot.slane %v564, 1
        %v858 = vrot.slane %v565, 1
        %v859 = vsel %vm811, %v857, %v858
        %v877 = vshrl.u32 %v566, 16
        %v879 = vshll.u32 %v566, 16
        %v881 = vrot.slane %v879, 1
        %v882 = vor.u32 %v877, %v881
        %v884 = vshll.u32 %v567, 16
        %v886 = vrot.slane %v884, 1
        %v887 = vsel %vm570, %v882, %v886
        %v891 = vrot.slane %v566, 1
        %v892 = vrot.slane %v567, 1
        %v893 = vsel %vm811, %v891, %v892
        %v896 = vshrl.u32 %v568, 16
        %v898 = vshll.u32 %v568, 16
        %v900 = vrot.slane %v898, 1
        %v901 = vor.u32 %v896, %v900
        %v903 = vshll.u32 %v569, 16
        %v905 = vrot.slane %v903, 1
        %v906 = vsel %vm570, %v901, %v905
        %v910 = vrot.slane %v568, 1
        %v911 = vrot.slane %v569, 1
        %v912 = vsel %vm811, %v910, %v911
        %v914 = vld [vmem:[#allocation6] sm:$0xf]
        %v915 = vld [vmem:[#allocation6 + $0x4] sm:$0xf]
        %v916 = vld [vmem:[#allocation6 + $0x8] sm:$0xf]
        %v917 = vld [vmem:[#allocation6 + $0xc] sm:$0xf]
        %v918 = vld [vmem:[#allocation6 + $0x10] sm:$0xf]
        %v919 = vld [vmem:[#allocation6 + $0x14] sm:$0xf]
        %v920 = vld [vmem:[#allocation6 + $0x18] sm:$0xf]
        %v921 = vld [vmem:[#allocation6 + $0x1c] sm:$0xf]
        %v922 = vld [vmem:[#allocation6 + $0x20] sm:$0xf]
        %v923 = vld [vmem:[#allocation6 + $0x24] sm:$0xf]
        %v924 = vld [vmem:[#allocation6 + $0x28] sm:$0xf]
        %v925 = vld [vmem:[#allocation6 + $0x2c] sm:$0xf]
        %v926 = vld [vmem:[#allocation6 + $0x30] sm:$0xf]
        %v927 = vld [vmem:[#allocation6 + $0x34] sm:$0xf]
        %v928 = vld [vmem:[#allocation6 + $0x38] sm:$0xf]
        %v929 = vld [vmem:[#allocation6 + $0x3c] sm:$0xf]
        %v930 = vld [vmem:[#allocation6 + $0x40] sm:$0xf]
        %v931 = vld [vmem:[#allocation6 + $0x44] sm:$0xf]
        %v932 = vld [vmem:[#allocation6 + $0x48] sm:$0xf]
        %v933 = vld [vmem:[#allocation6 + $0x4c] sm:$0xf]
        %v934 = vld [vmem:[#allocation6 + $0x50] sm:$0xf]
        %v935 = vld [vmem:[#allocation6 + $0x54] sm:$0xf]
        %v936 = vld [vmem:[#allocation6 + $0x58] sm:$0xf]
        %v937 = vld [vmem:[#allocation6 + $0x5c] sm:$0xf]
        %v938 = vld [vmem:[#allocation6 + $0x60] sm:$0xf]
        %v939 = vld [vmem:[#allocation6 + $0x64] sm:$0xf]
        %v940 = vld [vmem:[#allocation6 + $0x68] sm:$0xf]
        %v941 = vld [vmem:[#allocation6 + $0x6c] sm:$0xf]
        %v942 = vld [vmem:[#allocation6 + $0x70] sm:$0xf]
        %v943 = vld [vmem:[#allocation6 + $0x74] sm:$0xf]
        %v944 = vld [vmem:[#allocation6 + $0x78] sm:$0xf]
        %v945 = vld [vmem:[#allocation6 + $0x7c] sm:$0xf]
        %v946 = vld [vmem:[#allocation6 + $0x80] sm:$0xf]
        %v947 = vld [vmem:[#allocation6 + $0x84] sm:$0xf]
        %v948 = vld [vmem:[#allocation6 + $0x88] sm:$0xf]
        %v949 = vld [vmem:[#allocation6 + $0x8c] sm:$0xf]
        %v950 = vld [vmem:[#allocation6 + $0x90] sm:$0xf]
        %v951 = vld [vmem:[#allocation6 + $0x94] sm:$0xf]
        %v952 = vld [vmem:[#allocation6 + $0x98] sm:$0xf]
        %v953 = vld [vmem:[#allocation6 + $0x9c] sm:$0xf]
        %v954 = vld [vmem:[#allocation6 + $0xa0] sm:$0xf]
        %v955 = vld [vmem:[#allocation6 + $0xa4] sm:$0xf]
        %v956 = vld [vmem:[#allocation6 + $0xa8] sm:$0xf]
        %v957 = vld [vmem:[#allocation6 + $0xac] sm:$0xf]
        %v958 = vld [vmem:[#allocation6 + $0xb0] sm:$0xf]
        %v959 = vld [vmem:[#allocation6 + $0xb4] sm:$0xf]
        %v960 = vld [vmem:[#allocation6 + $0xb8] sm:$0xf]
        %v961 = vld [vmem:[#allocation6 + $0xbc] sm:$0xf]
        %v962 = vld [vmem:[#allocation6 + $0xc0] sm:$0xf]
        %v963 = vld [vmem:[#allocation6 + $0xc4] sm:$0xf]
        %v964 = vld [vmem:[#allocation6 + $0xc8] sm:$0xf]
        %v965 = vld [vmem:[#allocation6 + $0xcc] sm:$0xf]
        %v966 = vld [vmem:[#allocation6 + $0xd0] sm:$0xf]
        %v967 = vld [vmem:[#allocation6 + $0xd4] sm:$0xf]
        %v968 = vld [vmem:[#allocation6 + $0xd8] sm:$0xf]
        %v969 = vld [vmem:[#allocation6 + $0xdc] sm:$0xf]
        %v970 = vld [vmem:[#allocation6 + $0xe0] sm:$0xf]
        %v971 = vld [vmem:[#allocation6 + $0xe4] sm:$0xf]
        %v972 = vld [vmem:[#allocation6 + $0xe8] sm:$0xf]
        %v973 = vld [vmem:[#allocation6 + $0xec] sm:$0xf]
        %v974 = vld [vmem:[#allocation6 + $0xf0] sm:$0xf]
        %v975 = vld [vmem:[#allocation6 + $0xf4] sm:$0xf]
        %v976 = vld [vmem:[#allocation6 + $0xf8] sm:$0xf]
        %v977 = vld [vmem:[#allocation6 + $0xfc] sm:$0xf]
        %v978 = vld [vmem:[#allocation6 + $0x100] sm:$0xf]
        %v979 = vld [vmem:[#allocation6 + $0x104] sm:$0xf]
        %v980 = vld [vmem:[#allocation6 + $0x108] sm:$0xf]
        %v981 = vld [vmem:[#allocation6 + $0x10c] sm:$0xf]
        %v982 = vld [vmem:[#allocation6 + $0x110] sm:$0xf]
        %v983 = vld [vmem:[#allocation6 + $0x114] sm:$0xf]
        %v984 = vld [vmem:[#allocation6 + $0x118] sm:$0xf]
        %v985 = vld [vmem:[#allocation6 + $0x11c] sm:$0xf]
        %v986 = vld [vmem:[#allocation6 + $0x120] sm:$0xf]
        %v987 = vld [vmem:[#allocation6 + $0x124] sm:$0xf]
        %v988 = vld [vmem:[#allocation6 + $0x128] sm:$0xf]
        %v989 = vld [vmem:[#allocation6 + $0x12c] sm:$0xf]
        %v990 = vld [vmem:[#allocation6 + $0x130] sm:$0xf]
        %v991 = vld [vmem:[#allocation6 + $0x134] sm:$0xf]
        %v992 = vld [vmem:[#allocation6 + $0x138] sm:$0xf]
        %v993 = vld [vmem:[#allocation6 + $0x13c] sm:$0xf]
        %v994 = vld [vmem:[#allocation6 + $0x140] sm:$0xf]
        %v995 = vld [vmem:[#allocation6 + $0x144] sm:$0xf]
        %v996 = vld [vmem:[#allocation6 + $0x148] sm:$0xf]
        %v997 = vld [vmem:[#allocation6 + $0x14c] sm:$0xf]
        %v998 = vld [vmem:[#allocation6 + $0x150] sm:$0xf]
        %v999 = vld [vmem:[#allocation6 + $0x154] sm:$0xf]
        %v1000 = vld [vmem:[#allocation6 + $0x158] sm:$0xf]
        %v1001 = vld [vmem:[#allocation6 + $0x15c] sm:$0xf]
        %v1002 = vld [vmem:[#allocation6 + $0x160] sm:$0xf]
        %v1003 = vld [vmem:[#allocation6 + $0x164] sm:$0xf]
        %v1004 = vld [vmem:[#allocation6 + $0x168] sm:$0xf]
        %v1005 = vld [vmem:[#allocation6 + $0x16c] sm:$0xf]
        %v1006 = vld [vmem:[#allocation6 + $0x170] sm:$0xf]
        %v1007 = vld [vmem:[#allocation6 + $0x174] sm:$0xf]
        %v1008 = vld [vmem:[#allocation6 + $0x178] sm:$0xf]
        %v1009 = vld [vmem:[#allocation6 + $0x17c] sm:$0xf]
        %v1010 = vld [vmem:[#allocation6 + $0x180] sm:$0xf]
        %v1011 = vld [vmem:[#allocation6 + $0x184] sm:$0xf]
        %v1012 = vld [vmem:[#allocation6 + $0x188] sm:$0xf]
        %v1013 = vld [vmem:[#allocation6 + $0x18c] sm:$0xf]
        %v1014 = vld [vmem:[#allocation6 + $0x190] sm:$0xf]
        %v1015 = vld [vmem:[#allocation6 + $0x194] sm:$0xf]
        %v1016 = vld [vmem:[#allocation6 + $0x198] sm:$0xf]
        %v1017 = vld [vmem:[#allocation6 + $0x19c] sm:$0xf]
        %v1018 = vld [vmem:[#allocation6 + $0x1a0] sm:$0xf]
        %v1019 = vld [vmem:[#allocation6 + $0x1a4] sm:$0xf]
        %v1020 = vld [vmem:[#allocation6 + $0x1a8] sm:$0xf]
        %v1021 = vld [vmem:[#allocation6 + $0x1ac] sm:$0xf]
        %v1022 = vld [vmem:[#allocation6 + $0x1b0] sm:$0xf]
        %v1023 = vld [vmem:[#allocation6 + $0x1b4] sm:$0xf]
        %v1024 = vld [vmem:[#allocation6 + $0x1b8] sm:$0xf]
        %v1025 = vld [vmem:[#allocation6 + $0x1bc] sm:$0xf]
        %v1026 = vld [vmem:[#allocation6 + $0x1c0] sm:$0xf]
        %v1027 = vld [vmem:[#allocation6 + $0x1c4] sm:$0xf]
        %v1028 = vld [vmem:[#allocation6 + $0x1c8] sm:$0xf]
        %v1029 = vld [vmem:[#allocation6 + $0x1cc] sm:$0xf]
        %v1030 = vld [vmem:[#allocation6 + $0x1d0] sm:$0xf]
        %v1031 = vld [vmem:[#allocation6 + $0x1d4] sm:$0xf]
        %v1032 = vld [vmem:[#allocation6 + $0x1d8] sm:$0xf]
        %v1033 = vld [vmem:[#allocation6 + $0x1dc] sm:$0xf]
        %v1034 = vld [vmem:[#allocation6 + $0x1e0] sm:$0xf]
        %v1035 = vld [vmem:[#allocation6 + $0x1e4] sm:$0xf]
        %v1036 = vld [vmem:[#allocation6 + $0x1e8] sm:$0xf]
        %v1037 = vld [vmem:[#allocation6 + $0x1ec] sm:$0xf]
        %v1038 = vld [vmem:[#allocation6 + $0x1f0] sm:$0xf]
        %v1039 = vld [vmem:[#allocation6 + $0x1f4] sm:$0xf]
        %v1040 = vld [vmem:[#allocation6 + $0x1f8] sm:$0xf]
        %v1041 = vld [vmem:[#allocation6 + $0x1fc] sm:$0xf]
        %v1042 = vld [vmem:[#allocation6 + $0x200] sm:$0xf]
        %v1043 = vld [vmem:[#allocation6 + $0x204] sm:$0xf]
        %v1044 = vld [vmem:[#allocation6 + $0x208] sm:$0xf]
        %v1045 = vld [vmem:[#allocation6 + $0x20c] sm:$0xf]
        %v1046 = vld [vmem:[#allocation6 + $0x210] sm:$0xf]
        %v1047 = vld [vmem:[#allocation6 + $0x214] sm:$0xf]
        %v1048 = vld [vmem:[#allocation6 + $0x218] sm:$0xf]
        %v1049 = vld [vmem:[#allocation6 + $0x21c] sm:$0xf]
        %v1050 = vld [vmem:[#allocation6 + $0x220] sm:$0xf]
        %v1051 = vld [vmem:[#allocation6 + $0x224] sm:$0xf]
        %v1052 = vld [vmem:[#allocation6 + $0x228] sm:$0xf]
        %v1053 = vld [vmem:[#allocation6 + $0x22c] sm:$0xf]
        %v1054 = vld [vmem:[#allocation6 + $0x230] sm:$0xf]
        %v1055 = vld [vmem:[#allocation6 + $0x234] sm:$0xf]
        %v1056 = vld [vmem:[#allocation6 + $0x238] sm:$0xf]
        %v1057 = vld [vmem:[#allocation6 + $0x23c] sm:$0xf]
        %v1202 = vunpack.c.l.b16 %v914
        %v1203 = vunpack.c.l.b16 %v915
        %v1204 = vunpack.c.l.b16 %v916
        %v1205 = vunpack.c.l.b16 %v917
        %v1206 = vunpack.c.l.b16 %v918
        %v1207 = vunpack.c.l.b16 %v919
        %v1208 = vunpack.c.l.b16 %v920
        %v1209 = vunpack.c.l.b16 %v921
        %v1210 = vunpack.c.l.b16 %v922
        %v1211 = vunpack.c.l.b16 %v923
        %v1212 = vunpack.c.l.b16 %v924
        %v1213 = vunpack.c.l.b16 %v925
        %v1214 = vunpack.c.l.b16 %v926
        %v1215 = vunpack.c.l.b16 %v927
        %v1216 = vunpack.c.l.b16 %v928
        %v1217 = vunpack.c.l.b16 %v929
        %v1218 = vunpack.c.l.b16 %v930
        %v1219 = vunpack.c.l.b16 %v931
        %v1220 = vunpack.c.l.b16 %v932
        %v1221 = vunpack.c.l.b16 %v933
        %v1222 = vunpack.c.l.b16 %v934
        %v1223 = vunpack.c.l.b16 %v935
        %v1224 = vunpack.c.l.b16 %v936
        %v1225 = vunpack.c.l.b16 %v937
        %v1226 = vunpack.c.l.b16 %v938
        %v1227 = vunpack.c.l.b16 %v939
        %v1228 = vunpack.c.l.b16 %v940
        %v1229 = vunpack.c.l.b16 %v941
        %v1230 = vunpack.c.l.b16 %v942
        %v1231 = vunpack.c.l.b16 %v943
        %v1232 = vunpack.c.l.b16 %v944
        %v1233 = vunpack.c.l.b16 %v945
        %v1234 = vunpack.c.l.b16 %v946
        %v1235 = vunpack.c.l.b16 %v947
        %v1236 = vunpack.c.l.b16 %v948
        %v1237 = vunpack.c.l.b16 %v949
        %v1238 = vunpack.c.l.b16 %v950
        %v1239 = vunpack.c.l.b16 %v951
        %v1240 = vunpack.c.l.b16 %v952
        %v1241 = vunpack.c.l.b16 %v953
        %v1242 = vunpack.c.l.b16 %v954
        %v1243 = vunpack.c.l.b16 %v955
        %v1244 = vunpack.c.l.b16 %v956
        %v1245 = vunpack.c.l.b16 %v957
        %v1246 = vunpack.c.l.b16 %v958
        %v1247 = vunpack.c.l.b16 %v959
        %v1248 = vunpack.c.l.b16 %v960
        %v1249 = vunpack.c.l.b16 %v961
        %v1250 = vunpack.c.l.b16 %v962
        %v1251 = vunpack.c.l.b16 %v963
        %v1252 = vunpack.c.l.b16 %v964
        %v1253 = vunpack.c.l.b16 %v965
        %v1254 = vunpack.c.l.b16 %v966
        %v1255 = vunpack.c.l.b16 %v967
        %v1256 = vunpack.c.l.b16 %v968
        %v1257 = vunpack.c.l.b16 %v969
        %v1258 = vunpack.c.l.b16 %v970
        %v1259 = vunpack.c.l.b16 %v971
        %v1260 = vunpack.c.l.b16 %v972
        %v1261 = vunpack.c.l.b16 %v973
        %v1262 = vunpack.c.l.b16 %v974
        %v1263 = vunpack.c.l.b16 %v975
        %v1264 = vunpack.c.l.b16 %v976
        %v1265 = vunpack.c.l.b16 %v977
        %v1266 = vunpack.c.l.b16 %v978
        %v1267 = vunpack.c.l.b16 %v979
        %v1268 = vunpack.c.l.b16 %v980
        %v1269 = vunpack.c.l.b16 %v981
        %v1270 = vunpack.c.l.b16 %v982
        %v1271 = vunpack.c.l.b16 %v983
        %v1272 = vunpack.c.l.b16 %v984
        %v1273 = vunpack.c.l.b16 %v985
        %v1274 = vunpack.c.l.b16 %v986
        %v1275 = vunpack.c.l.b16 %v987
        %v1276 = vunpack.c.l.b16 %v988
        %v1277 = vunpack.c.l.b16 %v989
        %v1278 = vunpack.c.l.b16 %v990
        %v1279 = vunpack.c.l.b16 %v991
        %v1280 = vunpack.c.l.b16 %v992
        %v1281 = vunpack.c.l.b16 %v993
        %v1282 = vunpack.c.l.b16 %v994
        %v1283 = vunpack.c.l.b16 %v995
        %v1284 = vunpack.c.l.b16 %v996
        %v1285 = vunpack.c.l.b16 %v997
        %v1286 = vunpack.c.l.b16 %v998
        %v1287 = vunpack.c.l.b16 %v999
        %v1288 = vunpack.c.l.b16 %v1000
        %v1289 = vunpack.c.l.b16 %v1001
        %v1290 = vunpack.c.l.b16 %v1002
        %v1291 = vunpack.c.l.b16 %v1003
        %v1292 = vunpack.c.l.b16 %v1004
        %v1293 = vunpack.c.l.b16 %v1005
        %v1294 = vunpack.c.l.b16 %v1006
        %v1295 = vunpack.c.l.b16 %v1007
        %v1296 = vunpack.c.l.b16 %v1008
        %v1297 = vunpack.c.l.b16 %v1009
        %v1298 = vunpack.c.l.b16 %v1010
        %v1299 = vunpack.c.l.b16 %v1011
        %v1300 = vunpack.c.l.b16 %v1012
        %v1301 = vunpack.c.l.b16 %v1013
        %v1302 = vunpack.c.l.b16 %v1014
        %v1303 = vunpack.c.l.b16 %v1015
        %v1304 = vunpack.c.l.b16 %v1016
        %v1305 = vunpack.c.l.b16 %v1017
        %v1306 = vunpack.c.l.b16 %v1018
        %v1307 = vunpack.c.l.b16 %v1019
        %v1308 = vunpack.c.l.b16 %v1020
        %v1309 = vunpack.c.l.b16 %v1021
        %v1310 = vunpack.c.l.b16 %v1022
        %v1311 = vunpack.c.l.b16 %v1023
        %v1312 = vunpack.c.l.b16 %v1024
        %v1313 = vunpack.c.l.b16 %v1025
        %v1314 = vunpack.c.l.b16 %v1026
        %v1315 = vunpack.c.l.b16 %v1027
        %v1316 = vunpack.c.l.b16 %v1028
        %v1317 = vunpack.c.l.b16 %v1029
        %v1318 = vunpack.c.l.b16 %v1030
        %v1319 = vunpack.c.l.b16 %v1031
        %v1320 = vunpack.c.l.b16 %v1032
        %v1321 = vunpack.c.l.b16 %v1033
        %v1322 = vunpack.c.l.b16 %v1034
        %v1323 = vunpack.c.l.b16 %v1035
        %v1324 = vunpack.c.l.b16 %v1036
        %v1325 = vunpack.c.l.b16 %v1037
        %v1326 = vunpack.c.l.b16 %v1038
        %v1327 = vunpack.c.l.b16 %v1039
        %v1328 = vunpack.c.l.b16 %v1040
        %v1329 = vunpack.c.l.b16 %v1041
        %v1330 = vunpack.c.l.b16 %v1042
        %v1331 = vunpack.c.l.b16 %v1043
        %v1332 = vunpack.c.l.b16 %v1044
        %v1333 = vunpack.c.l.b16 %v1045
        %v1334 = vunpack.c.l.b16 %v1046
        %v1335 = vunpack.c.l.b16 %v1047
        %v1336 = vunpack.c.l.b16 %v1048
        %v1337 = vunpack.c.l.b16 %v1049
        %v1338 = vunpack.c.l.b16 %v1050
        %v1339 = vunpack.c.l.b16 %v1051
        %v1340 = vunpack.c.l.b16 %v1052
        %v1341 = vunpack.c.l.b16 %v1053
        %v1342 = vunpack.c.l.b16 %v1054
        %v1343 = vunpack.c.l.b16 %v1055
        %v1344 = vunpack.c.l.b16 %v1056
        %v1345 = vunpack.c.l.b16 %v1057
        %v1346 = vpack.c.b16 %v1203, %v1202
        %v1347 = vpack.c.b16 %v1205, %v1204
        %v1348 = vpack.c.b16 %v1207, %v1206
        %v1349 = vpack.c.b16 %v1209, %v1208
        %v1350 = vpack.c.b16 %v1211, %v1210
        %v1351 = vpack.c.b16 %v1213, %v1212
        %v1352 = vpack.c.b16 %v1215, %v1214
        %v1353 = vpack.c.b16 %v1217, %v1216
        %v1354 = vpack.c.b16 %v1219, %v1218
        %v1355 = vpack.c.b16 %v1221, %v1220
        %v1356 = vpack.c.b16 %v1223, %v1222
        %v1357 = vpack.c.b16 %v1225, %v1224
        %v1358 = vpack.c.b16 %v1227, %v1226
        %v1359 = vpack.c.b16 %v1229, %v1228
        %v1360 = vpack.c.b16 %v1231, %v1230
        %v1361 = vpack.c.b16 %v1233, %v1232
        %v1362 = vpack.c.b16 %v1235, %v1234
        %v1363 = vpack.c.b16 %v1237, %v1236
        %v1364 = vpack.c.b16 %v1239, %v1238
        %v1365 = vpack.c.b16 %v1241, %v1240
        %v1366 = vpack.c.b16 %v1243, %v1242
        %v1367 = vpack.c.b16 %v1245, %v1244
        %v1368 = vpack.c.b16 %v1247, %v1246
        %v1369 = vpack.c.b16 %v1249, %v1248
        %v1370 = vpack.c.b16 %v1251, %v1250
        %v1371 = vpack.c.b16 %v1253, %v1252
        %v1372 = vpack.c.b16 %v1255, %v1254
        %v1373 = vpack.c.b16 %v1257, %v1256
        %v1374 = vpack.c.b16 %v1259, %v1258
        %v1375 = vpack.c.b16 %v1261, %v1260
        %v1376 = vpack.c.b16 %v1263, %v1262
        %v1377 = vpack.c.b16 %v1265, %v1264
        %v1378 = vpack.c.b16 %v1267, %v1266
        %v1379 = vpack.c.b16 %v1269, %v1268
        %v1380 = vpack.c.b16 %v1271, %v1270
        %v1381 = vpack.c.b16 %v1273, %v1272
        %v1382 = vpack.c.b16 %v1275, %v1274
        %v1383 = vpack.c.b16 %v1277, %v1276
        %v1384 = vpack.c.b16 %v1279, %v1278
        %v1385 = vpack.c.b16 %v1281, %v1280
        %v1386 = vpack.c.b16 %v1283, %v1282
        %v1387 = vpack.c.b16 %v1285, %v1284
        %v1388 = vpack.c.b16 %v1287, %v1286
        %v1389 = vpack.c.b16 %v1289, %v1288
        %v1390 = vpack.c.b16 %v1291, %v1290
        %v1391 = vpack.c.b16 %v1293, %v1292
        %v1392 = vpack.c.b16 %v1295, %v1294
        %v1393 = vpack.c.b16 %v1297, %v1296
        %v1394 = vpack.c.b16 %v1299, %v1298
        %v1395 = vpack.c.b16 %v1301, %v1300
        %v1396 = vpack.c.b16 %v1303, %v1302
        %v1397 = vpack.c.b16 %v1305, %v1304
        %v1398 = vpack.c.b16 %v1307, %v1306
        %v1399 = vpack.c.b16 %v1309, %v1308
        %v1400 = vpack.c.b16 %v1311, %v1310
        %v1401 = vpack.c.b16 %v1313, %v1312
        %v1402 = vpack.c.b16 %v1315, %v1314
        %v1403 = vpack.c.b16 %v1317, %v1316
        %v1404 = vpack.c.b16 %v1319, %v1318
        %v1405 = vpack.c.b16 %v1321, %v1320
        %v1406 = vpack.c.b16 %v1323, %v1322
        %v1407 = vpack.c.b16 %v1325, %v1324
        %v1408 = vpack.c.b16 %v1327, %v1326
        %v1409 = vpack.c.b16 %v1329, %v1328
        %v1410 = vpack.c.b16 %v1331, %v1330
        %v1411 = vpack.c.b16 %v1333, %v1332
        %v1412 = vpack.c.b16 %v1335, %v1334
        %v1413 = vpack.c.b16 %v1337, %v1336
        %v1414 = vpack.c.b16 %v1339, %v1338
        %v1415 = vpack.c.b16 %v1341, %v1340
        %v1416 = vpack.c.b16 %v1343, %v1342
        %v1417 = vpack.c.b16 %v1345, %v1344
        %1490 = vmatprep.subr.bf16.mxu0 0
        %1491 = vmatpush1.bf16.msra.mxu0 %v1353
        %1492 = vmatprep.subr.bf16.mxu0 0
        %1493 = vmatpush1.bf16.msra.mxu0 %v1352
        %1494 = vmatprep.subr.bf16.mxu0 0
        %1495 = vmatpush1.bf16.msra.mxu0 %v1351
        %1496 = vmatprep.subr.bf16.mxu0 0
        %1497 = vmatpush1.bf16.msra.mxu0 %v1350
        %1498 = vmatprep.subr.bf16.mxu0 0
        %1499 = vmatpush1.bf16.msra.mxu0 %v1349
        %1500 = vmatprep.subr.bf16.mxu0 0
        %1501 = vmatpush1.bf16.msra.mxu0 %v1348
        %1502 = vmatprep.subr.bf16.mxu0 0
        %1503 = vmatpush1.bf16.msra.mxu0 %v1347
        %1504 = vmatprep.subr.bf16.mxu0 0
        %1505 = vmatpush1.bf16.msra.mxu0 %v1346
        %1506 = vmatprep.subr.bf16.mxu0 0
        %1507 = vmatpush2.bf16.msra.mxu0 %v1361
        %1508 = vmatprep.subr.bf16.mxu0 0
        %1509 = vmatpush2.bf16.msra.mxu0 %v1360
        %1510 = vmatprep.subr.bf16.mxu0 0
        %1511 = vmatpush2.bf16.msra.mxu0 %v1359
        %1512 = vmatprep.subr.bf16.mxu0 0
        %1513 = vmatpush2.bf16.msra.mxu0 %v1358
        %1514 = vmatprep.subr.bf16.mxu0 0
        %1515 = vmatpush2.bf16.msra.mxu0 %v1357
        %1516 = vmatprep.subr.bf16.mxu0 0
        %1517 = vmatpush2.bf16.msra.mxu0 %v1356
        %1518 = vmatprep.subr.bf16.mxu0 0
        %1519 = vmatpush2.bf16.msra.mxu0 %v1355
        %1520 = vmatprep.subr.bf16.mxu0 0
        %1521 = vmatpush2.bf16.msra.mxu0 %v1354
        %1522 = vmatprep.mubr.bf16.mxu0 %v582
        %1523 = vmatmul.mubr.bf16.gmra.mxu0 %v534
        %v1524 = vpop.f32.mrf.mxu0
        %v1525 = vadd.f32 0.0, %v1524
        %v1526 = vpop.f32.mrf.mxu0
        %v1527 = vpop.f32.mrf.mxu0
        %v1528 = vadd.f32 0.0, %v1527
        %v1529 = vpop.f32.mrf.mxu0
        %1530 = vmatprep.mubr.bf16.mxu0 %v594
        %1531 = vmatmul.mubr.bf16.gmra.mxu0 %v536
        %v1532 = vpop.f32.mrf.mxu0
        %v1533 = vadd.f32 0.0, %v1532
        %v1534 = vpop.f32.mrf.mxu0
        %v1535 = vpop.f32.mrf.mxu0
        %v1536 = vadd.f32 0.0, %v1535
        %v1537 = vpop.f32.mrf.mxu0
        %1538 = vmatprep.mubr.bf16.mxu0 %v606
        %1539 = vmatmul.mubr.bf16.gmra.mxu0 %v538
        %v1540 = vpop.f32.mrf.mxu0
        %v1541 = vadd.f32 0.0, %v1540
        %v1542 = vpop.f32.mrf.mxu0
        %v1543 = vpop.f32.mrf.mxu0
        %v1544 = vadd.f32 0.0, %v1543
        %v1545 = vpop.f32.mrf.mxu0
        %1546 = vmatprep.mubr.bf16.mxu0 %v618
        %1547 = vmatmul.mubr.bf16.gmra.mxu0 %v540
        %v1548 = vpop.f32.mrf.mxu0
        %v1549 = vadd.f32 0.0, %v1548
        %v1550 = vpop.f32.mrf.mxu0
        %v1551 = vpop.f32.mrf.mxu0
        %v1552 = vadd.f32 0.0, %v1551
        %v1553 = vpop.f32.mrf.mxu0
        %1554 = vmatprep.mubr.bf16.mxu0 %v630
        %1555 = vmatmul.mubr.bf16.gmra.mxu0 %v542
        %v1556 = vpop.f32.mrf.mxu0
        %v1557 = vadd.f32 0.0, %v1556
        %v1558 = vpop.f32.mrf.mxu0
        %v1559 = vpop.f32.mrf.mxu0
        %v1560 = vadd.f32 0.0, %v1559
        %v1561 = vpop.f32.mrf.mxu0
        %1562 = vmatprep.mubr.bf16.mxu0 %v642
        %1563 = vmatmul.mubr.bf16.gmra.mxu0 %v544
        %v1564 = vpop.f32.mrf.mxu0
        %v1565 = vadd.f32 0.0, %v1564
        %v1566 = vpop.f32.mrf.mxu0
        %v1567 = vpop.f32.mrf.mxu0
        %v1568 = vadd.f32 0.0, %v1567
        %v1569 = vpop.f32.mrf.mxu0
        %1570 = vmatprep.mubr.bf16.mxu0 %v654
        %1571 = vmatmul.mubr.bf16.gmra.mxu0 %v546
        %v1572 = vpop.f32.mrf.mxu0
        %v1573 = vadd.f32 0.0, %v1572
        %v1574 = vpop.f32.mrf.mxu0
        %v1575 = vpop.f32.mrf.mxu0
        %v1576 = vadd.f32 0.0, %v1575
        %v1577 = vpop.f32.mrf.mxu0
        %1578 = vmatprep.mubr.bf16.mxu0 %v666
        %1579 = vmatmul.mubr.bf16.gmra.mxu0 %v548
        %v1580 = vpop.f32.mrf.mxu0
        %v1581 = vadd.f32 0.0, %v1580
        %v1582 = vpop.f32.mrf.mxu0
        %v1583 = vpop.f32.mrf.mxu0
        %v1584 = vadd.f32 0.0, %v1583
        %v1585 = vpop.f32.mrf.mxu0
        %1586 = vmatprep.mubr.bf16.mxu0 %v678
        %1587 = vmatmul.mubr.bf16.gmra.mxu0 %v550
        %v1588 = vpop.f32.mrf.mxu0
        %v1589 = vadd.f32 0.0, %v1588
        %v1590 = vpop.f32.mrf.mxu0
        %v1591 = vpop.f32.mrf.mxu0
        %v1592 = vadd.f32 0.0, %v1591
        %v1593 = vpop.f32.mrf.mxu0
        %1594 = vmatprep.mubr.bf16.mxu0 %v690
        %1595 = vmatmul.mubr.bf16.gmra.mxu0 %v552
        %v1596 = vpop.f32.mrf.mxu0
        %v1597 = vadd.f32 0.0, %v1596
        %v1598 = vpop.f32.mrf.mxu0
        %v1599 = vpop.f32.mrf.mxu0
        %v1600 = vadd.f32 0.0, %v1599
        %v1601 = vpop.f32.mrf.mxu0
        %1602 = vmatprep.mubr.bf16.mxu0 %v702
        %1603 = vmatmul.mubr.bf16.gmra.mxu0 %v554
        %v1604 = vpop.f32.mrf.mxu0
        %v1605 = vadd.f32 0.0, %v1604
        %v1606 = vpop.f32.mrf.mxu0
        %v1607 = vpop.f32.mrf.mxu0
        %v1608 = vadd.f32 0.0, %v1607
        %v1609 = vpop.f32.mrf.mxu0
        %1610 = vmatprep.mubr.bf16.mxu0 %v714
        %1611 = vmatmul.mubr.bf16.gmra.mxu0 %v556
        %v1612 = vpop.f32.mrf.mxu0
        %v1613 = vadd.f32 0.0, %v1612
        %v1614 = vpop.f32.mrf.mxu0
        %v1615 = vpop.f32.mrf.mxu0
        %v1616 = vadd.f32 0.0, %v1615
        %v1617 = vpop.f32.mrf.mxu0
        %1618 = vmatprep.mubr.bf16.mxu0 %v726
        %1619 = vmatmul.mubr.bf16.gmra.mxu0 %v558
        %v1620 = vpop.f32.mrf.mxu0
        %v1621 = vadd.f32 0.0, %v1620
        %v1622 = vpop.f32.mrf.mxu0
        %v1623 = vpop.f32.mrf.mxu0
        %v1624 = vadd.f32 0.0, %v1623
        %v1625 = vpop.f32.mrf.mxu0
        %1626 = vmatprep.mubr.bf16.mxu0 %v738
        %1627 = vmatmul.mubr.bf16.gmra.mxu0 %v560
        %v1628 = vpop.f32.mrf.mxu0
        %v1629 = vadd.f32 0.0, %v1628
        %v1630 = vpop.f32.mrf.mxu0
        %v1631 = vpop.f32.mrf.mxu0
        %v1632 = vadd.f32 0.0, %v1631
        %v1633 = vpop.f32.mrf.mxu0
        %1634 = vmatprep.mubr.bf16.mxu0 %v750
        %1635 = vmatmul.mubr.bf16.gmra.mxu0 %v562
        %v1636 = vpop.f32.mrf.mxu0
        %v1637 = vadd.f32 0.0, %v1636
        %v1638 = vpop.f32.mrf.mxu0
        %v1639 = vpop.f32.mrf.mxu0
        %v1640 = vadd.f32 0.0, %v1639
        %v1641 = vpop.f32.mrf.mxu0
        %1642 = vmatprep.mubr.bf16.mxu0 %v762
        %1643 = vmatmul.mubr.bf16.gmra.mxu0 %v564
        %v1644 = vpop.f32.mrf.mxu0
        %v1645 = vadd.f32 0.0, %v1644
        %v1646 = vpop.f32.mrf.mxu0
        %v1647 = vpop.f32.mrf.mxu0
        %v1648 = vadd.f32 0.0, %v1647
        %v1649 = vpop.f32.mrf.mxu0
        %1650 = vdwg.mxu0
        %1651 = vmatprep.subr.bf16.mxu0 0
        %1652 = vmatpush1.bf16.msra.mxu0 %v1369
        %1653 = vmatprep.subr.bf16.mxu0 0
        %1654 = vmatpush1.bf16.msra.mxu0 %v1368
        %1655 = vmatprep.subr.bf16.mxu0 0
        %1656 = vmatpush1.bf16.msra.mxu0 %v1367
        %1657 = vmatprep.subr.bf16.mxu0 0
        %1658 = vmatpush1.bf16.msra.mxu0 %v1366
        %1659 = vmatprep.subr.bf16.mxu0 0
        %1660 = vmatpush1.bf16.msra.mxu0 %v1365
        %1661 = vmatprep.subr.bf16.mxu0 0
        %1662 = vmatpush1.bf16.msra.mxu0 %v1364
        %1663 = vmatprep.subr.bf16.mxu0 0
        %1664 = vmatpush1.bf16.msra.mxu0 %v1363
        %1665 = vmatprep.subr.bf16.mxu0 0
        %1666 = vmatpush1.bf16.msra.mxu0 %v1362
        %1667 = vmatprep.subr.bf16.mxu0 0
        %1668 = vmatpush2.bf16.msra.mxu0 %v1377
        %1669 = vmatprep.subr.bf16.mxu0 0
        %1670 = vmatpush2.bf16.msra.mxu0 %v1376
        %1671 = vmatprep.subr.bf16.mxu0 0
        %1672 = vmatpush2.bf16.msra.mxu0 %v1375
        %1673 = vmatprep.subr.bf16.mxu0 0
        %1674 = vmatpush2.bf16.msra.mxu0 %v1374
        %1675 = vmatprep.subr.bf16.mxu0 0
        %1676 = vmatpush2.bf16.msra.mxu0 %v1373
        %1677 = vmatprep.subr.bf16.mxu0 0
        %1678 = vmatpush2.bf16.msra.mxu0 %v1372
        %1679 = vmatprep.subr.bf16.mxu0 0
        %1680 = vmatpush2.bf16.msra.mxu0 %v1371
        %1681 = vmatprep.subr.bf16.mxu0 0
        %1682 = vmatpush2.bf16.msra.mxu0 %v1370
        %1683 = vmatprep.mubr.bf16.mxu0 %v536
        %1684 = vmatmul.mubr.bf16.gmra.mxu0 %v814
        %v1685 = vpop.f32.mrf.mxu0
        %v1686 = vadd.f32 %v1525, %v1685
        %v1687 = vpop.f32.mrf.mxu0
        %v1688 = vpop.f32.mrf.mxu0
        %v1689 = vadd.f32 %v1528, %v1688
        %v1690 = vpop.f32.mrf.mxu0
        %1691 = vmatprep.mubr.bf16.mxu0 %v538
        %1692 = vmatmul.mubr.bf16.gmra.mxu0 %v817
        %v1693 = vpop.f32.mrf.mxu0
        %v1694 = vadd.f32 %v1533, %v1693
        %v1695 = vpop.f32.mrf.mxu0
        %v1696 = vpop.f32.mrf.mxu0
        %v1697 = vadd.f32 %v1536, %v1696
        %v1698 = vpop.f32.mrf.mxu0
        %1699 = vmatprep.mubr.bf16.mxu0 %v540
        %1700 = vmatmul.mubr.bf16.gmra.mxu0 %v820
        %v1701 = vpop.f32.mrf.mxu0
        %v1702 = vadd.f32 %v1541, %v1701
        %v1703 = vpop.f32.mrf.mxu0
        %v1704 = vpop.f32.mrf.mxu0
        %v1705 = vadd.f32 %v1544, %v1704
        %v1706 = vpop.f32.mrf.mxu0
        %1707 = vmatprep.mubr.bf16.mxu0 %v542
        %1708 = vmatmul.mubr.bf16.gmra.mxu0 %v823
        %v1709 = vpop.f32.mrf.mxu0
        %v1710 = vadd.f32 %v1549, %v1709
        %v1711 = vpop.f32.mrf.mxu0
        %v1712 = vpop.f32.mrf.mxu0
        %v1713 = vadd.f32 %v1552, %v1712
        %v1714 = vpop.f32.mrf.mxu0
        %1715 = vmatprep.mubr.bf16.mxu0 %v544
        %1716 = vmatmul.mubr.bf16.gmra.mxu0 %v826
        %v1717 = vpop.f32.mrf.mxu0
        %v1718 = vadd.f32 %v1557, %v1717
        %v1719 = vpop.f32.mrf.mxu0
        %v1720 = vpop.f32.mrf.mxu0
        %v1721 = vadd.f32 %v1560, %v1720
        %v1722 = vpop.f32.mrf.mxu0
        %1723 = vmatprep.mubr.bf16.mxu0 %v546
        %1724 = vmatmul.mubr.bf16.gmra.mxu0 %v829
        %v1725 = vpop.f32.mrf.mxu0
        %v1726 = vadd.f32 %v1565, %v1725
        %v1727 = vpop.f32.mrf.mxu0
        %v1728 = vpop.f32.mrf.mxu0
        %v1729 = vadd.f32 %v1568, %v1728
        %v1730 = vpop.f32.mrf.mxu0
        %1731 = vmatprep.mubr.bf16.mxu0 %v548
        %1732 = vmatmul.mubr.bf16.gmra.mxu0 %v832
        %v1733 = vpop.f32.mrf.mxu0
        %v1734 = vadd.f32 %v1573, %v1733
        %v1735 = vpop.f32.mrf.mxu0
        %v1736 = vpop.f32.mrf.mxu0
        %v1737 = vadd.f32 %v1576, %v1736
        %v1738 = vpop.f32.mrf.mxu0
        %1739 = vmatprep.mubr.bf16.mxu0 %v550
        %1740 = vmatmul.mubr.bf16.gmra.mxu0 %v835
        %v1741 = vpop.f32.mrf.mxu0
        %v1742 = vadd.f32 %v1581, %v1741
        %v1743 = vpop.f32.mrf.mxu0
        %v1744 = vpop.f32.mrf.mxu0
        %v1745 = vadd.f32 %v1584, %v1744
        %v1746 = vpop.f32.mrf.mxu0
        %1747 = vmatprep.mubr.bf16.mxu0 %v552
        %1748 = vmatmul.mubr.bf16.gmra.mxu0 %v838
        %v1749 = vpop.f32.mrf.mxu0
        %v1750 = vadd.f32 %v1589, %v1749
        %v1751 = vpop.f32.mrf.mxu0
        %v1752 = vpop.f32.mrf.mxu0
        %v1753 = vadd.f32 %v1592, %v1752
        %v1754 = vpop.f32.mrf.mxu0
        %1755 = vmatprep.mubr.bf16.mxu0 %v554
        %1756 = vmatmul.mubr.bf16.gmra.mxu0 %v841
        %v1757 = vpop.f32.mrf.mxu0
        %v1758 = vadd.f32 %v1597, %v1757
        %v1759 = vpop.f32.mrf.mxu0
        %v1760 = vpop.f32.mrf.mxu0
        %v1761 = vadd.f32 %v1600, %v1760
        %v1762 = vpop.f32.mrf.mxu0
        %1763 = vmatprep.mubr.bf16.mxu0 %v556
        %1764 = vmatmul.mubr.bf16.gmra.mxu0 %v844
        %v1765 = vpop.f32.mrf.mxu0
        %v1766 = vadd.f32 %v1605, %v1765
        %v1767 = vpop.f32.mrf.mxu0
        %v1768 = vpop.f32.mrf.mxu0
        %v1769 = vadd.f32 %v1608, %v1768
        %v1770 = vpop.f32.mrf.mxu0
        %1771 = vmatprep.mubr.bf16.mxu0 %v558
        %1772 = vmatmul.mubr.bf16.gmra.mxu0 %v847
        %v1773 = vpop.f32.mrf.mxu0
        %v1774 = vadd.f32 %v1613, %v1773
        %v1775 = vpop.f32.mrf.mxu0
        %v1776 = vpop.f32.mrf.mxu0
        %v1777 = vadd.f32 %v1616, %v1776
        %v1778 = vpop.f32.mrf.mxu0
        %1779 = vmatprep.mubr.bf16.mxu0 %v560
        %1780 = vmatmul.mubr.bf16.gmra.mxu0 %v850
        %v1781 = vpop.f32.mrf.mxu0
        %v1782 = vadd.f32 %v1621, %v1781
        %v1783 = vpop.f32.mrf.mxu0
        %v1784 = vpop.f32.mrf.mxu0
        %v1785 = vadd.f32 %v1624, %v1784
        %v1786 = vpop.f32.mrf.mxu0
        %1787 = vmatprep.mubr.bf16.mxu0 %v562
        %1788 = vmatmul.mubr.bf16.gmra.mxu0 %v853
        %v1789 = vpop.f32.mrf.mxu0
        %v1790 = vadd.f32 %v1629, %v1789
        %v1791 = vpop.f32.mrf.mxu0
        %v1792 = vpop.f32.mrf.mxu0
        %v1793 = vadd.f32 %v1632, %v1792
        %v1794 = vpop.f32.mrf.mxu0
        %1795 = vmatprep.mubr.bf16.mxu0 %v564
        %1796 = vmatmul.mubr.bf16.gmra.mxu0 %v856
        %v1797 = vpop.f32.mrf.mxu0
        %v1798 = vadd.f32 %v1637, %v1797
        %v1799 = vpop.f32.mrf.mxu0
        %v1800 = vpop.f32.mrf.mxu0
        %v1801 = vadd.f32 %v1640, %v1800
        %v1802 = vpop.f32.mrf.mxu0
        %1803 = vmatprep.mubr.bf16.mxu0 %v566
        %1804 = vmatmul.mubr.bf16.gmra.mxu0 %v859
        %v1805 = vpop.f32.mrf.mxu0
        %v1806 = vadd.f32 %v1645, %v1805
        %v1807 = vpop.f32.mrf.mxu0
        %v1808 = vpop.f32.mrf.mxu0
        %v1809 = vadd.f32 %v1648, %v1808
        %v1810 = vpop.f32.mrf.mxu0
        %1811 = vdwg.mxu0
        %1812 = vmatprep.subr.bf16.mxu0 0
        %1813 = vmatpush1.bf16.msra.mxu0 %v1385
        %1814 = vmatprep.subr.bf16.mxu0 0
        %1815 = vmatpush1.bf16.msra.mxu0 %v1384
        %1816 = vmatprep.subr.bf16.mxu0 0
        %1817 = vmatpush1.bf16.msra.mxu0 %v1383
        %1818 = vmatprep.subr.bf16.mxu0 0
        %1819 = vmatpush1.bf16.msra.mxu0 %v1382
        %1820 = vmatprep.subr.bf16.mxu0 0
        %1821 = vmatpush1.bf16.msra.mxu0 %v1381
        %1822 = vmatprep.subr.bf16.mxu0 0
        %1823 = vmatpush1.bf16.msra.mxu0 %v1380
        %1824 = vmatprep.subr.bf16.mxu0 0
        %1825 = vmatpush1.bf16.msra.mxu0 %v1379
        %1826 = vmatprep.subr.bf16.mxu0 0
        %1827 = vmatpush1.bf16.msra.mxu0 %v1378
        %1828 = vmatprep.subr.bf16.mxu0 0
        %1829 = vmatpush2.bf16.msra.mxu0 %v1393
        %1830 = vmatprep.subr.bf16.mxu0 0
        %1831 = vmatpush2.bf16.msra.mxu0 %v1392
        %1832 = vmatprep.subr.bf16.mxu0 0
        %1833 = vmatpush2.bf16.msra.mxu0 %v1391
        %1834 = vmatprep.subr.bf16.mxu0 0
        %1835 = vmatpush2.bf16.msra.mxu0 %v1390
        %1836 = vmatprep.subr.bf16.mxu0 0
        %1837 = vmatpush2.bf16.msra.mxu0 %v1389
        %1838 = vmatprep.subr.bf16.mxu0 0
        %1839 = vmatpush2.bf16.msra.mxu0 %v1388
        %1840 = vmatprep.subr.bf16.mxu0 0
        %1841 = vmatpush2.bf16.msra.mxu0 %v1387
        %1842 = vmatprep.subr.bf16.mxu0 0
        %1843 = vmatpush2.bf16.msra.mxu0 %v1386
        %1844 = vmatprep.mubr.bf16.mxu0 %v817
        %1845 = vmatmul.mubr.bf16.gmra.mxu0 %v594
        %v1846 = vpop.f32.mrf.mxu0
        %v1847 = vadd.f32 %v1686, %v1846
        %v1848 = vpop.f32.mrf.mxu0
        %v1849 = vpop.f32.mrf.mxu0
        %v1850 = vadd.f32 %v1689, %v1849
        %v1851 = vpop.f32.mrf.mxu0
        %1852 = vmatprep.mubr.bf16.mxu0 %v820
        %1853 = vmatmul.mubr.bf16.gmra.mxu0 %v606
        %v1854 = vpop.f32.mrf.mxu0
        %v1855 = vadd.f32 %v1694, %v1854
        %v1856 = vpop.f32.mrf.mxu0
        %v1857 = vpop.f32.mrf.mxu0
        %v1858 = vadd.f32 %v1697, %v1857
        %v1859 = vpop.f32.mrf.mxu0
        %1860 = vmatprep.mubr.bf16.mxu0 %v823
        %1861 = vmatmul.mubr.bf16.gmra.mxu0 %v618
        %v1862 = vpop.f32.mrf.mxu0
        %v1863 = vadd.f32 %v1702, %v1862
        %v1864 = vpop.f32.mrf.mxu0
        %v1865 = vpop.f32.mrf.mxu0
        %v1866 = vadd.f32 %v1705, %v1865
        %v1867 = vpop.f32.mrf.mxu0
        %1868 = vmatprep.mubr.bf16.mxu0 %v826
        %1869 = vmatmul.mubr.bf16.gmra.mxu0 %v630
        %v1870 = vpop.f32.mrf.mxu0
        %v1871 = vadd.f32 %v1710, %v1870
        %v1872 = vpop.f32.mrf.mxu0
        %v1873 = vpop.f32.mrf.mxu0
        %v1874 = vadd.f32 %v1713, %v1873
        %v1875 = vpop.f32.mrf.mxu0
        %1876 = vmatprep.mubr.bf16.mxu0 %v829
        %1877 = vmatmul.mubr.bf16.gmra.mxu0 %v642
        %v1878 = vpop.f32.mrf.mxu0
        %v1879 = vadd.f32 %v1718, %v1878
        %v1880 = vpop.f32.mrf.mxu0
        %v1881 = vpop.f32.mrf.mxu0
        %v1882 = vadd.f32 %v1721, %v1881
        %v1883 = vpop.f32.mrf.mxu0
        %1884 = vmatprep.mubr.bf16.mxu0 %v832
        %1885 = vmatmul.mubr.bf16.gmra.mxu0 %v654
        %v1886 = vpop.f32.mrf.mxu0
        %v1887 = vadd.f32 %v1726, %v1886
        %v1888 = vpop.f32.mrf.mxu0
        %v1889 = vpop.f32.mrf.mxu0
        %v1890 = vadd.f32 %v1729, %v1889
        %v1891 = vpop.f32.mrf.mxu0
        %1892 = vmatprep.mubr.bf16.mxu0 %v835
        %1893 = vmatmul.mubr.bf16.gmra.mxu0 %v666
        %v1894 = vpop.f32.mrf.mxu0
        %v1895 = vadd.f32 %v1734, %v1894
        %v1896 = vpop.f32.mrf.mxu0
        %v1897 = vpop.f32.mrf.mxu0
        %v1898 = vadd.f32 %v1737, %v1897
        %v1899 = vpop.f32.mrf.mxu0
        %1900 = vmatprep.mubr.bf16.mxu0 %v838
        %1901 = vmatmul.mubr.bf16.gmra.mxu0 %v678
        %v1902 = vpop.f32.mrf.mxu0
        %v1903 = vadd.f32 %v1742, %v1902
        %v1904 = vpop.f32.mrf.mxu0
        %v1905 = vpop.f32.mrf.mxu0
        %v1906 = vadd.f32 %v1745, %v1905
        %v1907 = vpop.f32.mrf.mxu0
        %1908 = vmatprep.mubr.bf16.mxu0 %v841
        %1909 = vmatmul.mubr.bf16.gmra.mxu0 %v690
        %v1910 = vpop.f32.mrf.mxu0
        %v1911 = vadd.f32 %v1750, %v1910
        %v1912 = vpop.f32.mrf.mxu0
        %v1913 = vpop.f32.mrf.mxu0
        %v1914 = vadd.f32 %v1753, %v1913
        %v1915 = vpop.f32.mrf.mxu0
        %1916 = vmatprep.mubr.bf16.mxu0 %v844
        %1917 = vmatmul.mubr.bf16.gmra.mxu0 %v702
        %v1918 = vpop.f32.mrf.mxu0
        %v1919 = vadd.f32 %v1758, %v1918
        %v1920 = vpop.f32.mrf.mxu0
        %v1921 = vpop.f32.mrf.mxu0
        %v1922 = vadd.f32 %v1761, %v1921
        %v1923 = vpop.f32.mrf.mxu0
        %1924 = vmatprep.mubr.bf16.mxu0 %v847
        %1925 = vmatmul.mubr.bf16.gmra.mxu0 %v714
        %v1926 = vpop.f32.mrf.mxu0
        %v1927 = vadd.f32 %v1766, %v1926
        %v1928 = vpop.f32.mrf.mxu0
        %v1929 = vpop.f32.mrf.mxu0
        %v1930 = vadd.f32 %v1769, %v1929
        %v1931 = vpop.f32.mrf.mxu0
        %1932 = vmatprep.mubr.bf16.mxu0 %v850
        %1933 = vmatmul.mubr.bf16.gmra.mxu0 %v726
        %v1934 = vpop.f32.mrf.mxu0
        %v1935 = vadd.f32 %v1774, %v1934
        %v1936 = vpop.f32.mrf.mxu0
        %v1937 = vpop.f32.mrf.mxu0
        %v1938 = vadd.f32 %v1777, %v1937
        %v1939 = vpop.f32.mrf.mxu0
        %1940 = vmatprep.mubr.bf16.mxu0 %v853
        %1941 = vmatmul.mubr.bf16.gmra.mxu0 %v738
        %v1942 = vpop.f32.mrf.mxu0
        %v1943 = vadd.f32 %v1782, %v1942
        %v1944 = vpop.f32.mrf.mxu0
        %v1945 = vpop.f32.mrf.mxu0
        %v1946 = vadd.f32 %v1785, %v1945
        %v1947 = vpop.f32.mrf.mxu0
        %1948 = vmatprep.mubr.bf16.mxu0 %v856
        %1949 = vmatmul.mubr.bf16.gmra.mxu0 %v750
        %v1950 = vpop.f32.mrf.mxu0
        %v1951 = vadd.f32 %v1790, %v1950
        %v1952 = vpop.f32.mrf.mxu0
        %v1953 = vpop.f32.mrf.mxu0
        %v1954 = vadd.f32 %v1793, %v1953
        %v1955 = vpop.f32.mrf.mxu0
        %1956 = vmatprep.mubr.bf16.mxu0 %v859
        %1957 = vmatmul.mubr.bf16.gmra.mxu0 %v762
        %v1958 = vpop.f32.mrf.mxu0
        %v1959 = vadd.f32 %v1798, %v1958
        %v1960 = vpop.f32.mrf.mxu0
        %v1961 = vpop.f32.mrf.mxu0
        %v1962 = vadd.f32 %v1801, %v1961
        %v1963 = vpop.f32.mrf.mxu0
        %1964 = vmatprep.mubr.bf16.mxu0 %v893
        %1965 = vmatmul.mubr.bf16.gmra.mxu0 %v887
        %v1966 = vpop.f32.mrf.mxu0
        %v1967 = vadd.f32 %v1806, %v1966
        %v1968 = vpop.f32.mrf.mxu0
        %v1969 = vpop.f32.mrf.mxu0
        %v1970 = vadd.f32 %v1809, %v1969
        %v1971 = vpop.f32.mrf.mxu0
        %1972 = vdwg.mxu0
        %1973 = vmatprep.subr.bf16.mxu0 0
        %1974 = vmatpush1.bf16.msra.mxu0 %v1401
        %1975 = vmatprep.subr.bf16.mxu0 0
        %1976 = vmatpush1.bf16.msra.mxu0 %v1400
        %1977 = vmatprep.subr.bf16.mxu0 0
        %1978 = vmatpush1.bf16.msra.mxu0 %v1399
        %1979 = vmatprep.subr.bf16.mxu0 0
        %1980 = vmatpush1.bf16.msra.mxu0 %v1398
        %1981 = vmatprep.subr.bf16.mxu0 0
        %1982 = vmatpush1.bf16.msra.mxu0 %v1397
        %1983 = vmatprep.subr.bf16.mxu0 0
        %1984 = vmatpush1.bf16.msra.mxu0 %v1396
        %1985 = vmatprep.subr.bf16.mxu0 0
        %1986 = vmatpush1.bf16.msra.mxu0 %v1395
        %1987 = vmatprep.subr.bf16.mxu0 0
        %1988 = vmatpush1.bf16.msra.mxu0 %v1394
        %1989 = vmatprep.subr.bf16.mxu0 0
        %1990 = vmatpush2.bf16.msra.mxu0 %v1409
        %1991 = vmatprep.subr.bf16.mxu0 0
        %1992 = vmatpush2.bf16.msra.mxu0 %v1408
        %1993 = vmatprep.subr.bf16.mxu0 0
        %1994 = vmatpush2.bf16.msra.mxu0 %v1407
        %1995 = vmatprep.subr.bf16.mxu0 0
        %1996 = vmatpush2.bf16.msra.mxu0 %v1406
        %1997 = vmatprep.subr.bf16.mxu0 0
        %1998 = vmatpush2.bf16.msra.mxu0 %v1405
        %1999 = vmatprep.subr.bf16.mxu0 0
        %2000 = vmatpush2.bf16.msra.mxu0 %v1404
        %2001 = vmatprep.subr.bf16.mxu0 0
        %2002 = vmatpush2.bf16.msra.mxu0 %v1403
        %2003 = vmatprep.subr.bf16.mxu0 0
        %2004 = vmatpush2.bf16.msra.mxu0 %v1402
        %2005 = vmatprep.mubr.bf16.mxu0 %v606
        %2006 = vmatmul.mubr.bf16.gmra.mxu0 %v538
        %v2007 = vpop.f32.mrf.mxu0
        %v2008 = vadd.f32 %v1847, %v2007
        %v2009 = vpop.f32.mrf.mxu0
        %v2010 = vpop.f32.mrf.mxu0
        %v2011 = vadd.f32 %v1850, %v2010
        %v2012 = vpop.f32.mrf.mxu0
        %2013 = vmatprep.mubr.bf16.mxu0 %v618
        %2014 = vmatmul.mubr.bf16.gmra.mxu0 %v540
        %v2015 = vpop.f32.mrf.mxu0
        %v2016 = vadd.f32 %v1855, %v2015
        %v2017 = vpop.f32.mrf.mxu0
        %v2018 = vpop.f32.mrf.mxu0
        %v2019 = vadd.f32 %v1858, %v2018
        %v2020 = vpop.f32.mrf.mxu0
        %2021 = vmatprep.mubr.bf16.mxu0 %v630
        %2022 = vmatmul.mubr.bf16.gmra.mxu0 %v542
        %v2023 = vpop.f32.mrf.mxu0
        %v2024 = vadd.f32 %v1863, %v2023
        %v2025 = vpop.f32.mrf.mxu0
        %v2026 = vpop.f32.mrf.mxu0
        %v2027 = vadd.f32 %v1866, %v2026
        %v2028 = vpop.f32.mrf.mxu0
        %2029 = vmatprep.mubr.bf16.mxu0 %v642
        %2030 = vmatmul.mubr.bf16.gmra.mxu0 %v544
        %v2031 = vpop.f32.mrf.mxu0
        %v2032 = vadd.f32 %v1871, %v2031
        %v2033 = vpop.f32.mrf.mxu0
        %v2034 = vpop.f32.mrf.mxu0
        %v2035 = vadd.f32 %v1874, %v2034
        %v2036 = vpop.f32.mrf.mxu0
        %2037 = vmatprep.mubr.bf16.mxu0 %v654
        %2038 = vmatmul.mubr.bf16.gmra.mxu0 %v546
        %v2039 = vpop.f32.mrf.mxu0
        %v2040 = vadd.f32 %v1879, %v2039
        %v2041 = vpop.f32.mrf.mxu0
        %v2042 = vpop.f32.mrf.mxu0
        %v2043 = vadd.f32 %v1882, %v2042
        %v2044 = vpop.f32.mrf.mxu0
        %2045 = vmatprep.mubr.bf16.mxu0 %v666
        %2046 = vmatmul.mubr.bf16.gmra.mxu0 %v548
        %v2047 = vpop.f32.mrf.mxu0
        %v2048 = vadd.f32 %v1887, %v2047
        %v2049 = vpop.f32.mrf.mxu0
        %v2050 = vpop.f32.mrf.mxu0
        %v2051 = vadd.f32 %v1890, %v2050
        %v2052 = vpop.f32.mrf.mxu0
        %2053 = vmatprep.mubr.bf16.mxu0 %v678
        %2054 = vmatmul.mubr.bf16.gmra.mxu0 %v550
        %v2055 = vpop.f32.mrf.mxu0
        %v2056 = vadd.f32 %v1895, %v2055
        %v2057 = vpop.f32.mrf.mxu0
        %v2058 = vpop.f32.mrf.mxu0
        %v2059 = vadd.f32 %v1898, %v2058
        %v2060 = vpop.f32.mrf.mxu0
        %2061 = vmatprep.mubr.bf16.mxu0 %v690
        %2062 = vmatmul.mubr.bf16.gmra.mxu0 %v552
        %v2063 = vpop.f32.mrf.mxu0
        %v2064 = vadd.f32 %v1903, %v2063
        %v2065 = vpop.f32.mrf.mxu0
        %v2066 = vpop.f32.mrf.mxu0
        %v2067 = vadd.f32 %v1906, %v2066
        %v2068 = vpop.f32.mrf.mxu0
        %2069 = vmatprep.mubr.bf16.mxu0 %v702
        %2070 = vmatmul.mubr.bf16.gmra.mxu0 %v554
        %v2071 = vpop.f32.mrf.mxu0
        %v2072 = vadd.f32 %v1911, %v2071
        %v2073 = vpop.f32.mrf.mxu0
        %v2074 = vpop.f32.mrf.mxu0
        %v2075 = vadd.f32 %v1914, %v2074
        %v2076 = vpop.f32.mrf.mxu0
        %2077 = vmatprep.mubr.bf16.mxu0 %v714
        %2078 = vmatmul.mubr.bf16.gmra.mxu0 %v556
        %v2079 = vpop.f32.mrf.mxu0
        %v2080 = vadd.f32 %v1919, %v2079
        %v2081 = vpop.f32.mrf.mxu0
        %v2082 = vpop.f32.mrf.mxu0
        %v2083 = vadd.f32 %v1922, %v2082
        %v2084 = vpop.f32.mrf.mxu0
        %2085 = vmatprep.mubr.bf16.mxu0 %v726
        %2086 = vmatmul.mubr.bf16.gmra.mxu0 %v558
        %v2087 = vpop.f32.mrf.mxu0
        %v2088 = vadd.f32 %v1927, %v2087
        %v2089 = vpop.f32.mrf.mxu0
        %v2090 = vpop.f32.mrf.mxu0
        %v2091 = vadd.f32 %v1930, %v2090
        %v2092 = vpop.f32.mrf.mxu0
        %2093 = vmatprep.mubr.bf16.mxu0 %v738
        %2094 = vmatmul.mubr.bf16.gmra.mxu0 %v560
        %v2095 = vpop.f32.mrf.mxu0
        %v2096 = vadd.f32 %v1935, %v2095
        %v2097 = vpop.f32.mrf.mxu0
        %v2098 = vpop.f32.mrf.mxu0
        %v2099 = vadd.f32 %v1938, %v2098
        %v2100 = vpop.f32.mrf.mxu0
        %2101 = vmatprep.mubr.bf16.mxu0 %v750
        %2102 = vmatmul.mubr.bf16.gmra.mxu0 %v562
        %v2103 = vpop.f32.mrf.mxu0
        %v2104 = vadd.f32 %v1943, %v2103
        %v2105 = vpop.f32.mrf.mxu0
        %v2106 = vpop.f32.mrf.mxu0
        %v2107 = vadd.f32 %v1946, %v2106
        %v2108 = vpop.f32.mrf.mxu0
        %2109 = vmatprep.mubr.bf16.mxu0 %v762
        %2110 = vmatmul.mubr.bf16.gmra.mxu0 %v564
        %v2111 = vpop.f32.mrf.mxu0
        %v2112 = vadd.f32 %v1951, %v2111
        %v2113 = vpop.f32.mrf.mxu0
        %v2114 = vpop.f32.mrf.mxu0
        %v2115 = vadd.f32 %v1954, %v2114
        %v2116 = vpop.f32.mrf.mxu0
        %2117 = vmatprep.mubr.bf16.mxu0 %v887
        %2118 = vmatmul.mubr.bf16.gmra.mxu0 %v566
        %v2119 = vpop.f32.mrf.mxu0
        %v2120 = vadd.f32 %v1959, %v2119
        %v2121 = vpop.f32.mrf.mxu0
        %v2122 = vpop.f32.mrf.mxu0
        %v2123 = vadd.f32 %v1962, %v2122
        %v2124 = vpop.f32.mrf.mxu0
        %2125 = vmatprep.mubr.bf16.mxu0 %v906
        %2126 = vmatmul.mubr.bf16.gmra.mxu0 %v568
        %v2127 = vpop.f32.mrf.mxu0
        %v2128 = vadd.f32 %v1967, %v2127
        %v2129 = vpop.f32.mrf.mxu0
        %v2130 = vpop.f32.mrf.mxu0
        %v2131 = vadd.f32 %v1970, %v2130
        %v2132 = vpop.f32.mrf.mxu0
        %2133 = vdwg.mxu0
        %2134 = vmatprep.subr.bf16.mxu0 0
        %2135 = vmatpush1.bf16.msra.mxu0 %v1417
        %2136 = vmatprep.subr.bf16.mxu0 0
        %2137 = vmatpush1.bf16.msra.mxu0 %v1416
        %2138 = vmatprep.subr.bf16.mxu0 0
        %2139 = vmatpush1.bf16.msra.mxu0 %v1415
        %2140 = vmatprep.subr.bf16.mxu0 0
        %2141 = vmatpush1.bf16.msra.mxu0 %v1414
        %2142 = vmatprep.subr.bf16.mxu0 0
        %2143 = vmatpush1.bf16.msra.mxu0 %v1413
        %2144 = vmatprep.subr.bf16.mxu0 0
        %2145 = vmatpush1.bf16.msra.mxu0 %v1412
        %2146 = vmatprep.subr.bf16.mxu0 0
        %2147 = vmatpush1.bf16.msra.mxu0 %v1411
        %2148 = vmatprep.subr.bf16.mxu0 0
        %2149 = vmatpush1.bf16.msra.mxu0 %v1410
        %2150 = vmatprep.subr.bf16.mxu0 0
        %2151 = vmatpush2.bf16.msra.mxu0 0
        %2152 = vmatprep.subr.bf16.mxu0 0
        %2153 = vmatpush2.bf16.msra.mxu0 0
        %2154 = vmatprep.subr.bf16.mxu0 0
        %2155 = vmatpush2.bf16.msra.mxu0 0
        %2156 = vmatprep.subr.bf16.mxu0 0
        %2157 = vmatpush2.bf16.msra.mxu0 0
        %2158 = vmatprep.subr.bf16.mxu0 0
        %2159 = vmatpush2.bf16.msra.mxu0 0
        %2160 = vmatprep.subr.bf16.mxu0 0
        %2161 = vmatpush2.bf16.msra.mxu0 0
        %2162 = vmatprep.subr.bf16.mxu0 0
        %2163 = vmatpush2.bf16.msra.mxu0 0
        %2164 = vmatprep.subr.bf16.mxu0 0
        %2165 = vmatpush2.bf16.msra.mxu0 0
        %2166 = vmatprep.mubr.bf16.mxu0 0
        %2167 = vmatmul.mubr.bf16.gmra.mxu0 %v820
        %v2168 = vpop.f32.mrf.mxu0
        %v2169 = vadd.f32 %v2008, %v2168
        %v2170 = vpop.f32.mrf.mxu0
        %v2171 = vpop.f32.mrf.mxu0
        %v2172 = vadd.f32 %v2011, %v2171
        %v2173 = vpop.f32.mrf.mxu0
        %2174 = vmatprep.mubr.bf16.mxu0 0
        %2175 = vmatmul.mubr.bf16.gmra.mxu0 %v823
        %v2176 = vpop.f32.mrf.mxu0
        %v2177 = vadd.f32 %v2016, %v2176
        %v2178 = vpop.f32.mrf.mxu0
        %v2179 = vpop.f32.mrf.mxu0
        %v2180 = vadd.f32 %v2019, %v2179
        %v2181 = vpop.f32.mrf.mxu0
        %2182 = vmatprep.mubr.bf16.mxu0 0
        %2183 = vmatmul.mubr.bf16.gmra.mxu0 %v826
        %v2184 = vpop.f32.mrf.mxu0
        %v2185 = vadd.f32 %v2024, %v2184
        %v2186 = vpop.f32.mrf.mxu0
        %v2187 = vpop.f32.mrf.mxu0
        %v2188 = vadd.f32 %v2027, %v2187
        %v2189 = vpop.f32.mrf.mxu0
        %2190 = vmatprep.mubr.bf16.mxu0 0
        %2191 = vmatmul.mubr.bf16.gmra.mxu0 %v829
        %v2192 = vpop.f32.mrf.mxu0
        %v2193 = vadd.f32 %v2032, %v2192
        %v2194 = vpop.f32.mrf.mxu0
        %v2195 = vpop.f32.mrf.mxu0
        %v2196 = vadd.f32 %v2035, %v2195
        %v2197 = vpop.f32.mrf.mxu0
        %2198 = vmatprep.mubr.bf16.mxu0 0
        %2199 = vmatmul.mubr.bf16.gmra.mxu0 %v832
        %v2200 = vpop.f32.mrf.mxu0
        %v2201 = vadd.f32 %v2040, %v2200
        %v2202 = vpop.f32.mrf.mxu0
        %v2203 = vpop.f32.mrf.mxu0
        %v2204 = vadd.f32 %v2043, %v2203
        %v2205 = vpop.f32.mrf.mxu0
        %2206 = vmatprep.mubr.bf16.mxu0 0
        %2207 = vmatmul.mubr.bf16.gmra.mxu0 %v835
        %v2208 = vpop.f32.mrf.mxu0
        %v2209 = vadd.f32 %v2048, %v2208
        %v2210 = vpop.f32.mrf.mxu0
        %v2211 = vpop.f32.mrf.mxu0
        %v2212 = vadd.f32 %v2051, %v2211
        %v2213 = vpop.f32.mrf.mxu0
        %2214 = vmatprep.mubr.bf16.mxu0 0
        %2215 = vmatmul.mubr.bf16.gmra.mxu0 %v838
        %v2216 = vpop.f32.mrf.mxu0
        %v2217 = vadd.f32 %v2056, %v2216
        %v2218 = vpop.f32.mrf.mxu0
        %v2219 = vpop.f32.mrf.mxu0
        %v2220 = vadd.f32 %v2059, %v2219
        %v2221 = vpop.f32.mrf.mxu0
        %2222 = vmatprep.mubr.bf16.mxu0 0
        %2223 = vmatmul.mubr.bf16.gmra.mxu0 %v841
        %v2224 = vpop.f32.mrf.mxu0
        %v2225 = vadd.f32 %v2064, %v2224
        %v2226 = vpop.f32.mrf.mxu0
        %v2227 = vpop.f32.mrf.mxu0
        %v2228 = vadd.f32 %v2067, %v2227
        %v2229 = vpop.f32.mrf.mxu0
        %2230 = vmatprep.mubr.bf16.mxu0 0
        %2231 = vmatmul.mubr.bf16.gmra.mxu0 %v844
        %v2232 = vpop.f32.mrf.mxu0
        %v2233 = vadd.f32 %v2072, %v2232
        %v2234 = vpop.f32.mrf.mxu0
        %v2235 = vpop.f32.mrf.mxu0
        %v2236 = vadd.f32 %v2075, %v2235
        %v2237 = vpop.f32.mrf.mxu0
        %2238 = vmatprep.mubr.bf16.mxu0 0
        %2239 = vmatmul.mubr.bf16.gmra.mxu0 %v847
        %v2240 = vpop.f32.mrf.mxu0
        %v2241 = vadd.f32 %v2080, %v2240
        %v2242 = vpop.f32.mrf.mxu0
        %v2243 = vpop.f32.mrf.mxu0
        %v2244 = vadd.f32 %v2083, %v2243
        %v2245 = vpop.f32.mrf.mxu0
        %2246 = vmatprep.mubr.bf16.mxu0 0
        %2247 = vmatmul.mubr.bf16.gmra.mxu0 %v850
        %v2248 = vpop.f32.mrf.mxu0
        %v2249 = vadd.f32 %v2088, %v2248
        %v2250 = vpop.f32.mrf.mxu0
        %v2251 = vpop.f32.mrf.mxu0
        %v2252 = vadd.f32 %v2091, %v2251
        %v2253 = vpop.f32.mrf.mxu0
        %2254 = vmatprep.mubr.bf16.mxu0 0
        %2255 = vmatmul.mubr.bf16.gmra.mxu0 %v853
        %v2256 = vpop.f32.mrf.mxu0
        %v2257 = vadd.f32 %v2096, %v2256
        %v2258 = vpop.f32.mrf.mxu0
        %v2259 = vpop.f32.mrf.mxu0
        %v2260 = vadd.f32 %v2099, %v2259
        %v2261 = vpop.f32.mrf.mxu0
        %2262 = vmatprep.mubr.bf16.mxu0 0
        %2263 = vmatmul.mubr.bf16.gmra.mxu0 %v856
        %v2264 = vpop.f32.mrf.mxu0
        %v2265 = vadd.f32 %v2104, %v2264
        %v2266 = vpop.f32.mrf.mxu0
        %v2267 = vpop.f32.mrf.mxu0
        %v2268 = vadd.f32 %v2107, %v2267
        %v2269 = vpop.f32.mrf.mxu0
        %2270 = vmatprep.mubr.bf16.mxu0 0
        %2271 = vmatmul.mubr.bf16.gmra.mxu0 %v859
        %v2272 = vpop.f32.mrf.mxu0
        %v2273 = vadd.f32 %v2112, %v2272
        %v2274 = vpop.f32.mrf.mxu0
        %v2275 = vpop.f32.mrf.mxu0
        %v2276 = vadd.f32 %v2115, %v2275
        %v2277 = vpop.f32.mrf.mxu0
        %2278 = vmatprep.mubr.bf16.mxu0 0
        %2279 = vmatmul.mubr.bf16.gmra.mxu0 %v893
        %v2280 = vpop.f32.mrf.mxu0
        %v2281 = vadd.f32 %v2120, %v2280
        %v2282 = vpop.f32.mrf.mxu0
        %v2283 = vpop.f32.mrf.mxu0
        %v2284 = vadd.f32 %v2123, %v2283
        %v2285 = vpop.f32.mrf.mxu0
        %2286 = vmatprep.mubr.bf16.mxu0 0
        %2287 = vmatmul.mubr.bf16.gmra.mxu0 %v912
        %v2288 = vpop.f32.mrf.mxu0
        %v2289 = vadd.f32 %v2128, %v2288
        %v2290 = vpop.f32.mrf.mxu0
        %v2291 = vpop.f32.mrf.mxu0
        %v2292 = vadd.f32 %v2131, %v2291
        %v2293 = vpop.f32.mrf.mxu0
        %2294 = vdwg.mxu0
        %v2296 = vlaneseq
        %v2297 = vshrl.u32 %v2296, 7
        %v2298 = vsub.s32 0, %v2297
        %v2299 = vrot.slane %v413, %v2298
        %v2301 = vmul.f32 %v2169, %v2299
        %v2302 = vmul.f32 %v2172, %v2299
        %v2303 = vmul.f32 %v2177, %v2299
        %v2304 = vmul.f32 %v2180, %v2299
        %v2305 = vmul.f32 %v2185, %v2299
        %v2306 = vmul.f32 %v2188, %v2299
        %v2307 = vmul.f32 %v2193, %v2299
        %v2308 = vmul.f32 %v2196, %v2299
        %v2309 = vmul.f32 %v2201, %v2299
        %v2310 = vmul.f32 %v2204, %v2299
        %v2311 = vmul.f32 %v2209, %v2299
        %v2312 = vmul.f32 %v2212, %v2299
        %v2313 = vmul.f32 %v2217, %v2299
        %v2314 = vmul.f32 %v2220, %v2299
        %v2315 = vmul.f32 %v2225, %v2299
        %v2316 = vmul.f32 %v2228, %v2299
        %v2317 = vmul.f32 %v2233, %v2299
        %v2318 = vmul.f32 %v2236, %v2299
        %v2319 = vmul.f32 %v2241, %v2299
        %v2320 = vmul.f32 %v2244, %v2299
        %v2321 = vmul.f32 %v2249, %v2299
        %v2322 = vmul.f32 %v2252, %v2299
        %v2323 = vmul.f32 %v2257, %v2299
        %v2324 = vmul.f32 %v2260, %v2299
        %v2325 = vmul.f32 %v2265, %v2299
        %v2326 = vmul.f32 %v2268, %v2299
        %v2327 = vmul.f32 %v2273, %v2299
        %v2328 = vmul.f32 %v2276, %v2299
        %v2329 = vmul.f32 %v2281, %v2299
        %v2330 = vmul.f32 %v2284, %v2299
        %v2331 = vmul.f32 %v2289, %v2299
        %v2332 = vmul.f32 %v2292, %v2299
        %v2334 = vlaneseq
        %v2335 = vshrl.u32 %v2334, 7
        %v2336 = vsub.s32 0, %v2335
        %v2337 = vrot.slane %v414, %v2336
        %v2339 = vadd.f32 %v2301, %v2337
        %v2340 = vadd.f32 %v2302, %v2337
        %v2341 = vadd.f32 %v2303, %v2337
        %v2342 = vadd.f32 %v2304, %v2337
        %v2343 = vadd.f32 %v2305, %v2337
        %v2344 = vadd.f32 %v2306, %v2337
        %v2345 = vadd.f32 %v2307, %v2337
        %v2346 = vadd.f32 %v2308, %v2337
        %v2347 = vadd.f32 %v2309, %v2337
        %v2348 = vadd.f32 %v2310, %v2337
        %v2349 = vadd.f32 %v2311, %v2337
        %v2350 = vadd.f32 %v2312, %v2337
        %v2351 = vadd.f32 %v2313, %v2337
        %v2352 = vadd.f32 %v2314, %v2337
        %v2353 = vadd.f32 %v2315, %v2337
        %v2354 = vadd.f32 %v2316, %v2337
        %v2355 = vadd.f32 %v2317, %v2337
        %v2356 = vadd.f32 %v2318, %v2337
        %v2357 = vadd.f32 %v2319, %v2337
        %v2358 = vadd.f32 %v2320, %v2337
        %v2359 = vadd.f32 %v2321, %v2337
        %v2360 = vadd.f32 %v2322, %v2337
        %v2361 = vadd.f32 %v2323, %v2337
        %v2362 = vadd.f32 %v2324, %v2337
        %v2363 = vadd.f32 %v2325, %v2337
        %v2364 = vadd.f32 %v2326, %v2337
        %v2365 = vadd.f32 %v2327, %v2337
        %v2366 = vadd.f32 %v2328, %v2337
        %v2367 = vadd.f32 %v2329, %v2337
        %v2368 = vadd.f32 %v2330, %v2337
        %v2369 = vadd.f32 %v2331, %v2337
        %v2370 = vadd.f32 %v2332, %v2337
        %v2371 = vld [vmem:[%s5] sm:$0x1]
        %v2372 = vld [vmem:[%s6] sm:$0x1]
        %v2373 = vmax.f32 %v2339, 0.0
        %v2374 = vmax.f32 %v2340, 0.0
        %v2375 = vmax.f32 %v2341, 0.0
        %v2376 = vmax.f32 %v2342, 0.0
        %v2377 = vmax.f32 %v2343, 0.0
        %v2378 = vmax.f32 %v2344, 0.0
        %v2379 = vmax.f32 %v2345, 0.0
        %v2380 = vmax.f32 %v2346, 0.0
        %v2381 = vmax.f32 %v2347, 0.0
        %v2382 = vmax.f32 %v2348, 0.0
        %v2383 = vmax.f32 %v2349, 0.0
        %v2384 = vmax.f32 %v2350, 0.0
        %v2385 = vmax.f32 %v2351, 0.0
        %v2386 = vmax.f32 %v2352, 0.0
        %v2387 = vmax.f32 %v2353, 0.0
        %v2388 = vmax.f32 %v2354, 0.0
        %v2389 = vmax.f32 %v2355, 0.0
        %v2390 = vmax.f32 %v2356, 0.0
        %v2391 = vmax.f32 %v2357, 0.0
        %v2392 = vmax.f32 %v2358, 0.0
        %v2393 = vmax.f32 %v2359, 0.0
        %v2394 = vmax.f32 %v2360, 0.0
        %v2395 = vmax.f32 %v2361, 0.0
        %v2396 = vmax.f32 %v2362, 0.0
        %v2397 = vmax.f32 %v2363, 0.0
        %v2398 = vmax.f32 %v2364, 0.0
        %v2399 = vmax.f32 %v2365, 0.0
        %v2400 = vmax.f32 %v2366, 0.0
        %v2401 = vmax.f32 %v2367, 0.0
        %v2402 = vmax.f32 %v2368, 0.0
        %v2403 = vmax.f32 %v2369, 0.0
        %v2404 = vmax.f32 %v2370, 0.0
        %2405 = vst [vmem:[%s447 + $0x1] sm:$0xff] %v2373
        %2406 = vst [vmem:[%s447 + $0x9] sm:$0xff] %v2374
        %2407 = vst [vmem:[%s447 + $0x19] sm:$0xff] %v2375
        %2408 = vst [vmem:[%s447 + $0x21] sm:$0xff] %v2376
        %2409 = vst [vmem:[%s447 + $0x31] sm:$0xff] %v2377
        %2410 = vst [vmem:[%s447 + $0x39] sm:$0xff] %v2378
        %2411 = vst [vmem:[%s447 + $0x49] sm:$0xff] %v2379
        %2412 = vst [vmem:[%s447 + $0x51] sm:$0xff] %v2380
        %2413 = vst [vmem:[%s447 + $0x61] sm:$0xff] %v2381
        %2414 = vst [vmem:[%s447 + $0x69] sm:$0xff] %v2382
        %2415 = vst [vmem:[%s447 + $0x79] sm:$0xff] %v2383
        %2416 = vst [vmem:[%s447 + $0x81] sm:$0xff] %v2384
        %2417 = vst [vmem:[%s447 + $0x91] sm:$0xff] %v2385
        %2418 = vst [vmem:[%s447 + $0x99] sm:$0xff] %v2386
        %2419 = vst [vmem:[%s447 + $0xa9] sm:$0xff] %v2387
        %2420 = vst [vmem:[%s447 + $0xb1] sm:$0xff] %v2388
        %2421 = vst [vmem:[%s447 + $0xc1] sm:$0xff] %v2389
        %2422 = vst [vmem:[%s447 + $0xc9] sm:$0xff] %v2390
        %2423 = vst [vmem:[%s447 + $0xd9] sm:$0xff] %v2391
        %2424 = vst [vmem:[%s447 + $0xe1] sm:$0xff] %v2392
        %2425 = vst [vmem:[%s447 + $0xf1] sm:$0xff] %v2393
        %2426 = vst [vmem:[%s447 + $0xf9] sm:$0xff] %v2394
        %2427 = vst [vmem:[%s447 + $0x109] sm:$0xff] %v2395
        %2428 = vst [vmem:[%s447 + $0x111] sm:$0xff] %v2396
        %2429 = vst [vmem:[%s447 + $0x121] sm:$0xff] %v2397
        %2430 = vst [vmem:[%s447 + $0x129] sm:$0xff] %v2398
        %2431 = vst [vmem:[%s447 + $0x139] sm:$0xff] %v2399
        %2432 = vst [vmem:[%s447 + $0x141] sm:$0xff] %v2400
        %2433 = vst [vmem:[%s447 + $0x151] sm:$0xff] %v2401
        %2434 = vst [vmem:[%s447 + $0x159] sm:$0xff] %v2402
        %2435 = vst [vmem:[%s447 + $0x169] sm:$0xff] %v2403
        %2436 = vst [vmem:[%s447 + $0x171] sm:$0xff] %v2404
        %v2437 = vld [vmem:[#allocation2] sm:$0xff]
        %v2438 = vld [vmem:[#allocation2 + $0x8] sm:$0xff]
        %v2439 = vld [vmem:[#allocation2 + $0x10] sm:$0x3]
        %v2440 = vld [vmem:[#allocation2 + $0x18] sm:$0xff]
        %v2441 = vld [vmem:[#allocation2 + $0x20] sm:$0xff]
        %v2442 = vld [vmem:[#allocation2 + $0x28] sm:$0x3]
        %v2443 = vld [vmem:[#allocation2 + $0x30] sm:$0xff]
        %v2444 = vld [vmem:[#allocation2 + $0x38] sm:$0xff]
        %v2445 = vld [vmem:[#allocation2 + $0x40] sm:$0x3]
        %v2446 = vld [vmem:[#allocation2 + $0x48] sm:$0xff]
        %v2447 = vld [vmem:[#allocation2 + $0x50] sm:$0xff]
        %v2448 = vld [vmem:[#allocation2 + $0x58] sm:$0x3]
        %v2449 = vld [vmem:[#allocation2 + $0x60] sm:$0xff]
        %v2450 = vld [vmem:[#allocation2 + $0x68] sm:$0xff]
        %v2451 = vld [vmem:[#allocation2 + $0x70] sm:$0x3]
        %v2452 = vld [vmem:[#allocation2 + $0x78] sm:$0xff]
        %v2453 = vld [vmem:[#allocation2 + $0x80] sm:$0xff]
        %v2454 = vld [vmem:[#allocation2 + $0x88] sm:$0x3]
        %v2455 = vld [vmem:[#allocation2 + $0x90] sm:$0xff]
        %v2456 = vld [vmem:[#allocation2 + $0x98] sm:$0xff]
        %v2457 = vld [vmem:[#allocation2 + $0xa0] sm:$0x3]
        %v2458 = vld [vmem:[#allocation2 + $0xa8] sm:$0xff]
        %v2459 = vld [vmem:[#allocation2 + $0xb0] sm:$0xff]
        %v2460 = vld [vmem:[#allocation2 + $0xb8] sm:$0x3]
        %v2461 = vld [vmem:[#allocation2 + $0xc0] sm:$0xff]
        %v2462 = vld [vmem:[#allocation2 + $0xc8] sm:$0xff]
        %v2463 = vld [vmem:[#allocation2 + $0xd0] sm:$0x3]
        %v2464 = vld [vmem:[#allocation2 + $0xd8] sm:$0xff]
        %v2465 = vld [vmem:[#allocation2 + $0xe0] sm:$0xff]
        %v2466 = vld [vmem:[#allocation2 + $0xe8] sm:$0x3]
        %v2467 = vld [vmem:[#allocation2 + $0xf0] sm:$0xff]
        %v2468 = vld [vmem:[#allocation2 + $0xf8] sm:$0xff]
        %v2469 = vld [vmem:[#allocation2 + $0x100] sm:$0x3]
        %v2470 = vld [vmem:[#allocation2 + $0x108] sm:$0xff]
        %v2471 = vld [vmem:[#allocation2 + $0x110] sm:$0xff]
        %v2472 = vld [vmem:[#allocation2 + $0x118] sm:$0x3]
        %v2473 = vld [vmem:[#allocation2 + $0x120] sm:$0xff]
        %v2474 = vld [vmem:[#allocation2 + $0x128] sm:$0xff]
        %v2475 = vld [vmem:[#allocation2 + $0x130] sm:$0x3]
        %v2476 = vld [vmem:[#allocation2 + $0x138] sm:$0xff]
        %v2477 = vld [vmem:[#allocation2 + $0x140] sm:$0xff]
        %v2478 = vld [vmem:[#allocation2 + $0x148] sm:$0x3]
        %v2479 = vld [vmem:[#allocation2 + $0x150] sm:$0xff]
        %v2480 = vld [vmem:[#allocation2 + $0x158] sm:$0xff]
        %v2481 = vld [vmem:[#allocation2 + $0x160] sm:$0x3]
        %v2482 = vld [vmem:[#allocation2 + $0x168] sm:$0xff]
        %v2483 = vld [vmem:[#allocation2 + $0x170] sm:$0xff]
        %v2484 = vld [vmem:[#allocation2 + $0x178] sm:$0x3]
        %v2485 = vld [vmem:[#allocation2 + $0x180] sm:$0xff]
        %v2486 = vld [vmem:[#allocation2 + $0x188] sm:$0xff]
        %v2487 = vld [vmem:[#allocation2 + $0x190] sm:$0x3]
        %v2488 = vld [vmem:[#allocation2 + $0x198] sm:$0xff]
        %v2489 = vld [vmem:[#allocation2 + $0x1a0] sm:$0xff]
        %v2490 = vld [vmem:[#allocation2 + $0x1a8] sm:$0x3]
        %v2491 = vpack.c.bf16 %v2438, %v2437
        %v2492 = vpack.c.bf16 %v2439, %v2439
        %v2493 = vpack.c.bf16 %v2441, %v2440
        %v2494 = vpack.c.bf16 %v2442, %v2442
        %v2495 = vpack.c.bf16 %v2444, %v2443
        %v2496 = vpack.c.bf16 %v2445, %v2445
        %v2497 = vpack.c.bf16 %v2447, %v2446
        %v2498 = vpack.c.bf16 %v2448, %v2448
        %v2499 = vpack.c.bf16 %v2450, %v2449
        %v2500 = vpack.c.bf16 %v2451, %v2451
        %v2501 = vpack.c.bf16 %v2453, %v2452
        %v2502 = vpack.c.bf16 %v2454, %v2454
        %v2503 = vpack.c.bf16 %v2456, %v2455
        %v2504 = vpack.c.bf16 %v2457, %v2457
        %v2505 = vpack.c.bf16 %v2459, %v2458
        %v2506 = vpack.c.bf16 %v2460, %v2460
        %v2507 = vpack.c.bf16 %v2462, %v2461
        %v2508 = vpack.c.bf16 %v2463, %v2463
        %v2509 = vpack.c.bf16 %v2465, %v2464
        %v2510 = vpack.c.bf16 %v2466, %v2466
        %v2511 = vpack.c.bf16 %v2468, %v2467
        %v2512 = vpack.c.bf16 %v2469, %v2469
        %v2513 = vpack.c.bf16 %v2471, %v2470
        %v2514 = vpack.c.bf16 %v2472, %v2472
        %v2515 = vpack.c.bf16 %v2474, %v2473
        %v2516 = vpack.c.bf16 %v2475, %v2475
        %v2517 = vpack.c.bf16 %v2477, %v2476
        %v2518 = vpack.c.bf16 %v2478, %v2478
        %v2519 = vpack.c.bf16 %v2480, %v2479
        %v2520 = vpack.c.bf16 %v2481, %v2481
        %v2521 = vpack.c.bf16 %v2483, %v2482
        %v2522 = vpack.c.bf16 %v2484, %v2484
        %v2523 = vpack.c.bf16 %v2486, %v2485
        %v2524 = vpack.c.bf16 %v2487, %v2487
        %v2525 = vpack.c.bf16 %v2489, %v2488
        %v2526 = vpack.c.bf16 %v2490, %v2490
        %v2528 = vshrl.u32 %v2491, 16
        %v2530 = vshll.u32 %v2491, 16
        %v2532 = vrot.slane %v2530, 1
        %v2533 = vor.u32 %v2528, %v2532
        %v2535 = vshll.u32 %v2492, 16
        %v2537 = vrot.slane %v2535, 1
        %v2538 = vsel %vm570, %v2533, %v2537
        %v2540 = vshrl.u32 %v2493, 16
        %v2542 = vshll.u32 %v2493, 16
        %v2544 = vrot.slane %v2542, 1
        %v2545 = vor.u32 %v2540, %v2544
        %v2547 = vshll.u32 %v2494, 16
        %v2549 = vrot.slane %v2547, 1
        %v2550 = vsel %vm570, %v2545, %v2549
        %v2552 = vshrl.u32 %v2495, 16
        %v2554 = vshll.u32 %v2495, 16
        %v2556 = vrot.slane %v2554, 1
        %v2557 = vor.u32 %v2552, %v2556
        %v2559 = vshll.u32 %v2496, 16
        %v2561 = vrot.slane %v2559, 1
        %v2562 = vsel %vm570, %v2557, %v2561
        %v2564 = vshrl.u32 %v2497, 16
        %v2566 = vshll.u32 %v2497, 16
        %v2568 = vrot.slane %v2566, 1
        %v2569 = vor.u32 %v2564, %v2568
        %v2571 = vshll.u32 %v2498, 16
        %v2573 = vrot.slane %v2571, 1
        %v2574 = vsel %vm570, %v2569, %v2573
        %v2576 = vshrl.u32 %v2499, 16
        %v2578 = vshll.u32 %v2499, 16
        %v2580 = vrot.slane %v2578, 1
        %v2581 = vor.u32 %v2576, %v2580
        %v2583 = vshll.u32 %v2500, 16
        %v2585 = vrot.slane %v2583, 1
        %v2586 = vsel %vm570, %v2581, %v2585
        %v2588 = vshrl.u32 %v2501, 16
        %v2590 = vshll.u32 %v2501, 16
        %v2592 = vrot.slane %v2590, 1
        %v2593 = vor.u32 %v2588, %v2592
        %v2595 = vshll.u32 %v2502, 16
        %v2597 = vrot.slane %v2595, 1
        %v2598 = vsel %vm570, %v2593, %v2597
        %v2600 = vshrl.u32 %v2503, 16
        %v2602 = vshll.u32 %v2503, 16
        %v2604 = vrot.slane %v2602, 1
        %v2605 = vor.u32 %v2600, %v2604
        %v2607 = vshll.u32 %v2504, 16
        %v2609 = vrot.slane %v2607, 1
        %v2610 = vsel %vm570, %v2605, %v2609
        %v2612 = vshrl.u32 %v2505, 16
        %v2614 = vshll.u32 %v2505, 16
        %v2616 = vrot.slane %v2614, 1
        %v2617 = vor.u32 %v2612, %v2616
        %v2619 = vshll.u32 %v2506, 16
        %v2621 = vrot.slane %v2619, 1
        %v2622 = vsel %vm570, %v2617, %v2621
        %v2624 = vshrl.u32 %v2507, 16
        %v2626 = vshll.u32 %v2507, 16
        %v2628 = vrot.slane %v2626, 1
        %v2629 = vor.u32 %v2624, %v2628
        %v2631 = vshll.u32 %v2508, 16
        %v2633 = vrot.slane %v2631, 1
        %v2634 = vsel %vm570, %v2629, %v2633
        %v2636 = vshrl.u32 %v2509, 16
        %v2638 = vshll.u32 %v2509, 16
        %v2640 = vrot.slane %v2638, 1
        %v2641 = vor.u32 %v2636, %v2640
        %v2643 = vshll.u32 %v2510, 16
        %v2645 = vrot.slane %v2643, 1
        %v2646 = vsel %vm570, %v2641, %v2645
        %v2648 = vshrl.u32 %v2511, 16
        %v2650 = vshll.u32 %v2511, 16
        %v2652 = vrot.slane %v2650, 1
        %v2653 = vor.u32 %v2648, %v2652
        %v2655 = vshll.u32 %v2512, 16
        %v2657 = vrot.slane %v2655, 1
        %v2658 = vsel %vm570, %v2653, %v2657
        %v2660 = vshrl.u32 %v2513, 16
        %v2662 = vshll.u32 %v2513, 16
        %v2664 = vrot.slane %v2662, 1
        %v2665 = vor.u32 %v2660, %v2664
        %v2667 = vshll.u32 %v2514, 16
        %v2669 = vrot.slane %v2667, 1
        %v2670 = vsel %vm570, %v2665, %v2669
        %v2672 = vshrl.u32 %v2515, 16
        %v2674 = vshll.u32 %v2515, 16
        %v2676 = vrot.slane %v2674, 1
        %v2677 = vor.u32 %v2672, %v2676
        %v2679 = vshll.u32 %v2516, 16
        %v2681 = vrot.slane %v2679, 1
        %v2682 = vsel %vm570, %v2677, %v2681
        %v2684 = vshrl.u32 %v2517, 16
        %v2686 = vshll.u32 %v2517, 16
        %v2688 = vrot.slane %v2686, 1
        %v2689 = vor.u32 %v2684, %v2688
        %v2691 = vshll.u32 %v2518, 16
        %v2693 = vrot.slane %v2691, 1
        %v2694 = vsel %vm570, %v2689, %v2693
        %v2696 = vshrl.u32 %v2519, 16
        %v2698 = vshll.u32 %v2519, 16
        %v2700 = vrot.slane %v2698, 1
        %v2701 = vor.u32 %v2696, %v2700
        %v2703 = vshll.u32 %v2520, 16
        %v2705 = vrot.slane %v2703, 1
        %v2706 = vsel %vm570, %v2701, %v2705
        %v2708 = vshrl.u32 %v2521, 16
        %v2710 = vshll.u32 %v2521, 16
        %v2712 = vrot.slane %v2710, 1
        %v2713 = vor.u32 %v2708, %v2712
        %v2715 = vshll.u32 %v2522, 16
        %v2717 = vrot.slane %v2715, 1
        %v2718 = vsel %vm570, %v2713, %v2717
        %v2767 = vrot.slane %v2491, 1
        %v2768 = vrot.slane %v2492, 1
        %v2769 = vsel %vm811, %v2767, %v2768
        %v2770 = vrot.slane %v2493, 1
        %v2771 = vrot.slane %v2494, 1
        %v2772 = vsel %vm811, %v2770, %v2771
        %v2773 = vrot.slane %v2495, 1
        %v2774 = vrot.slane %v2496, 1
        %v2775 = vsel %vm811, %v2773, %v2774
        %v2776 = vrot.slane %v2497, 1
        %v2777 = vrot.slane %v2498, 1
        %v2778 = vsel %vm811, %v2776, %v2777
        %v2779 = vrot.slane %v2499, 1
        %v2780 = vrot.slane %v2500, 1
        %v2781 = vsel %vm811, %v2779, %v2780
        %v2782 = vrot.slane %v2501, 1
        %v2783 = vrot.slane %v2502, 1
        %v2784 = vsel %vm811, %v2782, %v2783
        %v2785 = vrot.slane %v2503, 1
        %v2786 = vrot.slane %v2504, 1
        %v2787 = vsel %vm811, %v2785, %v2786
        %v2788 = vrot.slane %v2505, 1
        %v2789 = vrot.slane %v2506, 1
        %v2790 = vsel %vm811, %v2788, %v2789
        %v2791 = vrot.slane %v2507, 1
        %v2792 = vrot.slane %v2508, 1
        %v2793 = vsel %vm811, %v2791, %v2792
        %v2794 = vrot.slane %v2509, 1
        %v2795 = vrot.slane %v2510, 1
        %v2796 = vsel %vm811, %v2794, %v2795
        %v2797 = vrot.slane %v2511, 1
        %v2798 = vrot.slane %v2512, 1
        %v2799 = vsel %vm811, %v2797, %v2798
        %v2800 = vrot.slane %v2513, 1
        %v2801 = vrot.slane %v2514, 1
        %v2802 = vsel %vm811, %v2800, %v2801
        %v2803 = vrot.slane %v2515, 1
        %v2804 = vrot.slane %v2516, 1
        %v2805 = vsel %vm811, %v2803, %v2804
        %v2806 = vrot.slane %v2517, 1
        %v2807 = vrot.slane %v2518, 1
        %v2808 = vsel %vm811, %v2806, %v2807
        %v2809 = vrot.slane %v2519, 1
        %v2810 = vrot.slane %v2520, 1
        %v2811 = vsel %vm811, %v2809, %v2810
        %v2812 = vrot.slane %v2521, 1
        %v2813 = vrot.slane %v2522, 1
        %v2814 = vsel %vm811, %v2812, %v2813
        %v2832 = vshrl.u32 %v2523, 16
        %v2834 = vshll.u32 %v2523, 16
        %v2836 = vrot.slane %v2834, 1
        %v2837 = vor.u32 %v2832, %v2836
        %v2839 = vshll.u32 %v2524, 16
        %v2841 = vrot.slane %v2839, 1
        %v2842 = vsel %vm570, %v2837, %v2841
        %v2846 = vrot.slane %v2523, 1
        %v2847 = vrot.slane %v2524, 1
        %v2848 = vsel %vm811, %v2846, %v2847
        %v2851 = vshrl.u32 %v2525, 16
        %v2853 = vshll.u32 %v2525, 16
        %v2855 = vrot.slane %v2853, 1
        %v2856 = vor.u32 %v2851, %v2855
        %v2858 = vshll.u32 %v2526, 16
        %v2860 = vrot.slane %v2858, 1
        %v2861 = vsel %vm570, %v2856, %v2860
        %v2865 = vrot.slane %v2525, 1
        %v2866 = vrot.slane %v2526, 1
        %v2867 = vsel %vm811, %v2865, %v2866
        %v2869 = vld [vmem:[#allocation8] sm:$0xf]
        %v2870 = vld [vmem:[#allocation8 + $0x4] sm:$0xf]
        %v2871 = vld [vmem:[#allocation8 + $0x8] sm:$0xf]
        %v2872 = vld [vmem:[#allocation8 + $0xc] sm:$0xf]
        %v2873 = vld [vmem:[#allocation8 + $0x10] sm:$0xf]
        %v2874 = vld [vmem:[#allocation8 + $0x14] sm:$0xf]
        %v2875 = vld [vmem:[#allocation8 + $0x18] sm:$0xf]
        %v2876 = vld [vmem:[#allocation8 + $0x1c] sm:$0xf]
        %v2877 = vld [vmem:[#allocation8 + $0x20] sm:$0xf]
        %v2878 = vld [vmem:[#allocation8 + $0x24] sm:$0xf]
        %v2879 = vld [vmem:[#allocation8 + $0x28] sm:$0xf]
        %v2880 = vld [vmem:[#allocation8 + $0x2c] sm:$0xf]
        %v2881 = vld [vmem:[#allocation8 + $0x30] sm:$0xf]
        %v2882 = vld [vmem:[#allocation8 + $0x34] sm:$0xf]
        %v2883 = vld [vmem:[#allocation8 + $0x38] sm:$0xf]
        %v2884 = vld [vmem:[#allocation8 + $0x3c] sm:$0xf]
        %v2885 = vld [vmem:[#allocation8 + $0x40] sm:$0xf]
        %v2886 = vld [vmem:[#allocation8 + $0x44] sm:$0xf]
        %v2887 = vld [vmem:[#allocation8 + $0x48] sm:$0xf]
        %v2888 = vld [vmem:[#allocation8 + $0x4c] sm:$0xf]
        %v2889 = vld [vmem:[#allocation8 + $0x50] sm:$0xf]
        %v2890 = vld [vmem:[#allocation8 + $0x54] sm:$0xf]
        %v2891 = vld [vmem:[#allocation8 + $0x58] sm:$0xf]
        %v2892 = vld [vmem:[#allocation8 + $0x5c] sm:$0xf]
        %v2893 = vld [vmem:[#allocation8 + $0x60] sm:$0xf]
        %v2894 = vld [vmem:[#allocation8 + $0x64] sm:$0xf]
        %v2895 = vld [vmem:[#allocation8 + $0x68] sm:$0xf]
        %v2896 = vld [vmem:[#allocation8 + $0x6c] sm:$0xf]
        %v2897 = vld [vmem:[#allocation8 + $0x70] sm:$0xf]
        %v2898 = vld [vmem:[#allocation8 + $0x74] sm:$0xf]
        %v2899 = vld [vmem:[#allocation8 + $0x78] sm:$0xf]
        %v2900 = vld [vmem:[#allocation8 + $0x7c] sm:$0xf]
        %v2901 = vld [vmem:[#allocation8 + $0x80] sm:$0xf]
        %v2902 = vld [vmem:[#allocation8 + $0x84] sm:$0xf]
        %v2903 = vld [vmem:[#allocation8 + $0x88] sm:$0xf]
        %v2904 = vld [vmem:[#allocation8 + $0x8c] sm:$0xf]
        %v2905 = vld [vmem:[#allocation8 + $0x90] sm:$0xf]
        %v2906 = vld [vmem:[#allocation8 + $0x94] sm:$0xf]
        %v2907 = vld [vmem:[#allocation8 + $0x98] sm:$0xf]
        %v2908 = vld [vmem:[#allocation8 + $0x9c] sm:$0xf]
        %v2909 = vld [vmem:[#allocation8 + $0xa0] sm:$0xf]
        %v2910 = vld [vmem:[#allocation8 + $0xa4] sm:$0xf]
        %v2911 = vld [vmem:[#allocation8 + $0xa8] sm:$0xf]
        %v2912 = vld [vmem:[#allocation8 + $0xac] sm:$0xf]
        %v2913 = vld [vmem:[#allocation8 + $0xb0] sm:$0xf]
        %v2914 = vld [vmem:[#allocation8 + $0xb4] sm:$0xf]
        %v2915 = vld [vmem:[#allocation8 + $0xb8] sm:$0xf]
        %v2916 = vld [vmem:[#allocation8 + $0xbc] sm:$0xf]
        %v2917 = vld [vmem:[#allocation8 + $0xc0] sm:$0xf]
        %v2918 = vld [vmem:[#allocation8 + $0xc4] sm:$0xf]
        %v2919 = vld [vmem:[#allocation8 + $0xc8] sm:$0xf]
        %v2920 = vld [vmem:[#allocation8 + $0xcc] sm:$0xf]
        %v2921 = vld [vmem:[#allocation8 + $0xd0] sm:$0xf]
        %v2922 = vld [vmem:[#allocation8 + $0xd4] sm:$0xf]
        %v2923 = vld [vmem:[#allocation8 + $0xd8] sm:$0xf]
        %v2924 = vld [vmem:[#allocation8 + $0xdc] sm:$0xf]
        %v2925 = vld [vmem:[#allocation8 + $0xe0] sm:$0xf]
        %v2926 = vld [vmem:[#allocation8 + $0xe4] sm:$0xf]
        %v2927 = vld [vmem:[#allocation8 + $0xe8] sm:$0xf]
        %v2928 = vld [vmem:[#allocation8 + $0xec] sm:$0xf]
        %v2929 = vld [vmem:[#allocation8 + $0xf0] sm:$0xf]
        %v2930 = vld [vmem:[#allocation8 + $0xf4] sm:$0xf]
        %v2931 = vld [vmem:[#allocation8 + $0xf8] sm:$0xf]
        %v2932 = vld [vmem:[#allocation8 + $0xfc] sm:$0xf]
        %v2933 = vld [vmem:[#allocation8 + $0x100] sm:$0xf]
        %v2934 = vld [vmem:[#allocation8 + $0x104] sm:$0xf]
        %v2935 = vld [vmem:[#allocation8 + $0x108] sm:$0xf]
        %v2936 = vld [vmem:[#allocation8 + $0x10c] sm:$0xf]
        %v2937 = vld [vmem:[#allocation8 + $0x110] sm:$0xf]
        %v2938 = vld [vmem:[#allocation8 + $0x114] sm:$0xf]
        %v2939 = vld [vmem:[#allocation8 + $0x118] sm:$0xf]
        %v2940 = vld [vmem:[#allocation8 + $0x11c] sm:$0xf]
        %v2941 = vld [vmem:[#allocation8 + $0x120] sm:$0xf]
        %v2942 = vld [vmem:[#allocation8 + $0x124] sm:$0xf]
        %v2943 = vld [vmem:[#allocation8 + $0x128] sm:$0xf]
        %v2944 = vld [vmem:[#allocation8 + $0x12c] sm:$0xf]
        %v2945 = vld [vmem:[#allocation8 + $0x130] sm:$0xf]
        %v2946 = vld [vmem:[#allocation8 + $0x134] sm:$0xf]
        %v2947 = vld [vmem:[#allocation8 + $0x138] sm:$0xf]
        %v2948 = vld [vmem:[#allocation8 + $0x13c] sm:$0xf]
        %v2949 = vld [vmem:[#allocation8 + $0x140] sm:$0xf]
        %v2950 = vld [vmem:[#allocation8 + $0x144] sm:$0xf]
        %v2951 = vld [vmem:[#allocation8 + $0x148] sm:$0xf]
        %v2952 = vld [vmem:[#allocation8 + $0x14c] sm:$0xf]
        %v2953 = vld [vmem:[#allocation8 + $0x150] sm:$0xf]
        %v2954 = vld [vmem:[#allocation8 + $0x154] sm:$0xf]
        %v2955 = vld [vmem:[#allocation8 + $0x158] sm:$0xf]
        %v2956 = vld [vmem:[#allocation8 + $0x15c] sm:$0xf]
        %v2957 = vld [vmem:[#allocation8 + $0x160] sm:$0xf]
        %v2958 = vld [vmem:[#allocation8 + $0x164] sm:$0xf]
        %v2959 = vld [vmem:[#allocation8 + $0x168] sm:$0xf]
        %v2960 = vld [vmem:[#allocation8 + $0x16c] sm:$0xf]
        %v2961 = vld [vmem:[#allocation8 + $0x170] sm:$0xf]
        %v2962 = vld [vmem:[#allocation8 + $0x174] sm:$0xf]
        %v2963 = vld [vmem:[#allocation8 + $0x178] sm:$0xf]
        %v2964 = vld [vmem:[#allocation8 + $0x17c] sm:$0xf]
        %v2965 = vld [vmem:[#allocation8 + $0x180] sm:$0xf]
        %v2966 = vld [vmem:[#allocation8 + $0x184] sm:$0xf]
        %v2967 = vld [vmem:[#allocation8 + $0x188] sm:$0xf]
        %v2968 = vld [vmem:[#allocation8 + $0x18c] sm:$0xf]
        %v2969 = vld [vmem:[#allocation8 + $0x190] sm:$0xf]
        %v2970 = vld [vmem:[#allocation8 + $0x194] sm:$0xf]
        %v2971 = vld [vmem:[#allocation8 + $0x198] sm:$0xf]
        %v2972 = vld [vmem:[#allocation8 + $0x19c] sm:$0xf]
        %v2973 = vld [vmem:[#allocation8 + $0x1a0] sm:$0xf]
        %v2974 = vld [vmem:[#allocation8 + $0x1a4] sm:$0xf]
        %v2975 = vld [vmem:[#allocation8 + $0x1a8] sm:$0xf]
        %v2976 = vld [vmem:[#allocation8 + $0x1ac] sm:$0xf]
        %v2977 = vld [vmem:[#allocation8 + $0x1b0] sm:$0xf]
        %v2978 = vld [vmem:[#allocation8 + $0x1b4] sm:$0xf]
        %v2979 = vld [vmem:[#allocation8 + $0x1b8] sm:$0xf]
        %v2980 = vld [vmem:[#allocation8 + $0x1bc] sm:$0xf]
        %v2981 = vld [vmem:[#allocation8 + $0x1c0] sm:$0xf]
        %v2982 = vld [vmem:[#allocation8 + $0x1c4] sm:$0xf]
        %v2983 = vld [vmem:[#allocation8 + $0x1c8] sm:$0xf]
        %v2984 = vld [vmem:[#allocation8 + $0x1cc] sm:$0xf]
        %v2985 = vld [vmem:[#allocation8 + $0x1d0] sm:$0xf]
        %v2986 = vld [vmem:[#allocation8 + $0x1d4] sm:$0xf]
        %v2987 = vld [vmem:[#allocation8 + $0x1d8] sm:$0xf]
        %v2988 = vld [vmem:[#allocation8 + $0x1dc] sm:$0xf]
        %v2989 = vld [vmem:[#allocation8 + $0x1e0] sm:$0xf]
        %v2990 = vld [vmem:[#allocation8 + $0x1e4] sm:$0xf]
        %v2991 = vld [vmem:[#allocation8 + $0x1e8] sm:$0xf]
        %v2992 = vld [vmem:[#allocation8 + $0x1ec] sm:$0xf]
        %v2993 = vld [vmem:[#allocation8 + $0x1f0] sm:$0xf]
        %v2994 = vld [vmem:[#allocation8 + $0x1f4] sm:$0xf]
        %v2995 = vld [vmem:[#allocation8 + $0x1f8] sm:$0xf]
        %v2996 = vld [vmem:[#allocation8 + $0x1fc] sm:$0xf]
        %v2997 = vld [vmem:[#allocation8 + $0x200] sm:$0xf]
        %v2998 = vld [vmem:[#allocation8 + $0x204] sm:$0xf]
        %v2999 = vld [vmem:[#allocation8 + $0x208] sm:$0xf]
        %v3000 = vld [vmem:[#allocation8 + $0x20c] sm:$0xf]
        %v3001 = vld [vmem:[#allocation8 + $0x210] sm:$0xf]
        %v3002 = vld [vmem:[#allocation8 + $0x214] sm:$0xf]
        %v3003 = vld [vmem:[#allocation8 + $0x218] sm:$0xf]
        %v3004 = vld [vmem:[#allocation8 + $0x21c] sm:$0xf]
        %v3005 = vld [vmem:[#allocation8 + $0x220] sm:$0xf]
        %v3006 = vld [vmem:[#allocation8 + $0x224] sm:$0xf]
        %v3007 = vld [vmem:[#allocation8 + $0x228] sm:$0xf]
        %v3008 = vld [vmem:[#allocation8 + $0x22c] sm:$0xf]
        %v3009 = vld [vmem:[#allocation8 + $0x230] sm:$0xf]
        %v3010 = vld [vmem:[#allocation8 + $0x234] sm:$0xf]
        %v3011 = vld [vmem:[#allocation8 + $0x238] sm:$0xf]
        %v3012 = vld [vmem:[#allocation8 + $0x23c] sm:$0xf]
        %v3157 = vunpack.c.l.b16 %v2869
        %v3158 = vunpack.c.l.b16 %v2870
        %v3159 = vunpack.c.l.b16 %v2871
        %v3160 = vunpack.c.l.b16 %v2872
        %v3161 = vunpack.c.l.b16 %v2873
        %v3162 = vunpack.c.l.b16 %v2874
        %v3163 = vunpack.c.l.b16 %v2875
        %v3164 = vunpack.c.l.b16 %v2876
        %v3165 = vunpack.c.l.b16 %v2877
        %v3166 = vunpack.c.l.b16 %v2878
        %v3167 = vunpack.c.l.b16 %v2879
        %v3168 = vunpack.c.l.b16 %v2880
        %v3169 = vunpack.c.l.b16 %v2881
        %v3170 = vunpack.c.l.b16 %v2882
        %v3171 = vunpack.c.l.b16 %v2883
        %v3172 = vunpack.c.l.b16 %v2884
        %v3173 = vunpack.c.l.b16 %v2885
        %v3174 = vunpack.c.l.b16 %v2886
        %v3175 = vunpack.c.l.b16 %v2887
        %v3176 = vunpack.c.l.b16 %v2888
        %v3177 = vunpack.c.l.b16 %v2889
        %v3178 = vunpack.c.l.b16 %v2890
        %v3179 = vunpack.c.l.b16 %v2891
        %v3180 = vunpack.c.l.b16 %v2892
        %v3181 = vunpack.c.l.b16 %v2893
        %v3182 = vunpack.c.l.b16 %v2894
        %v3183 = vunpack.c.l.b16 %v2895
        %v3184 = vunpack.c.l.b16 %v2896
        %v3185 = vunpack.c.l.b16 %v2897
        %v3186 = vunpack.c.l.b16 %v2898
        %v3187 = vunpack.c.l.b16 %v2899
        %v3188 = vunpack.c.l.b16 %v2900
        %v3189 = vunpack.c.l.b16 %v2901
        %v3190 = vunpack.c.l.b16 %v2902
        %v3191 = vunpack.c.l.b16 %v2903
        %v3192 = vunpack.c.l.b16 %v2904
        %v3193 = vunpack.c.l.b16 %v2905
        %v3194 = vunpack.c.l.b16 %v2906
        %v3195 = vunpack.c.l.b16 %v2907
        %v3196 = vunpack.c.l.b16 %v2908
        %v3197 = vunpack.c.l.b16 %v2909
        %v3198 = vunpack.c.l.b16 %v2910
        %v3199 = vunpack.c.l.b16 %v2911
        %v3200 = vunpack.c.l.b16 %v2912
        %v3201 = vunpack.c.l.b16 %v2913
        %v3202 = vunpack.c.l.b16 %v2914
        %v3203 = vunpack.c.l.b16 %v2915
        %v3204 = vunpack.c.l.b16 %v2916
        %v3205 = vunpack.c.l.b16 %v2917
        %v3206 = vunpack.c.l.b16 %v2918
        %v3207 = vunpack.c.l.b16 %v2919
        %v3208 = vunpack.c.l.b16 %v2920
        %v3209 = vunpack.c.l.b16 %v2921
        %v3210 = vunpack.c.l.b16 %v2922
        %v3211 = vunpack.c.l.b16 %v2923
        %v3212 = vunpack.c.l.b16 %v2924
        %v3213 = vunpack.c.l.b16 %v2925
        %v3214 = vunpack.c.l.b16 %v2926
        %v3215 = vunpack.c.l.b16 %v2927
        %v3216 = vunpack.c.l.b16 %v2928
        %v3217 = vunpack.c.l.b16 %v2929
        %v3218 = vunpack.c.l.b16 %v2930
        %v3219 = vunpack.c.l.b16 %v2931
        %v3220 = vunpack.c.l.b16 %v2932
        %v3221 = vunpack.c.l.b16 %v2933
        %v3222 = vunpack.c.l.b16 %v2934
        %v3223 = vunpack.c.l.b16 %v2935
        %v3224 = vunpack.c.l.b16 %v2936
        %v3225 = vunpack.c.l.b16 %v2937
        %v3226 = vunpack.c.l.b16 %v2938
        %v3227 = vunpack.c.l.b16 %v2939
        %v3228 = vunpack.c.l.b16 %v2940
        %v3229 = vunpack.c.l.b16 %v2941
        %v3230 = vunpack.c.l.b16 %v2942
        %v3231 = vunpack.c.l.b16 %v2943
        %v3232 = vunpack.c.l.b16 %v2944
        %v3233 = vunpack.c.l.b16 %v2945
        %v3234 = vunpack.c.l.b16 %v2946
        %v3235 = vunpack.c.l.b16 %v2947
        %v3236 = vunpack.c.l.b16 %v2948
        %v3237 = vunpack.c.l.b16 %v2949
        %v3238 = vunpack.c.l.b16 %v2950
        %v3239 = vunpack.c.l.b16 %v2951
        %v3240 = vunpack.c.l.b16 %v2952
        %v3241 = vunpack.c.l.b16 %v2953
        %v3242 = vunpack.c.l.b16 %v2954
        %v3243 = vunpack.c.l.b16 %v2955
        %v3244 = vunpack.c.l.b16 %v2956
        %v3245 = vunpack.c.l.b16 %v2957
        %v3246 = vunpack.c.l.b16 %v2958
        %v3247 = vunpack.c.l.b16 %v2959
        %v3248 = vunpack.c.l.b16 %v2960
        %v3249 = vunpack.c.l.b16 %v2961
        %v3250 = vunpack.c.l.b16 %v2962
        %v3251 = vunpack.c.l.b16 %v2963
        %v3252 = vunpack.c.l.b16 %v2964
        %v3253 = vunpack.c.l.b16 %v2965
        %v3254 = vunpack.c.l.b16 %v2966
        %v3255 = vunpack.c.l.b16 %v2967
        %v3256 = vunpack.c.l.b16 %v2968
        %v3257 = vunpack.c.l.b16 %v2969
        %v3258 = vunpack.c.l.b16 %v2970
        %v3259 = vunpack.c.l.b16 %v2971
        %v3260 = vunpack.c.l.b16 %v2972
        %v3261 = vunpack.c.l.b16 %v2973
        %v3262 = vunpack.c.l.b16 %v2974
        %v3263 = vunpack.c.l.b16 %v2975
        %v3264 = vunpack.c.l.b16 %v2976
        %v3265 = vunpack.c.l.b16 %v2977
        %v3266 = vunpack.c.l.b16 %v2978
        %v3267 = vunpack.c.l.b16 %v2979
        %v3268 = vunpack.c.l.b16 %v2980
        %v3269 = vunpack.c.l.b16 %v2981
        %v3270 = vunpack.c.l.b16 %v2982
        %v3271 = vunpack.c.l.b16 %v2983
        %v3272 = vunpack.c.l.b16 %v2984
        %v3273 = vunpack.c.l.b16 %v2985
        %v3274 = vunpack.c.l.b16 %v2986
        %v3275 = vunpack.c.l.b16 %v2987
        %v3276 = vunpack.c.l.b16 %v2988
        %v3277 = vunpack.c.l.b16 %v2989
        %v3278 = vunpack.c.l.b16 %v2990
        %v3279 = vunpack.c.l.b16 %v2991
        %v3280 = vunpack.c.l.b16 %v2992
        %v3281 = vunpack.c.l.b16 %v2993
        %v3282 = vunpack.c.l.b16 %v2994
        %v3283 = vunpack.c.l.b16 %v2995
        %v3284 = vunpack.c.l.b16 %v2996
        %v3285 = vunpack.c.l.b16 %v2997
        %v3286 = vunpack.c.l.b16 %v2998
        %v3287 = vunpack.c.l.b16 %v2999
        %v3288 = vunpack.c.l.b16 %v3000
        %v3289 = vunpack.c.l.b16 %v3001
        %v3290 = vunpack.c.l.b16 %v3002
        %v3291 = vunpack.c.l.b16 %v3003
        %v3292 = vunpack.c.l.b16 %v3004
        %v3293 = vunpack.c.l.b16 %v3005
        %v3294 = vunpack.c.l.b16 %v3006
        %v3295 = vunpack.c.l.b16 %v3007
        %v3296 = vunpack.c.l.b16 %v3008
        %v3297 = vunpack.c.l.b16 %v3009
        %v3298 = vunpack.c.l.b16 %v3010
        %v3299 = vunpack.c.l.b16 %v3011
        %v3300 = vunpack.c.l.b16 %v3012
        %v3301 = vpack.c.b16 %v3158, %v3157
        %v3302 = vpack.c.b16 %v3160, %v3159
        %v3303 = vpack.c.b16 %v3162, %v3161
        %v3304 = vpack.c.b16 %v3164, %v3163
        %v3305 = vpack.c.b16 %v3166, %v3165
        %v3306 = vpack.c.b16 %v3168, %v3167
        %v3307 = vpack.c.b16 %v3170, %v3169
        %v3308 = vpack.c.b16 %v3172, %v3171
        %v3309 = vpack.c.b16 %v3174, %v3173
        %v3310 = vpack.c.b16 %v3176, %v3175
        %v3311 = vpack.c.b16 %v3178, %v3177
        %v3312 = vpack.c.b16 %v3180, %v3179
        %v3313 = vpack.c.b16 %v3182, %v3181
        %v3314 = vpack.c.b16 %v3184, %v3183
        %v3315 = vpack.c.b16 %v3186, %v3185
        %v3316 = vpack.c.b16 %v3188, %v3187
        %v3317 = vpack.c.b16 %v3190, %v3189
        %v3318 = vpack.c.b16 %v3192, %v3191
        %v3319 = vpack.c.b16 %v3194, %v3193
        %v3320 = vpack.c.b16 %v3196, %v3195
        %v3321 = vpack.c.b16 %v3198, %v3197
        %v3322 = vpack.c.b16 %v3200, %v3199
        %v3323 = vpack.c.b16 %v3202, %v3201
        %v3324 = vpack.c.b16 %v3204, %v3203
        %v3325 = vpack.c.b16 %v3206, %v3205
        %v3326 = vpack.c.b16 %v3208, %v3207
        %v3327 = vpack.c.b16 %v3210, %v3209
        %v3328 = vpack.c.b16 %v3212, %v3211
        %v3329 = vpack.c.b16 %v3214, %v3213
        %v3330 = vpack.c.b16 %v3216, %v3215
        %v3331 = vpack.c.b16 %v3218, %v3217
        %v3332 = vpack.c.b16 %v3220, %v3219
        %v3333 = vpack.c.b16 %v3222, %v3221
        %v3334 = vpack.c.b16 %v3224, %v3223
        %v3335 = vpack.c.b16 %v3226, %v3225
        %v3336 = vpack.c.b16 %v3228, %v3227
        %v3337 = vpack.c.b16 %v3230, %v3229
        %v3338 = vpack.c.b16 %v3232, %v3231
        %v3339 = vpack.c.b16 %v3234, %v3233
        %v3340 = vpack.c.b16 %v3236, %v3235
        %v3341 = vpack.c.b16 %v3238, %v3237
        %v3342 = vpack.c.b16 %v3240, %v3239
        %v3343 = vpack.c.b16 %v3242, %v3241
        %v3344 = vpack.c.b16 %v3244, %v3243
        %v3345 = vpack.c.b16 %v3246, %v3245
        %v3346 = vpack.c.b16 %v3248, %v3247
        %v3347 = vpack.c.b16 %v3250, %v3249
        %v3348 = vpack.c.b16 %v3252, %v3251
        %v3349 = vpack.c.b16 %v3254, %v3253
        %v3350 = vpack.c.b16 %v3256, %v3255
        %v3351 = vpack.c.b16 %v3258, %v3257
        %v3352 = vpack.c.b16 %v3260, %v3259
        %v3353 = vpack.c.b16 %v3262, %v3261
        %v3354 = vpack.c.b16 %v3264, %v3263
        %v3355 = vpack.c.b16 %v3266, %v3265
        %v3356 = vpack.c.b16 %v3268, %v3267
        %v3357 = vpack.c.b16 %v3270, %v3269
        %v3358 = vpack.c.b16 %v3272, %v3271
        %v3359 = vpack.c.b16 %v3274, %v3273
        %v3360 = vpack.c.b16 %v3276, %v3275
        %v3361 = vpack.c.b16 %v3278, %v3277
        %v3362 = vpack.c.b16 %v3280, %v3279
        %v3363 = vpack.c.b16 %v3282, %v3281
        %v3364 = vpack.c.b16 %v3284, %v3283
        %v3365 = vpack.c.b16 %v3286, %v3285
        %v3366 = vpack.c.b16 %v3288, %v3287
        %v3367 = vpack.c.b16 %v3290, %v3289
        %v3368 = vpack.c.b16 %v3292, %v3291
        %v3369 = vpack.c.b16 %v3294, %v3293
        %v3370 = vpack.c.b16 %v3296, %v3295
        %v3371 = vpack.c.b16 %v3298, %v3297
        %v3372 = vpack.c.b16 %v3300, %v3299
        %3445 = vmatprep.subr.bf16.mxu0 0
        %3446 = vmatpush1.bf16.msra.mxu0 %v3308
        %3447 = vmatprep.subr.bf16.mxu0 0
        %3448 = vmatpush1.bf16.msra.mxu0 %v3307
        %3449 = vmatprep.subr.bf16.mxu0 0
        %3450 = vmatpush1.bf16.msra.mxu0 %v3306
        %3451 = vmatprep.subr.bf16.mxu0 0
        %3452 = vmatpush1.bf16.msra.mxu0 %v3305
        %3453 = vmatprep.subr.bf16.mxu0 0
        %3454 = vmatpush1.bf16.msra.mxu0 %v3304
        %3455 = vmatprep.subr.bf16.mxu0 0
        %3456 = vmatpush1.bf16.msra.mxu0 %v3303
        %3457 = vmatprep.subr.bf16.mxu0 0
        %3458 = vmatpush1.bf16.msra.mxu0 %v3302
        %3459 = vmatprep.subr.bf16.mxu0 0
        %3460 = vmatpush1.bf16.msra.mxu0 %v3301
        %3461 = vmatprep.subr.bf16.mxu0 0
        %3462 = vmatpush2.bf16.msra.mxu0 %v3316
        %3463 = vmatprep.subr.bf16.mxu0 0
        %3464 = vmatpush2.bf16.msra.mxu0 %v3315
        %3465 = vmatprep.subr.bf16.mxu0 0
        %3466 = vmatpush2.bf16.msra.mxu0 %v3314
        %3467 = vmatprep.subr.bf16.mxu0 0
        %3468 = vmatpush2.bf16.msra.mxu0 %v3313
        %3469 = vmatprep.subr.bf16.mxu0 0
        %3470 = vmatpush2.bf16.msra.mxu0 %v3312
        %3471 = vmatprep.subr.bf16.mxu0 0
        %3472 = vmatpush2.bf16.msra.mxu0 %v3311
        %3473 = vmatprep.subr.bf16.mxu0 0
        %3474 = vmatpush2.bf16.msra.mxu0 %v3310
        %3475 = vmatprep.subr.bf16.mxu0 0
        %3476 = vmatpush2.bf16.msra.mxu0 %v3309
        %3477 = vmatprep.mubr.bf16.mxu0 %v2538
        %3478 = vmatmul.mubr.bf16.gmra.mxu0 %v2491
        %v3479 = vpop.f32.mrf.mxu0
        %v3480 = vadd.f32 0.0, %v3479
        %v3481 = vpop.f32.mrf.mxu0
        %v3482 = vpop.f32.mrf.mxu0
        %v3483 = vadd.f32 0.0, %v3482
        %v3484 = vpop.f32.mrf.mxu0
        %3485 = vmatprep.mubr.bf16.mxu0 %v2550
        %3486 = vmatmul.mubr.bf16.gmra.mxu0 %v2493
        %v3487 = vpop.f32.mrf.mxu0
        %v3488 = vadd.f32 0.0, %v3487
        %v3489 = vpop.f32.mrf.mxu0
        %v3490 = vpop.f32.mrf.mxu0
        %v3491 = vadd.f32 0.0, %v3490
        %v3492 = vpop.f32.mrf.mxu0
        %3493 = vmatprep.mubr.bf16.mxu0 %v2562
        %3494 = vmatmul.mubr.bf16.gmra.mxu0 %v2495
        %v3495 = vpop.f32.mrf.mxu0
        %v3496 = vadd.f32 0.0, %v3495
        %v3497 = vpop.f32.mrf.mxu0
        %v3498 = vpop.f32.mrf.mxu0
        %v3499 = vadd.f32 0.0, %v3498
        %v3500 = vpop.f32.mrf.mxu0
        %3501 = vmatprep.mubr.bf16.mxu0 %v2574
        %3502 = vmatmul.mubr.bf16.gmra.mxu0 %v2497
        %v3503 = vpop.f32.mrf.mxu0
        %v3504 = vadd.f32 0.0, %v3503
        %v3505 = vpop.f32.mrf.mxu0
        %v3506 = vpop.f32.mrf.mxu0
        %v3507 = vadd.f32 0.0, %v3506
        %v3508 = vpop.f32.mrf.mxu0
        %3509 = vmatprep.mubr.bf16.mxu0 %v2586
        %3510 = vmatmul.mubr.bf16.gmra.mxu0 %v2499
        %v3511 = vpop.f32.mrf.mxu0
        %v3512 = vadd.f32 0.0, %v3511
        %v3513 = vpop.f32.mrf.mxu0
        %v3514 = vpop.f32.mrf.mxu0
        %v3515 = vadd.f32 0.0, %v3514
        %v3516 = vpop.f32.mrf.mxu0
        %3517 = vmatprep.mubr.bf16.mxu0 %v2598
        %3518 = vmatmul.mubr.bf16.gmra.mxu0 %v2501
        %v3519 = vpop.f32.mrf.mxu0
        %v3520 = vadd.f32 0.0, %v3519
        %v3521 = vpop.f32.mrf.mxu0
        %v3522 = vpop.f32.mrf.mxu0
        %v3523 = vadd.f32 0.0, %v3522
        %v3524 = vpop.f32.mrf.mxu0
        %3525 = vmatprep.mubr.bf16.mxu0 %v2610
        %3526 = vmatmul.mubr.bf16.gmra.mxu0 %v2503
        %v3527 = vpop.f32.mrf.mxu0
        %v3528 = vadd.f32 0.0, %v3527
        %v3529 = vpop.f32.mrf.mxu0
        %v3530 = vpop.f32.mrf.mxu0
        %v3531 = vadd.f32 0.0, %v3530
        %v3532 = vpop.f32.mrf.mxu0
        %3533 = vmatprep.mubr.bf16.mxu0 %v2622
        %3534 = vmatmul.mubr.bf16.gmra.mxu0 %v2505
        %v3535 = vpop.f32.mrf.mxu0
        %v3536 = vadd.f32 0.0, %v3535
        %v3537 = vpop.f32.mrf.mxu0
        %v3538 = vpop.f32.mrf.mxu0
        %v3539 = vadd.f32 0.0, %v3538
        %v3540 = vpop.f32.mrf.mxu0
        %3541 = vmatprep.mubr.bf16.mxu0 %v2634
        %3542 = vmatmul.mubr.bf16.gmra.mxu0 %v2507
        %v3543 = vpop.f32.mrf.mxu0
        %v3544 = vadd.f32 0.0, %v3543
        %v3545 = vpop.f32.mrf.mxu0
        %v3546 = vpop.f32.mrf.mxu0
        %v3547 = vadd.f32 0.0, %v3546
        %v3548 = vpop.f32.mrf.mxu0
        %3549 = vmatprep.mubr.bf16.mxu0 %v2646
        %3550 = vmatmul.mubr.bf16.gmra.mxu0 %v2509
        %v3551 = vpop.f32.mrf.mxu0
        %v3552 = vadd.f32 0.0, %v3551
        %v3553 = vpop.f32.mrf.mxu0
        %v3554 = vpop.f32.mrf.mxu0
        %v3555 = vadd.f32 0.0, %v3554
        %v3556 = vpop.f32.mrf.mxu0
        %3557 = vmatprep.mubr.bf16.mxu0 %v2658
        %3558 = vmatmul.mubr.bf16.gmra.mxu0 %v2511
        %v3559 = vpop.f32.mrf.mxu0
        %v3560 = vadd.f32 0.0, %v3559
        %v3561 = vpop.f32.mrf.mxu0
        %v3562 = vpop.f32.mrf.mxu0
        %v3563 = vadd.f32 0.0, %v3562
        %v3564 = vpop.f32.mrf.mxu0
        %3565 = vmatprep.mubr.bf16.mxu0 %v2670
        %3566 = vmatmul.mubr.bf16.gmra.mxu0 %v2513
        %v3567 = vpop.f32.mrf.mxu0
        %v3568 = vadd.f32 0.0, %v3567
        %v3569 = vpop.f32.mrf.mxu0
        %v3570 = vpop.f32.mrf.mxu0
        %v3571 = vadd.f32 0.0, %v3570
        %v3572 = vpop.f32.mrf.mxu0
        %3573 = vmatprep.mubr.bf16.mxu0 %v2682
        %3574 = vmatmul.mubr.bf16.gmra.mxu0 %v2515
        %v3575 = vpop.f32.mrf.mxu0
        %v3576 = vadd.f32 0.0, %v3575
        %v3577 = vpop.f32.mrf.mxu0
        %v3578 = vpop.f32.mrf.mxu0
        %v3579 = vadd.f32 0.0, %v3578
        %v3580 = vpop.f32.mrf.mxu0
        %3581 = vmatprep.mubr.bf16.mxu0 %v2694
        %3582 = vmatmul.mubr.bf16.gmra.mxu0 %v2517
        %v3583 = vpop.f32.mrf.mxu0
        %v3584 = vadd.f32 0.0, %v3583
        %v3585 = vpop.f32.mrf.mxu0
        %v3586 = vpop.f32.mrf.mxu0
        %v3587 = vadd.f32 0.0, %v3586
        %v3588 = vpop.f32.mrf.mxu0
        %3589 = vmatprep.mubr.bf16.mxu0 %v2706
        %3590 = vmatmul.mubr.bf16.gmra.mxu0 %v2519
        %v3591 = vpop.f32.mrf.mxu0
        %v3592 = vadd.f32 0.0, %v3591
        %v3593 = vpop.f32.mrf.mxu0
        %v3594 = vpop.f32.mrf.mxu0
        %v3595 = vadd.f32 0.0, %v3594
        %v3596 = vpop.f32.mrf.mxu0
        %3597 = vmatprep.mubr.bf16.mxu0 %v2718
        %3598 = vmatmul.mubr.bf16.gmra.mxu0 %v2521
        %v3599 = vpop.f32.mrf.mxu0
        %v3600 = vadd.f32 0.0, %v3599
        %v3601 = vpop.f32.mrf.mxu0
        %v3602 = vpop.f32.mrf.mxu0
        %v3603 = vadd.f32 0.0, %v3602
        %v3604 = vpop.f32.mrf.mxu0
        %3605 = vdwg.mxu0
        %3606 = vmatprep.subr.bf16.mxu0 0
        %3607 = vmatpush1.bf16.msra.mxu0 %v3324
        %3608 = vmatprep.subr.bf16.mxu0 0
        %3609 = vmatpush1.bf16.msra.mxu0 %v3323
        %3610 = vmatprep.subr.bf16.mxu0 0
        %3611 = vmatpush1.bf16.msra.mxu0 %v3322
        %3612 = vmatprep.subr.bf16.mxu0 0
        %3613 = vmatpush1.bf16.msra.mxu0 %v3321
        %3614 = vmatprep.subr.bf16.mxu0 0
        %3615 = vmatpush1.bf16.msra.mxu0 %v3320
        %3616 = vmatprep.subr.bf16.mxu0 0
        %3617 = vmatpush1.bf16.msra.mxu0 %v3319
        %3618 = vmatprep.subr.bf16.mxu0 0
        %3619 = vmatpush1.bf16.msra.mxu0 %v3318
        %3620 = vmatprep.subr.bf16.mxu0 0
        %3621 = vmatpush1.bf16.msra.mxu0 %v3317
        %3622 = vmatprep.subr.bf16.mxu0 0
        %3623 = vmatpush2.bf16.msra.mxu0 %v3332
        %3624 = vmatprep.subr.bf16.mxu0 0
        %3625 = vmatpush2.bf16.msra.mxu0 %v3331
        %3626 = vmatprep.subr.bf16.mxu0 0
        %3627 = vmatpush2.bf16.msra.mxu0 %v3330
        %3628 = vmatprep.subr.bf16.mxu0 0
        %3629 = vmatpush2.bf16.msra.mxu0 %v3329
        %3630 = vmatprep.subr.bf16.mxu0 0
        %3631 = vmatpush2.bf16.msra.mxu0 %v3328
        %3632 = vmatprep.subr.bf16.mxu0 0
        %3633 = vmatpush2.bf16.msra.mxu0 %v3327
        %3634 = vmatprep.subr.bf16.mxu0 0
        %3635 = vmatpush2.bf16.msra.mxu0 %v3326
        %3636 = vmatprep.subr.bf16.mxu0 0
        %3637 = vmatpush2.bf16.msra.mxu0 %v3325
        %3638 = vmatprep.mubr.bf16.mxu0 %v2493
        %3639 = vmatmul.mubr.bf16.gmra.mxu0 %v2769
        %v3640 = vpop.f32.mrf.mxu0
        %v3641 = vadd.f32 %v3480, %v3640
        %v3642 = vpop.f32.mrf.mxu0
        %v3643 = vpop.f32.mrf.mxu0
        %v3644 = vadd.f32 %v3483, %v3643
        %v3645 = vpop.f32.mrf.mxu0
        %3646 = vmatprep.mubr.bf16.mxu0 %v2495
        %3647 = vmatmul.mubr.bf16.gmra.mxu0 %v2772
        %v3648 = vpop.f32.mrf.mxu0
        %v3649 = vadd.f32 %v3488, %v3648
        %v3650 = vpop.f32.mrf.mxu0
        %v3651 = vpop.f32.mrf.mxu0
        %v3652 = vadd.f32 %v3491, %v3651
        %v3653 = vpop.f32.mrf.mxu0
        %3654 = vmatprep.mubr.bf16.mxu0 %v2497
        %3655 = vmatmul.mubr.bf16.gmra.mxu0 %v2775
        %v3656 = vpop.f32.mrf.mxu0
        %v3657 = vadd.f32 %v3496, %v3656
        %v3658 = vpop.f32.mrf.mxu0
        %v3659 = vpop.f32.mrf.mxu0
        %v3660 = vadd.f32 %v3499, %v3659
        %v3661 = vpop.f32.mrf.mxu0
        %3662 = vmatprep.mubr.bf16.mxu0 %v2499
        %3663 = vmatmul.mubr.bf16.gmra.mxu0 %v2778
        %v3664 = vpop.f32.mrf.mxu0
        %v3665 = vadd.f32 %v3504, %v3664
        %v3666 = vpop.f32.mrf.mxu0
        %v3667 = vpop.f32.mrf.mxu0
        %v3668 = vadd.f32 %v3507, %v3667
        %v3669 = vpop.f32.mrf.mxu0
        %3670 = vmatprep.mubr.bf16.mxu0 %v2501
        %3671 = vmatmul.mubr.bf16.gmra.mxu0 %v2781
        %v3672 = vpop.f32.mrf.mxu0
        %v3673 = vadd.f32 %v3512, %v3672
        %v3674 = vpop.f32.mrf.mxu0
        %v3675 = vpop.f32.mrf.mxu0
        %v3676 = vadd.f32 %v3515, %v3675
        %v3677 = vpop.f32.mrf.mxu0
        %3678 = vmatprep.mubr.bf16.mxu0 %v2503
        %3679 = vmatmul.mubr.bf16.gmra.mxu0 %v2784
        %v3680 = vpop.f32.mrf.mxu0
        %v3681 = vadd.f32 %v3520, %v3680
        %v3682 = vpop.f32.mrf.mxu0
        %v3683 = vpop.f32.mrf.mxu0
        %v3684 = vadd.f32 %v3523, %v3683
        %v3685 = vpop.f32.mrf.mxu0
        %3686 = vmatprep.mubr.bf16.mxu0 %v2505
        %3687 = vmatmul.mubr.bf16.gmra.mxu0 %v2787
        %v3688 = vpop.f32.mrf.mxu0
        %v3689 = vadd.f32 %v3528, %v3688
        %v3690 = vpop.f32.mrf.mxu0
        %v3691 = vpop.f32.mrf.mxu0
        %v3692 = vadd.f32 %v3531, %v3691
        %v3693 = vpop.f32.mrf.mxu0
        %3694 = vmatprep.mubr.bf16.mxu0 %v2507
        %3695 = vmatmul.mubr.bf16.gmra.mxu0 %v2790
        %v3696 = vpop.f32.mrf.mxu0
        %v3697 = vadd.f32 %v3536, %v3696
        %v3698 = vpop.f32.mrf.mxu0
        %v3699 = vpop.f32.mrf.mxu0
        %v3700 = vadd.f32 %v3539, %v3699
        %v3701 = vpop.f32.mrf.mxu0
        %3702 = vmatprep.mubr.bf16.mxu0 %v2509
        %3703 = vmatmul.mubr.bf16.gmra.mxu0 %v2793
        %v3704 = vpop.f32.mrf.mxu0
        %v3705 = vadd.f32 %v3544, %v3704
        %v3706 = vpop.f32.mrf.mxu0
        %v3707 = vpop.f32.mrf.mxu0
        %v3708 = vadd.f32 %v3547, %v3707
        %v3709 = vpop.f32.mrf.mxu0
        %3710 = vmatprep.mubr.bf16.mxu0 %v2511
        %3711 = vmatmul.mubr.bf16.gmra.mxu0 %v2796
        %v3712 = vpop.f32.mrf.mxu0
        %v3713 = vadd.f32 %v3552, %v3712
        %v3714 = vpop.f32.mrf.mxu0
        %v3715 = vpop.f32.mrf.mxu0
        %v3716 = vadd.f32 %v3555, %v3715
        %v3717 = vpop.f32.mrf.mxu0
        %3718 = vmatprep.mubr.bf16.mxu0 %v2513
        %3719 = vmatmul.mubr.bf16.gmra.mxu0 %v2799
        %v3720 = vpop.f32.mrf.mxu0
        %v3721 = vadd.f32 %v3560, %v3720
        %v3722 = vpop.f32.mrf.mxu0
        %v3723 = vpop.f32.mrf.mxu0
        %v3724 = vadd.f32 %v3563, %v3723
        %v3725 = vpop.f32.mrf.mxu0
        %3726 = vmatprep.mubr.bf16.mxu0 %v2515
        %3727 = vmatmul.mubr.bf16.gmra.mxu0 %v2802
        %v3728 = vpop.f32.mrf.mxu0
        %v3729 = vadd.f32 %v3568, %v3728
        %v3730 = vpop.f32.mrf.mxu0
        %v3731 = vpop.f32.mrf.mxu0
        %v3732 = vadd.f32 %v3571, %v3731
        %v3733 = vpop.f32.mrf.mxu0
        %3734 = vmatprep.mubr.bf16.mxu0 %v2517
        %3735 = vmatmul.mubr.bf16.gmra.mxu0 %v2805
        %v3736 = vpop.f32.mrf.mxu0
        %v3737 = vadd.f32 %v3576, %v3736
        %v3738 = vpop.f32.mrf.mxu0
        %v3739 = vpop.f32.mrf.mxu0
        %v3740 = vadd.f32 %v3579, %v3739
        %v3741 = vpop.f32.mrf.mxu0
        %3742 = vmatprep.mubr.bf16.mxu0 %v2519
        %3743 = vmatmul.mubr.bf16.gmra.mxu0 %v2808
        %v3744 = vpop.f32.mrf.mxu0
        %v3745 = vadd.f32 %v3584, %v3744
        %v3746 = vpop.f32.mrf.mxu0
        %v3747 = vpop.f32.mrf.mxu0
        %v3748 = vadd.f32 %v3587, %v3747
        %v3749 = vpop.f32.mrf.mxu0
        %3750 = vmatprep.mubr.bf16.mxu0 %v2521
        %3751 = vmatmul.mubr.bf16.gmra.mxu0 %v2811
        %v3752 = vpop.f32.mrf.mxu0
        %v3753 = vadd.f32 %v3592, %v3752
        %v3754 = vpop.f32.mrf.mxu0
        %v3755 = vpop.f32.mrf.mxu0
        %v3756 = vadd.f32 %v3595, %v3755
        %v3757 = vpop.f32.mrf.mxu0
        %3758 = vmatprep.mubr.bf16.mxu0 %v2523
        %3759 = vmatmul.mubr.bf16.gmra.mxu0 %v2814
        %v3760 = vpop.f32.mrf.mxu0
        %v3761 = vadd.f32 %v3600, %v3760
        %v3762 = vpop.f32.mrf.mxu0
        %v3763 = vpop.f32.mrf.mxu0
        %v3764 = vadd.f32 %v3603, %v3763
        %v3765 = vpop.f32.mrf.mxu0
        %3766 = vdwg.mxu0
        %3767 = vmatprep.subr.bf16.mxu0 0
        %3768 = vmatpush1.bf16.msra.mxu0 %v3340
        %3769 = vmatprep.subr.bf16.mxu0 0
        %3770 = vmatpush1.bf16.msra.mxu0 %v3339
        %3771 = vmatprep.subr.bf16.mxu0 0
        %3772 = vmatpush1.bf16.msra.mxu0 %v3338
        %3773 = vmatprep.subr.bf16.mxu0 0
        %3774 = vmatpush1.bf16.msra.mxu0 %v3337
        %3775 = vmatprep.subr.bf16.mxu0 0
        %3776 = vmatpush1.bf16.msra.mxu0 %v3336
        %3777 = vmatprep.subr.bf16.mxu0 0
        %3778 = vmatpush1.bf16.msra.mxu0 %v3335
        %3779 = vmatprep.subr.bf16.mxu0 0
        %3780 = vmatpush1.bf16.msra.mxu0 %v3334
        %3781 = vmatprep.subr.bf16.mxu0 0
        %3782 = vmatpush1.bf16.msra.mxu0 %v3333
        %3783 = vmatprep.subr.bf16.mxu0 0
        %3784 = vmatpush2.bf16.msra.mxu0 %v3348
        %3785 = vmatprep.subr.bf16.mxu0 0
        %3786 = vmatpush2.bf16.msra.mxu0 %v3347
        %3787 = vmatprep.subr.bf16.mxu0 0
        %3788 = vmatpush2.bf16.msra.mxu0 %v3346
        %3789 = vmatprep.subr.bf16.mxu0 0
        %3790 = vmatpush2.bf16.msra.mxu0 %v3345
        %3791 = vmatprep.subr.bf16.mxu0 0
        %3792 = vmatpush2.bf16.msra.mxu0 %v3344
        %3793 = vmatprep.subr.bf16.mxu0 0
        %3794 = vmatpush2.bf16.msra.mxu0 %v3343
        %3795 = vmatprep.subr.bf16.mxu0 0
        %3796 = vmatpush2.bf16.msra.mxu0 %v3342
        %3797 = vmatprep.subr.bf16.mxu0 0
        %3798 = vmatpush2.bf16.msra.mxu0 %v3341
        %3799 = vmatprep.mubr.bf16.mxu0 %v2772
        %3800 = vmatmul.mubr.bf16.gmra.mxu0 %v2550
        %v3801 = vpop.f32.mrf.mxu0
        %v3802 = vadd.f32 %v3641, %v3801
        %v3803 = vpop.f32.mrf.mxu0
        %v3804 = vpop.f32.mrf.mxu0
        %v3805 = vadd.f32 %v3644, %v3804
        %v3806 = vpop.f32.mrf.mxu0
        %3807 = vmatprep.mubr.bf16.mxu0 %v2775
        %3808 = vmatmul.mubr.bf16.gmra.mxu0 %v2562
        %v3809 = vpop.f32.mrf.mxu0
        %v3810 = vadd.f32 %v3649, %v3809
        %v3811 = vpop.f32.mrf.mxu0
        %v3812 = vpop.f32.mrf.mxu0
        %v3813 = vadd.f32 %v3652, %v3812
        %v3814 = vpop.f32.mrf.mxu0
        %3815 = vmatprep.mubr.bf16.mxu0 %v2778
        %3816 = vmatmul.mubr.bf16.gmra.mxu0 %v2574
        %v3817 = vpop.f32.mrf.mxu0
        %v3818 = vadd.f32 %v3657, %v3817
        %v3819 = vpop.f32.mrf.mxu0
        %v3820 = vpop.f32.mrf.mxu0
        %v3821 = vadd.f32 %v3660, %v3820
        %v3822 = vpop.f32.mrf.mxu0
        %3823 = vmatprep.mubr.bf16.mxu0 %v2781
        %3824 = vmatmul.mubr.bf16.gmra.mxu0 %v2586
        %v3825 = vpop.f32.mrf.mxu0
        %v3826 = vadd.f32 %v3665, %v3825
        %v3827 = vpop.f32.mrf.mxu0
        %v3828 = vpop.f32.mrf.mxu0
        %v3829 = vadd.f32 %v3668, %v3828
        %v3830 = vpop.f32.mrf.mxu0
        %3831 = vmatprep.mubr.bf16.mxu0 %v2784
        %3832 = vmatmul.mubr.bf16.gmra.mxu0 %v2598
        %v3833 = vpop.f32.mrf.mxu0
        %v3834 = vadd.f32 %v3673, %v3833
        %v3835 = vpop.f32.mrf.mxu0
        %v3836 = vpop.f32.mrf.mxu0
        %v3837 = vadd.f32 %v3676, %v3836
        %v3838 = vpop.f32.mrf.mxu0
        %3839 = vmatprep.mubr.bf16.mxu0 %v2787
        %3840 = vmatmul.mubr.bf16.gmra.mxu0 %v2610
        %v3841 = vpop.f32.mrf.mxu0
        %v3842 = vadd.f32 %v3681, %v3841
        %v3843 = vpop.f32.mrf.mxu0
        %v3844 = vpop.f32.mrf.mxu0
        %v3845 = vadd.f32 %v3684, %v3844
        %v3846 = vpop.f32.mrf.mxu0
        %3847 = vmatprep.mubr.bf16.mxu0 %v2790
        %3848 = vmatmul.mubr.bf16.gmra.mxu0 %v2622
        %v3849 = vpop.f32.mrf.mxu0
        %v3850 = vadd.f32 %v3689, %v3849
        %v3851 = vpop.f32.mrf.mxu0
        %v3852 = vpop.f32.mrf.mxu0
        %v3853 = vadd.f32 %v3692, %v3852
        %v3854 = vpop.f32.mrf.mxu0
        %3855 = vmatprep.mubr.bf16.mxu0 %v2793
        %3856 = vmatmul.mubr.bf16.gmra.mxu0 %v2634
        %v3857 = vpop.f32.mrf.mxu0
        %v3858 = vadd.f32 %v3697, %v3857
        %v3859 = vpop.f32.mrf.mxu0
        %v3860 = vpop.f32.mrf.mxu0
        %v3861 = vadd.f32 %v3700, %v3860
        %v3862 = vpop.f32.mrf.mxu0
        %3863 = vmatprep.mubr.bf16.mxu0 %v2796
        %3864 = vmatmul.mubr.bf16.gmra.mxu0 %v2646
        %v3865 = vpop.f32.mrf.mxu0
        %v3866 = vadd.f32 %v3705, %v3865
        %v3867 = vpop.f32.mrf.mxu0
        %v3868 = vpop.f32.mrf.mxu0
        %v3869 = vadd.f32 %v3708, %v3868
        %v3870 = vpop.f32.mrf.mxu0
        %3871 = vmatprep.mubr.bf16.mxu0 %v2799
        %3872 = vmatmul.mubr.bf16.gmra.mxu0 %v2658
        %v3873 = vpop.f32.mrf.mxu0
        %v3874 = vadd.f32 %v3713, %v3873
        %v3875 = vpop.f32.mrf.mxu0
        %v3876 = vpop.f32.mrf.mxu0
        %v3877 = vadd.f32 %v3716, %v3876
        %v3878 = vpop.f32.mrf.mxu0
        %3879 = vmatprep.mubr.bf16.mxu0 %v2802
        %3880 = vmatmul.mubr.bf16.gmra.mxu0 %v2670
        %v3881 = vpop.f32.mrf.mxu0
        %v3882 = vadd.f32 %v3721, %v3881
        %v3883 = vpop.f32.mrf.mxu0
        %v3884 = vpop.f32.mrf.mxu0
        %v3885 = vadd.f32 %v3724, %v3884
        %v3886 = vpop.f32.mrf.mxu0
        %3887 = vmatprep.mubr.bf16.mxu0 %v2805
        %3888 = vmatmul.mubr.bf16.gmra.mxu0 %v2682
        %v3889 = vpop.f32.mrf.mxu0
        %v3890 = vadd.f32 %v3729, %v3889
        %v3891 = vpop.f32.mrf.mxu0
        %v3892 = vpop.f32.mrf.mxu0
        %v3893 = vadd.f32 %v3732, %v3892
        %v3894 = vpop.f32.mrf.mxu0
        %3895 = vmatprep.mubr.bf16.mxu0 %v2808
        %3896 = vmatmul.mubr.bf16.gmra.mxu0 %v2694
        %v3897 = vpop.f32.mrf.mxu0
        %v3898 = vadd.f32 %v3737, %v3897
        %v3899 = vpop.f32.mrf.mxu0
        %v3900 = vpop.f32.mrf.mxu0
        %v3901 = vadd.f32 %v3740, %v3900
        %v3902 = vpop.f32.mrf.mxu0
        %3903 = vmatprep.mubr.bf16.mxu0 %v2811
        %3904 = vmatmul.mubr.bf16.gmra.mxu0 %v2706
        %v3905 = vpop.f32.mrf.mxu0
        %v3906 = vadd.f32 %v3745, %v3905
        %v3907 = vpop.f32.mrf.mxu0
        %v3908 = vpop.f32.mrf.mxu0
        %v3909 = vadd.f32 %v3748, %v3908
        %v3910 = vpop.f32.mrf.mxu0
        %3911 = vmatprep.mubr.bf16.mxu0 %v2814
        %3912 = vmatmul.mubr.bf16.gmra.mxu0 %v2718
        %v3913 = vpop.f32.mrf.mxu0
        %v3914 = vadd.f32 %v3753, %v3913
        %v3915 = vpop.f32.mrf.mxu0
        %v3916 = vpop.f32.mrf.mxu0
        %v3917 = vadd.f32 %v3756, %v3916
        %v3918 = vpop.f32.mrf.mxu0
        %3919 = vmatprep.mubr.bf16.mxu0 %v2848
        %3920 = vmatmul.mubr.bf16.gmra.mxu0 %v2842
        %v3921 = vpop.f32.mrf.mxu0
        %v3922 = vadd.f32 %v3761, %v3921
        %v3923 = vpop.f32.mrf.mxu0
        %v3924 = vpop.f32.mrf.mxu0
        %v3925 = vadd.f32 %v3764, %v3924
        %v3926 = vpop.f32.mrf.mxu0
        %3927 = vdwg.mxu0
        %3928 = vmatprep.subr.bf16.mxu0 0
        %3929 = vmatpush1.bf16.msra.mxu0 %v3356
        %3930 = vmatprep.subr.bf16.mxu0 0
        %3931 = vmatpush1.bf16.msra.mxu0 %v3355
        %3932 = vmatprep.subr.bf16.mxu0 0
        %3933 = vmatpush1.bf16.msra.mxu0 %v3354
        %3934 = vmatprep.subr.bf16.mxu0 0
        %3935 = vmatpush1.bf16.msra.mxu0 %v3353
        %3936 = vmatprep.subr.bf16.mxu0 0
        %3937 = vmatpush1.bf16.msra.mxu0 %v3352
        %3938 = vmatprep.subr.bf16.mxu0 0
        %3939 = vmatpush1.bf16.msra.mxu0 %v3351
        %3940 = vmatprep.subr.bf16.mxu0 0
        %3941 = vmatpush1.bf16.msra.mxu0 %v3350
        %3942 = vmatprep.subr.bf16.mxu0 0
        %3943 = vmatpush1.bf16.msra.mxu0 %v3349
        %3944 = vmatprep.subr.bf16.mxu0 0
        %3945 = vmatpush2.bf16.msra.mxu0 %v3364
        %3946 = vmatprep.subr.bf16.mxu0 0
        %3947 = vmatpush2.bf16.msra.mxu0 %v3363
        %3948 = vmatprep.subr.bf16.mxu0 0
        %3949 = vmatpush2.bf16.msra.mxu0 %v3362
        %3950 = vmatprep.subr.bf16.mxu0 0
        %3951 = vmatpush2.bf16.msra.mxu0 %v3361
        %3952 = vmatprep.subr.bf16.mxu0 0
        %3953 = vmatpush2.bf16.msra.mxu0 %v3360
        %3954 = vmatprep.subr.bf16.mxu0 0
        %3955 = vmatpush2.bf16.msra.mxu0 %v3359
        %3956 = vmatprep.subr.bf16.mxu0 0
        %3957 = vmatpush2.bf16.msra.mxu0 %v3358
        %3958 = vmatprep.subr.bf16.mxu0 0
        %3959 = vmatpush2.bf16.msra.mxu0 %v3357
        %3960 = vmatprep.mubr.bf16.mxu0 %v2562
        %3961 = vmatmul.mubr.bf16.gmra.mxu0 %v2495
        %v3962 = vpop.f32.mrf.mxu0
        %v3963 = vadd.f32 %v3802, %v3962
        %v3964 = vpop.f32.mrf.mxu0
        %v3965 = vpop.f32.mrf.mxu0
        %v3966 = vadd.f32 %v3805, %v3965
        %v3967 = vpop.f32.mrf.mxu0
        %3968 = vmatprep.mubr.bf16.mxu0 %v2574
        %3969 = vmatmul.mubr.bf16.gmra.mxu0 %v2497
        %v3970 = vpop.f32.mrf.mxu0
        %v3971 = vadd.f32 %v3810, %v3970
        %v3972 = vpop.f32.mrf.mxu0
        %v3973 = vpop.f32.mrf.mxu0
        %v3974 = vadd.f32 %v3813, %v3973
        %v3975 = vpop.f32.mrf.mxu0
        %3976 = vmatprep.mubr.bf16.mxu0 %v2586
        %3977 = vmatmul.mubr.bf16.gmra.mxu0 %v2499
        %v3978 = vpop.f32.mrf.mxu0
        %v3979 = vadd.f32 %v3818, %v3978
        %v3980 = vpop.f32.mrf.mxu0
        %v3981 = vpop.f32.mrf.mxu0
        %v3982 = vadd.f32 %v3821, %v3981
        %v3983 = vpop.f32.mrf.mxu0
        %3984 = vmatprep.mubr.bf16.mxu0 %v2598
        %3985 = vmatmul.mubr.bf16.gmra.mxu0 %v2501
        %v3986 = vpop.f32.mrf.mxu0
        %v3987 = vadd.f32 %v3826, %v3986
        %v3988 = vpop.f32.mrf.mxu0
        %v3989 = vpop.f32.mrf.mxu0
        %v3990 = vadd.f32 %v3829, %v3989
        %v3991 = vpop.f32.mrf.mxu0
        %3992 = vmatprep.mubr.bf16.mxu0 %v2610
        %3993 = vmatmul.mubr.bf16.gmra.mxu0 %v2503
        %v3994 = vpop.f32.mrf.mxu0
        %v3995 = vadd.f32 %v3834, %v3994
        %v3996 = vpop.f32.mrf.mxu0
        %v3997 = vpop.f32.mrf.mxu0
        %v3998 = vadd.f32 %v3837, %v3997
        %v3999 = vpop.f32.mrf.mxu0
        %4000 = vmatprep.mubr.bf16.mxu0 %v2622
        %4001 = vmatmul.mubr.bf16.gmra.mxu0 %v2505
        %v4002 = vpop.f32.mrf.mxu0
        %v4003 = vadd.f32 %v3842, %v4002
        %v4004 = vpop.f32.mrf.mxu0
        %v4005 = vpop.f32.mrf.mxu0
        %v4006 = vadd.f32 %v3845, %v4005
        %v4007 = vpop.f32.mrf.mxu0
        %4008 = vmatprep.mubr.bf16.mxu0 %v2634
        %4009 = vmatmul.mubr.bf16.gmra.mxu0 %v2507
        %v4010 = vpop.f32.mrf.mxu0
        %v4011 = vadd.f32 %v3850, %v4010
        %v4012 = vpop.f32.mrf.mxu0
        %v4013 = vpop.f32.mrf.mxu0
        %v4014 = vadd.f32 %v3853, %v4013
        %v4015 = vpop.f32.mrf.mxu0
        %4016 = vmatprep.mubr.bf16.mxu0 %v2646
        %4017 = vmatmul.mubr.bf16.gmra.mxu0 %v2509
        %v4018 = vpop.f32.mrf.mxu0
        %v4019 = vadd.f32 %v3858, %v4018
        %v4020 = vpop.f32.mrf.mxu0
        %v4021 = vpop.f32.mrf.mxu0
        %v4022 = vadd.f32 %v3861, %v4021
        %v4023 = vpop.f32.mrf.mxu0
        %4024 = vmatprep.mubr.bf16.mxu0 %v2658
        %4025 = vmatmul.mubr.bf16.gmra.mxu0 %v2511
        %v4026 = vpop.f32.mrf.mxu0
        %v4027 = vadd.f32 %v3866, %v4026
        %v4028 = vpop.f32.mrf.mxu0
        %v4029 = vpop.f32.mrf.mxu0
        %v4030 = vadd.f32 %v3869, %v4029
        %v4031 = vpop.f32.mrf.mxu0
        %4032 = vmatprep.mubr.bf16.mxu0 %v2670
        %4033 = vmatmul.mubr.bf16.gmra.mxu0 %v2513
        %v4034 = vpop.f32.mrf.mxu0
        %v4035 = vadd.f32 %v3874, %v4034
        %v4036 = vpop.f32.mrf.mxu0
        %v4037 = vpop.f32.mrf.mxu0
        %v4038 = vadd.f32 %v3877, %v4037
        %v4039 = vpop.f32.mrf.mxu0
        %4040 = vmatprep.mubr.bf16.mxu0 %v2682
        %4041 = vmatmul.mubr.bf16.gmra.mxu0 %v2515
        %v4042 = vpop.f32.mrf.mxu0
        %v4043 = vadd.f32 %v3882, %v4042
        %v4044 = vpop.f32.mrf.mxu0
        %v4045 = vpop.f32.mrf.mxu0
        %v4046 = vadd.f32 %v3885, %v4045
        %v4047 = vpop.f32.mrf.mxu0
        %4048 = vmatprep.mubr.bf16.mxu0 %v2694
        %4049 = vmatmul.mubr.bf16.gmra.mxu0 %v2517
        %v4050 = vpop.f32.mrf.mxu0
        %v4051 = vadd.f32 %v3890, %v4050
        %v4052 = vpop.f32.mrf.mxu0
        %v4053 = vpop.f32.mrf.mxu0
        %v4054 = vadd.f32 %v3893, %v4053
        %v4055 = vpop.f32.mrf.mxu0
        %4056 = vmatprep.mubr.bf16.mxu0 %v2706
        %4057 = vmatmul.mubr.bf16.gmra.mxu0 %v2519
        %v4058 = vpop.f32.mrf.mxu0
        %v4059 = vadd.f32 %v3898, %v4058
        %v4060 = vpop.f32.mrf.mxu0
        %v4061 = vpop.f32.mrf.mxu0
        %v4062 = vadd.f32 %v3901, %v4061
        %v4063 = vpop.f32.mrf.mxu0
        %4064 = vmatprep.mubr.bf16.mxu0 %v2718
        %4065 = vmatmul.mubr.bf16.gmra.mxu0 %v2521
        %v4066 = vpop.f32.mrf.mxu0
        %v4067 = vadd.f32 %v3906, %v4066
        %v4068 = vpop.f32.mrf.mxu0
        %v4069 = vpop.f32.mrf.mxu0
        %v4070 = vadd.f32 %v3909, %v4069
        %v4071 = vpop.f32.mrf.mxu0
        %4072 = vmatprep.mubr.bf16.mxu0 %v2842
        %4073 = vmatmul.mubr.bf16.gmra.mxu0 %v2523
        %v4074 = vpop.f32.mrf.mxu0
        %v4075 = vadd.f32 %v3914, %v4074
        %v4076 = vpop.f32.mrf.mxu0
        %v4077 = vpop.f32.mrf.mxu0
        %v4078 = vadd.f32 %v3917, %v4077
        %v4079 = vpop.f32.mrf.mxu0
        %4080 = vmatprep.mubr.bf16.mxu0 %v2861
        %4081 = vmatmul.mubr.bf16.gmra.mxu0 %v2525
        %v4082 = vpop.f32.mrf.mxu0
        %v4083 = vadd.f32 %v3922, %v4082
        %v4084 = vpop.f32.mrf.mxu0
        %v4085 = vpop.f32.mrf.mxu0
        %v4086 = vadd.f32 %v3925, %v4085
        %v4087 = vpop.f32.mrf.mxu0
        %4088 = vdwg.mxu0
        %4089 = vmatprep.subr.bf16.mxu0 0
        %4090 = vmatpush1.bf16.msra.mxu0 %v3372
        %4091 = vmatprep.subr.bf16.mxu0 0
        %4092 = vmatpush1.bf16.msra.mxu0 %v3371
        %4093 = vmatprep.subr.bf16.mxu0 0
        %4094 = vmatpush1.bf16.msra.mxu0 %v3370
        %4095 = vmatprep.subr.bf16.mxu0 0
        %4096 = vmatpush1.bf16.msra.mxu0 %v3369
        %4097 = vmatprep.subr.bf16.mxu0 0
        %4098 = vmatpush1.bf16.msra.mxu0 %v3368
        %4099 = vmatprep.subr.bf16.mxu0 0
        %4100 = vmatpush1.bf16.msra.mxu0 %v3367
        %4101 = vmatprep.subr.bf16.mxu0 0
        %4102 = vmatpush1.bf16.msra.mxu0 %v3366
        %4103 = vmatprep.subr.bf16.mxu0 0
        %4104 = vmatpush1.bf16.msra.mxu0 %v3365
        %4105 = vmatprep.subr.bf16.mxu0 0
        %4106 = vmatpush2.bf16.msra.mxu0 0
        %4107 = vmatprep.subr.bf16.mxu0 0
        %4108 = vmatpush2.bf16.msra.mxu0 0
        %4109 = vmatprep.subr.bf16.mxu0 0
        %4110 = vmatpush2.bf16.msra.mxu0 0
        %4111 = vmatprep.subr.bf16.mxu0 0
        %4112 = vmatpush2.bf16.msra.mxu0 0
        %4113 = vmatprep.subr.bf16.mxu0 0
        %4114 = vmatpush2.bf16.msra.mxu0 0
        %4115 = vmatprep.subr.bf16.mxu0 0
        %4116 = vmatpush2.bf16.msra.mxu0 0
        %4117 = vmatprep.subr.bf16.mxu0 0
        %4118 = vmatpush2.bf16.msra.mxu0 0
        %4119 = vmatprep.subr.bf16.mxu0 0
        %4120 = vmatpush2.bf16.msra.mxu0 0
        %4121 = vmatprep.mubr.bf16.mxu0 0
        %4122 = vmatmul.mubr.bf16.gmra.mxu0 %v2775
        %v4123 = vpop.f32.mrf.mxu0
        %v4124 = vadd.f32 %v3963, %v4123
        %v4125 = vpop.f32.mrf.mxu0
        %v4126 = vpop.f32.mrf.mxu0
        %v4127 = vadd.f32 %v3966, %v4126
        %v4128 = vpop.f32.mrf.mxu0
        %4129 = vmatprep.mubr.bf16.mxu0 0
        %4130 = vmatmul.mubr.bf16.gmra.mxu0 %v2778
        %v4131 = vpop.f32.mrf.mxu0
        %v4132 = vadd.f32 %v3971, %v4131
        %v4133 = vpop.f32.mrf.mxu0
        %v4134 = vpop.f32.mrf.mxu0
        %v4135 = vadd.f32 %v3974, %v4134
        %v4136 = vpop.f32.mrf.mxu0
        %4137 = vmatprep.mubr.bf16.mxu0 0
        %4138 = vmatmul.mubr.bf16.gmra.mxu0 %v2781
        %v4139 = vpop.f32.mrf.mxu0
        %v4140 = vadd.f32 %v3979, %v4139
        %v4141 = vpop.f32.mrf.mxu0
        %v4142 = vpop.f32.mrf.mxu0
        %v4143 = vadd.f32 %v3982, %v4142
        %v4144 = vpop.f32.mrf.mxu0
        %4145 = vmatprep.mubr.bf16.mxu0 0
        %4146 = vmatmul.mubr.bf16.gmra.mxu0 %v2784
        %v4147 = vpop.f32.mrf.mxu0
        %v4148 = vadd.f32 %v3987, %v4147
        %v4149 = vpop.f32.mrf.mxu0
        %v4150 = vpop.f32.mrf.mxu0
        %v4151 = vadd.f32 %v3990, %v4150
        %v4152 = vpop.f32.mrf.mxu0
        %4153 = vmatprep.mubr.bf16.mxu0 0
        %4154 = vmatmul.mubr.bf16.gmra.mxu0 %v2787
        %v4155 = vpop.f32.mrf.mxu0
        %v4156 = vadd.f32 %v3995, %v4155
        %v4157 = vpop.f32.mrf.mxu0
        %v4158 = vpop.f32.mrf.mxu0
        %v4159 = vadd.f32 %v3998, %v4158
        %v4160 = vpop.f32.mrf.mxu0
        %4161 = vmatprep.mubr.bf16.mxu0 0
        %4162 = vmatmul.mubr.bf16.gmra.mxu0 %v2790
        %v4163 = vpop.f32.mrf.mxu0
        %v4164 = vadd.f32 %v4003, %v4163
        %v4165 = vpop.f32.mrf.mxu0
        %v4166 = vpop.f32.mrf.mxu0
        %v4167 = vadd.f32 %v4006, %v4166
        %v4168 = vpop.f32.mrf.mxu0
        %4169 = vmatprep.mubr.bf16.mxu0 0
        %4170 = vmatmul.mubr.bf16.gmra.mxu0 %v2793
        %v4171 = vpop.f32.mrf.mxu0
        %v4172 = vadd.f32 %v4011, %v4171
        %v4173 = vpop.f32.mrf.mxu0
        %v4174 = vpop.f32.mrf.mxu0
        %v4175 = vadd.f32 %v4014, %v4174
        %v4176 = vpop.f32.mrf.mxu0
        %4177 = vmatprep.mubr.bf16.mxu0 0
        %4178 = vmatmul.mubr.bf16.gmra.mxu0 %v2796
        %v4179 = vpop.f32.mrf.mxu0
        %v4180 = vadd.f32 %v4019, %v4179
        %v4181 = vpop.f32.mrf.mxu0
        %v4182 = vpop.f32.mrf.mxu0
        %v4183 = vadd.f32 %v4022, %v4182
        %v4184 = vpop.f32.mrf.mxu0
        %4185 = vmatprep.mubr.bf16.mxu0 0
        %4186 = vmatmul.mubr.bf16.gmra.mxu0 %v2799
        %v4187 = vpop.f32.mrf.mxu0
        %v4188 = vadd.f32 %v4027, %v4187
        %v4189 = vpop.f32.mrf.mxu0
        %v4190 = vpop.f32.mrf.mxu0
        %v4191 = vadd.f32 %v4030, %v4190
        %v4192 = vpop.f32.mrf.mxu0
        %4193 = vmatprep.mubr.bf16.mxu0 0
        %4194 = vmatmul.mubr.bf16.gmra.mxu0 %v2802
        %v4195 = vpop.f32.mrf.mxu0
        %v4196 = vadd.f32 %v4035, %v4195
        %v4197 = vpop.f32.mrf.mxu0
        %v4198 = vpop.f32.mrf.mxu0
        %v4199 = vadd.f32 %v4038, %v4198
        %v4200 = vpop.f32.mrf.mxu0
        %4201 = vmatprep.mubr.bf16.mxu0 0
        %4202 = vmatmul.mubr.bf16.gmra.mxu0 %v2805
        %v4203 = vpop.f32.mrf.mxu0
        %v4204 = vadd.f32 %v4043, %v4203
        %v4205 = vpop.f32.mrf.mxu0
        %v4206 = vpop.f32.mrf.mxu0
        %v4207 = vadd.f32 %v4046, %v4206
        %v4208 = vpop.f32.mrf.mxu0
        %4209 = vmatprep.mubr.bf16.mxu0 0
        %4210 = vmatmul.mubr.bf16.gmra.mxu0 %v2808
        %v4211 = vpop.f32.mrf.mxu0
        %v4212 = vadd.f32 %v4051, %v4211
        %v4213 = vpop.f32.mrf.mxu0
        %v4214 = vpop.f32.mrf.mxu0
        %v4215 = vadd.f32 %v4054, %v4214
        %v4216 = vpop.f32.mrf.mxu0
        %4217 = vmatprep.mubr.bf16.mxu0 0
        %4218 = vmatmul.mubr.bf16.gmra.mxu0 %v2811
        %v4219 = vpop.f32.mrf.mxu0
        %v4220 = vadd.f32 %v4059, %v4219
        %v4221 = vpop.f32.mrf.mxu0
        %v4222 = vpop.f32.mrf.mxu0
        %v4223 = vadd.f32 %v4062, %v4222
        %v4224 = vpop.f32.mrf.mxu0
        %4225 = vmatprep.mubr.bf16.mxu0 0
        %4226 = vmatmul.mubr.bf16.gmra.mxu0 %v2814
        %v4227 = vpop.f32.mrf.mxu0
        %v4228 = vadd.f32 %v4067, %v4227
        %v4229 = vpop.f32.mrf.mxu0
        %v4230 = vpop.f32.mrf.mxu0
        %v4231 = vadd.f32 %v4070, %v4230
        %v4232 = vpop.f32.mrf.mxu0
        %4233 = vmatprep.mubr.bf16.mxu0 0
        %4234 = vmatmul.mubr.bf16.gmra.mxu0 %v2848
        %v4235 = vpop.f32.mrf.mxu0
        %v4236 = vadd.f32 %v4075, %v4235
        %v4237 = vpop.f32.mrf.mxu0
        %v4238 = vpop.f32.mrf.mxu0
        %v4239 = vadd.f32 %v4078, %v4238
        %v4240 = vpop.f32.mrf.mxu0
        %4241 = vmatprep.mubr.bf16.mxu0 0
        %4242 = vmatmul.mubr.bf16.gmra.mxu0 %v2867
        %v4243 = vpop.f32.mrf.mxu0
        %v4244 = vadd.f32 %v4083, %v4243
        %v4245 = vpop.f32.mrf.mxu0
        %v4246 = vpop.f32.mrf.mxu0
        %v4247 = vadd.f32 %v4086, %v4246
        %v4248 = vpop.f32.mrf.mxu0
        %4249 = vdwg.mxu0
        %v4251 = vlaneseq
        %v4252 = vshrl.u32 %v4251, 7
        %v4253 = vsub.s32 0, %v4252
        %v4254 = vrot.slane %v2371, %v4253
        %v4256 = vmul.f32 %v4124, %v4254
        %v4257 = vmul.f32 %v4127, %v4254
        %v4258 = vmul.f32 %v4132, %v4254
        %v4259 = vmul.f32 %v4135, %v4254
        %v4260 = vmul.f32 %v4140, %v4254
        %v4261 = vmul.f32 %v4143, %v4254
        %v4262 = vmul.f32 %v4148, %v4254
        %v4263 = vmul.f32 %v4151, %v4254
        %v4264 = vmul.f32 %v4156, %v4254
        %v4265 = vmul.f32 %v4159, %v4254
        %v4266 = vmul.f32 %v4164, %v4254
        %v4267 = vmul.f32 %v4167, %v4254
        %v4268 = vmul.f32 %v4172, %v4254
        %v4269 = vmul.f32 %v4175, %v4254
        %v4270 = vmul.f32 %v4180, %v4254
        %v4271 = vmul.f32 %v4183, %v4254
        %v4272 = vmul.f32 %v4188, %v4254
        %v4273 = vmul.f32 %v4191, %v4254
        %v4274 = vmul.f32 %v4196, %v4254
        %v4275 = vmul.f32 %v4199, %v4254
        %v4276 = vmul.f32 %v4204, %v4254
        %v4277 = vmul.f32 %v4207, %v4254
        %v4278 = vmul.f32 %v4212, %v4254
        %v4279 = vmul.f32 %v4215, %v4254
        %v4280 = vmul.f32 %v4220, %v4254
        %v4281 = vmul.f32 %v4223, %v4254
        %v4282 = vmul.f32 %v4228, %v4254
        %v4283 = vmul.f32 %v4231, %v4254
        %v4284 = vmul.f32 %v4236, %v4254
        %v4285 = vmul.f32 %v4239, %v4254
        %v4286 = vmul.f32 %v4244, %v4254
        %v4287 = vmul.f32 %v4247, %v4254
        %v4289 = vlaneseq
        %v4290 = vshrl.u32 %v4289, 7
        %v4291 = vsub.s32 0, %v4290
        %v4292 = vrot.slane %v2372, %v4291
        %v4294 = vadd.f32 %v4256, %v4292
        %v4295 = vadd.f32 %v4257, %v4292
        %v4296 = vadd.f32 %v4258, %v4292
        %v4297 = vadd.f32 %v4259, %v4292
        %v4298 = vadd.f32 %v4260, %v4292
        %v4299 = vadd.f32 %v4261, %v4292
        %v4300 = vadd.f32 %v4262, %v4292
        %v4301 = vadd.f32 %v4263, %v4292
        %v4302 = vadd.f32 %v4264, %v4292
        %v4303 = vadd.f32 %v4265, %v4292
        %v4304 = vadd.f32 %v4266, %v4292
        %v4305 = vadd.f32 %v4267, %v4292
        %v4306 = vadd.f32 %v4268, %v4292
        %v4307 = vadd.f32 %v4269, %v4292
        %v4308 = vadd.f32 %v4270, %v4292
        %v4309 = vadd.f32 %v4271, %v4292
        %v4310 = vadd.f32 %v4272, %v4292
        %v4311 = vadd.f32 %v4273, %v4292
        %v4312 = vadd.f32 %v4274, %v4292
        %v4313 = vadd.f32 %v4275, %v4292
        %v4314 = vadd.f32 %v4276, %v4292
        %v4315 = vadd.f32 %v4277, %v4292
        %v4316 = vadd.f32 %v4278, %v4292
        %v4317 = vadd.f32 %v4279, %v4292
        %v4318 = vadd.f32 %v4280, %v4292
        %v4319 = vadd.f32 %v4281, %v4292
        %v4320 = vadd.f32 %v4282, %v4292
        %v4321 = vadd.f32 %v4283, %v4292
        %v4322 = vadd.f32 %v4284, %v4292
        %v4323 = vadd.f32 %v4285, %v4292
        %v4324 = vadd.f32 %v4286, %v4292
        %v4325 = vadd.f32 %v4287, %v4292
        %v4326 = vadd.f32 %v4294, %v381
        %v4327 = vadd.f32 %v4295, %v382
        %v4328 = vadd.f32 %v4296, %v383
        %v4329 = vadd.f32 %v4297, %v384
        %v4330 = vadd.f32 %v4298, %v385
        %v4331 = vadd.f32 %v4299, %v386
        %v4332 = vadd.f32 %v4300, %v387
        %v4333 = vadd.f32 %v4301, %v388
        %v4334 = vadd.f32 %v4302, %v389
        %v4335 = vadd.f32 %v4303, %v390
        %v4336 = vadd.f32 %v4304, %v391
        %v4337 = vadd.f32 %v4305, %v392
        %v4338 = vadd.f32 %v4306, %v393
        %v4339 = vadd.f32 %v4307, %v394
        %v4340 = vadd.f32 %v4308, %v395
        %v4341 = vadd.f32 %v4309, %v396
        %v4342 = vadd.f32 %v4310, %v397
        %v4343 = vadd.f32 %v4311, %v398
        %v4344 = vadd.f32 %v4312, %v399
        %v4345 = vadd.f32 %v4313, %v400
        %v4346 = vadd.f32 %v4314, %v401
        %v4347 = vadd.f32 %v4315, %v402
        %v4348 = vadd.f32 %v4316, %v403
        %v4349 = vadd.f32 %v4317, %v404
        %v4350 = vadd.f32 %v4318, %v405
        %v4351 = vadd.f32 %v4319, %v406
        %v4352 = vadd.f32 %v4320, %v407
        %v4353 = vadd.f32 %v4321, %v408
        %v4354 = vadd.f32 %v4322, %v409
        %v4355 = vadd.f32 %v4323, %v410
        %v4356 = vadd.f32 %v4324, %v411
        %v4357 = vadd.f32 %v4325, %v412
        %4358 = vst [vmem:[%s325] sm:$0xff] %v4326
        %4359 = vst [vmem:[%s325 + $0x8] sm:$0xff] %v4327
        %4360 = vst [vmem:[%s325 + $0x10] sm:$0xff] %v4328
        %4361 = vst [vmem:[%s325 + $0x18] sm:$0xff] %v4329
        %4362 = vst [vmem:[%s325 + $0x20] sm:$0xff] %v4330
        %4363 = vst [vmem:[%s325 + $0x28] sm:$0xff] %v4331
        %4364 = vst [vmem:[%s325 + $0x30] sm:$0xff] %v4332
        %4365 = vst [vmem:[%s325 + $0x38] sm:$0xff] %v4333
        %4366 = vst [vmem:[%s325 + $0x40] sm:$0xff] %v4334
        %4367 = vst [vmem:[%s325 + $0x48] sm:$0xff] %v4335
        %4368 = vst [vmem:[%s325 + $0x50] sm:$0xff] %v4336
        %4369 = vst [vmem:[%s325 + $0x58] sm:$0xff] %v4337
        %4370 = vst [vmem:[%s325 + $0x60] sm:$0xff] %v4338
        %4371 = vst [vmem:[%s325 + $0x68] sm:$0xff] %v4339
        %4372 = vst [vmem:[%s325 + $0x70] sm:$0xff] %v4340
        %4373 = vst [vmem:[%s325 + $0x78] sm:$0xff] %v4341
        %4374 = vst [vmem:[%s325 + $0x80] sm:$0xff] %v4342
        %4375 = vst [vmem:[%s325 + $0x88] sm:$0xff] %v4343
        %4376 = vst [vmem:[%s325 + $0x90] sm:$0xff] %v4344
        %4377 = vst [vmem:[%s325 + $0x98] sm:$0xff] %v4345
        %4378 = vst [vmem:[%s325 + $0xa0] sm:$0xff] %v4346
        %4379 = vst [vmem:[%s325 + $0xa8] sm:$0xff] %v4347
        %4380 = vst [vmem:[%s325 + $0xb0] sm:$0xff] %v4348
        %4381 = vst [vmem:[%s325 + $0xb8] sm:$0xff] %v4349
        %4382 = vst [vmem:[%s325 + $0xc0] sm:$0xff] %v4350
        %4383 = vst [vmem:[%s325 + $0xc8] sm:$0xff] %v4351
        %4384 = vst [vmem:[%s325 + $0xd0] sm:$0xff] %v4352
        %4385 = vst [vmem:[%s325 + $0xd8] sm:$0xff] %v4353
        %4386 = vst [vmem:[%s325 + $0xe0] sm:$0xff] %v4354
        %4387 = vst [vmem:[%s325 + $0xe8] sm:$0xff] %v4355
        %4388 = vst [vmem:[%s325 + $0xf0] sm:$0xff] %v4356
        %4389 = vst [vmem:[%s325 + $0xf8] sm:$0xff] %v4357
        %s4390 = sand.u32 %s185, 1
        %s4391 = scalar_lea.sflag [#allocation5], %s4390
        %s4392 = sand.u32 %s185, 1
        %s4393 = smul.addr %s4392, 256
        %s4394 = scalar_lea.vmem [#allocation9], %s4393
        // Predicated region
        $region61: #{res_block_forward.1} parent=47 // pred_check
          %p4395 = pneg %p195
        $region62: #{res_block_forward.1} parent=47 // pred_check_branch
          %4397 = sbr.rel (%p4395) target = $region64
        $region63: #{res_block_forward.1} parent=47 // pred_region
          %s4399 = ssub.s32 4096, 4096
          %4400 = vsyncadd %s4391, %s4399
          %s4401 = smul.addr %s25, 32
          %s4402 = smul.addr %s4401, 128
          %s4403 = scalar_lea.hbm %s7, %s4402
          %s4404 = sshll.u32 %s4394, 4
          %s4405 = int_to_ptr.vmem [resolvable:$true] %s4404
          %4410 = dma.vmem_to_hbm [thread:$0]  %s4405, 4096, %s4403, %s4391, 128, 128, 8
        $region64: #{res_block_forward.1} parent=47 // pred_fallthru
          _
      $region48: #{res_block_forward.1} parent=5 // pred_fallthru
        _
      %p4411 = scmp.le.s32.totalorder 2, %s20
      // Predicated region
      $region65: #{res_block_forward.1} parent=5 // pred_check
        %p4412 = pneg %p4411
      $region66: #{res_block_forward.1} parent=5 // pred_check_branch
        %4414 = sbr.rel (%p4412) target = $region68
      $region67: #{res_block_forward.1} parent=5 // pred_region
        %s4415 = ssub.s32 %s20, 2
        // Predicated region
        $region69: #{res_block_forward.1} parent=67 // pred_check
          %p4416 = pneg %p201
        $region70: #{res_block_forward.1} parent=67 // pred_check_branch
          %4418 = sbr.rel (%p4416) target = $region72
        $region71: #{res_block_forward.1} parent=67 // pred_region
          %s4419 = sand.u32 %s186, 1
          %s4420 = scalar_lea.sflag [#allocation5], %s4419
          %s4421 = sand.u32 %s186, 1
          %s4422 = smul.addr %s4421, 256
          %s4423 = scalar_lea.vmem [#allocation9], %s4422
          %4424 = dma.done %s4420, 4096
        $region72: #{res_block_forward.1} parent=67 // pred_fallthru
          _
      $region68: #{res_block_forward.1} parent=5 // pred_fallthru
        _
    $region6: #{res_block_forward.1} parent=1 // loop_footer
      %s24 = sadd.s32 1, %s20
    $region7: #{res_block_forward.1} parent=1 // loop_footer_branch
      %19 = sbr.rel target = $region3
    $region8: #{res_block_forward.1} parent=1 // loop_exit
      _
    %4425 = vsyncpa [#allocation4], 1
    %s4426 = scalar_lea.sflag [#allocation4], 1
    %4427 = vsyncpa %s4426, 1
    %4428 = vsyncpa [#allocation7], 1
    %4429 = vsyncpa [#allocation5], 1
    %s4430 = scalar_lea.sflag [#allocation5], 1
    %4431 = vsyncpa %s4430, 1

</llo_original>
